<compile_context>
chip_gen: v5e
topology: v5e:2x2
jax: 0.10.0
libtpu: 0.0.40
codegen_flags: <defaults>
</compile_context>

<pallas_src>
import functools

import jax
import jax.numpy as jnp
import numpy as np
from jax.experimental import pallas as pl
from jax.experimental.pallas import tpu as pltpu

RNN_LAYERS = 3
RNN_NEURONS = 128  # LSTM hidden size H


def _round_up(x, m):
  return (x + m - 1) // m * m


def _lstm_fc_kernel(x_ref, wih0_ref, wihr_ref, whh_ref, b_ref, fcw_ref,
                    fcb_ref, out_ref, *, hidden, num_layers, seq_len, batch):
  """Single grid step: layer-major LSTM recurrence + FC + log_softmax.

  x_ref:    (T*B, E_pad)   layer-0 inputs, time-major rows (row = t*B + b)
  wih0_ref: (E_pad, 4H)    layer-0 W_ih^T (K padded only to sublane width)
  wihr_ref: (L-1, H, 4H)   layers 1..L-1 W_ih^T
  whh_ref:  (L, H, 4H)     W_hh^T (stationary across the time loop)
  b_ref:    (L, 1, 4H)     b_ih + b_hh
  fcw_ref:  (H, V_pad)     FC weight^T, lane-padded vocab
  fcb_ref:  (1, V_pad)     FC bias, padded lanes = -1e30
  out_ref:  (B, V_pad)     log-probs for the last timestep
  """
  H = hidden
  T = seq_len
  B = batch

  def sigmoid(v):  # one EUP tanh instead of exp + divide
    return 0.5 * (1.0 + jnp.tanh(0.5 * v))

  layer_in = x_ref[...]                                       # (T*B, E_pad)
  h = None
  for l in range(num_layers):
    w_ih_t = wih0_ref[...] if l == 0 else wihr_ref[l - 1]     # (K, 4H)
    # Batched input-to-hidden for all T timesteps at once, bias folded in.
    gates_pre = (jnp.dot(layer_in, w_ih_t,
                         preferred_element_type=jnp.float32)
                 + b_ref[l])                                  # (T*B, 4H)
    w_hh_t = whh_ref[l]                                       # (H, 4H) hoisted

    h = jnp.zeros((B, H), jnp.float32)
    c = jnp.zeros((B, H), jnp.float32)
    hs = []
    for t in range(T):   # unrolled serial chain; only the hh matmul per step
      gates = gates_pre[t * B:(t + 1) * B, :] + jnp.dot(
          h, w_hh_t, preferred_element_type=jnp.float32)      # (B, 4H)
      i = sigmoid(gates[:, 0 * H:1 * H])
      f = sigmoid(gates[:, 1 * H:2 * H])
      g = jnp.tanh(gates[:, 2 * H:3 * H])
      o = sigmoid(gates[:, 3 * H:4 * H])
      c = f * c + i * g
      h = o * jnp.tanh(c)
      if l < num_layers - 1:
        hs.append(h)
    if l < num_layers - 1:
      # Next layer's time-major input rows (tile-aligned sublane concat).
      layer_in = jnp.concatenate(hs, axis=0)                  # (T*B, H)

  # FC + log_softmax on the last layer's final hidden state (out[-1,:,:]).
  logits = (jnp.dot(h, fcw_ref[...], preferred_element_type=jnp.float32)
            + fcb_ref[...])                                   # (B, V_pad)
  m = jnp.max(logits, axis=1, keepdims=True)
  z = logits - m
  lse = jnp.log(jnp.sum(jnp.exp(z), axis=1, keepdims=True))
  out_ref[...] = z - lse


def init_params(key, vocab_size, embedding_dim):
  """Deterministic synthetic parameters mirroring the PyTorch module shapes."""
  H = RNN_NEURONS
  L = RNN_LAYERS

  keys = jax.random.split(key, 1 + 4 * L + 2)
  it = iter(keys)

  # nn.Embedding default: N(0, 1)
  embedding = jax.random.normal(next(it), (vocab_size, embedding_dim),
                                jnp.float32)

  bound = 1.0 / np.sqrt(H)
  w_ih, w_hh, b_ih, b_hh = [], [], [], []
  for l in range(L):
    in_dim = embedding_dim if l == 0 else H
    w_ih.append(jax.random.uniform(next(it), (4 * H, in_dim), jnp.float32,
                                   -bound, bound))
    w_hh.append(jax.random.uniform(next(it), (4 * H, H), jnp.float32,
                                   -bound, bound))
    b_ih.append(jax.random.uniform(next(it), (4 * H,), jnp.float32,
                                   -bound, bound))
    b_hh.append(jax.random.uniform(next(it), (4 * H,), jnp.float32,
                                   -bound, bound))

  fc_w = jax.random.uniform(next(it), (vocab_size, H), jnp.float32,
                            -bound, bound)
  fc_b = jax.random.uniform(next(it), (vocab_size,), jnp.float32,
                            -bound, bound)

  # --- kernel packing -------------------------------------------------------
  # Layer-0 W_ih^T with K padded only to the sublane width (true-K contraction,
  # zero rows contribute nothing).
  e_pad = _round_up(embedding_dim, 8)
  w_ih0_t = jnp.zeros((e_pad, 4 * H), jnp.float32).at[
      :embedding_dim, :].set(w_ih[0].T)                       # (E_pad, 4H)
  w_ih_rest_t = jnp.stack([w_ih[l].T for l in range(1, L)], axis=0)  # (L-1,H,4H)
  w_hh_t = jnp.stack([w_hh[l].T for l in range(L)], axis=0)          # (L,H,4H)
  b = jnp.stack([(b_ih[l] + b_hh[l])[None, :] for l in range(L)], axis=0)

  # FC padded to a lane-dense vocab; padded logits forced to -1e30 via bias.
  v_pad = _round_up(vocab_size, 128)
  fc_w_t_pad = jnp.zeros((H, v_pad), jnp.float32).at[:, :vocab_size].set(fc_w.T)
  fc_b_pad = jnp.full((1, v_pad), -1e30, jnp.float32).at[
      0, :vocab_size].set(fc_b)

  return {
      "embedding": embedding,
      "vocab_size": vocab_size,
      "w_ih0_t": w_ih0_t,                 # (E_pad, 4H)
      "w_ih_rest_t": w_ih_rest_t,         # (L-1, H, 4H)
      "w_hh_t": w_hh_t,                   # (L, H, 4H)
      "b": b,                             # (L, 1, 4H)
      "fc_w_t_pad": fc_w_t_pad,           # (H, V_pad)
      "fc_b_pad": fc_b_pad,               # (1, V_pad)
      # raw (PyTorch-layout) weights kept only for the pure-JAX reference
      "raw": {"w_ih": w_ih, "w_hh": w_hh, "b_ih": b_ih, "b_hh": b_hh,
              "fc_w": fc_w, "fc_b": fc_b},
  }


def _embed_and_reshape(inputs, emb_table):
  # embeds = embedding(inputs).permute(1,0,2,3).view(T, B, -1)
  B, T, C = inputs.shape
  E = emb_table.shape[1]
  embeds = jnp.take(emb_table, inputs, axis=0)        # (B, T, C, E)
  embeds = jnp.transpose(embeds, (1, 0, 2, 3))        # (T, B, C, E)
  x = embeds.reshape(T, B, C * E)                     # (T, B, C*E)
  # The module feeds this into LSTM(input_size=embedding_dim), so C*E must
  # equal E (i.e. context_size == 1) for the forward pass to be well-defined.
  assert C * E == E, "LSTM input size must equal embedding_dim (context_size==1)"
  return x


def rnnlm2gram_forward(inputs, params):
  x = _embed_and_reshape(inputs, params["embedding"])   # (T, B, E)
  T, B, E = x.shape
  H = RNN_NEURONS
  V = params["vocab_size"]
  V_pad = params["fc_b_pad"].shape[-1]
  E_pad = params["w_ih0_t"].shape[0]
  B_pad = _round_up(max(B, 8), 8)

  # Time-major rows (row = t*B_pad + b); batch padded to the sublane width;
  # layer-0 input width padded only to a sublane multiple (true-K contraction).
  x_rows = (jnp.zeros((T, B_pad, E_pad), jnp.float32)
            .at[:, :B, :E].set(x)
            .reshape(T * B_pad, E_pad))

  kernel = functools.partial(_lstm_fc_kernel, hidden=H, num_layers=RNN_LAYERS,
                             seq_len=T, batch=B_pad)

  out_pad = pl.pallas_call(
      kernel,
      out_shape=jax.ShapeDtypeStruct((B_pad, V_pad), jnp.float32),
      grid_spec=pltpu.PrefetchScalarGridSpec(
          num_scalar_prefetch=0,
          grid=(1,),   # whole problem in one invocation; recurrence in-kernel
          in_specs=[
              pl.BlockSpec((T * B_pad, E_pad), lambda i: (0, 0)),           # x
              pl.BlockSpec((E_pad, 4 * H), lambda i: (0, 0)),               # W_ih^T l0
              pl.BlockSpec((RNN_LAYERS - 1, H, 4 * H),
                           lambda i: (0, 0, 0)),                            # W_ih^T l1..
              pl.BlockSpec((RNN_LAYERS, H, 4 * H), lambda i: (0, 0, 0)),    # W_hh^T
              pl.BlockSpec((RNN_LAYERS, 1, 4 * H), lambda i: (0, 0, 0)),    # biases
              pl.BlockSpec((H, V_pad), lambda i: (0, 0)),                   # fc_w^T
              pl.BlockSpec((1, V_pad), lambda i: (0, 0)),                   # fc_b
          ],
          out_specs=pl.BlockSpec((B_pad, V_pad), lambda i: (0, 0)),
      ),
      compiler_params=pltpu.CompilerParams(
          dimension_semantics=("arbitrary",)),
  )(x_rows, params["w_ih0_t"], params["w_ih_rest_t"], params["w_hh_t"],
    params["b"], params["fc_w_t_pad"], params["fc_b_pad"])

  return out_pad[:B, :V]


def reference_forward(inputs, params):
  """Pure-JAX reference matching PyTorch semantics (for correctness check)."""
  x = _embed_and_reshape(inputs, params["embedding"])
  T, B, _ = x.shape
  H = RNN_NEURONS
  raw = params["raw"]
  h = [jnp.zeros((B, H), jnp.float32) for _ in range(RNN_LAYERS)]
  c = [jnp.zeros((B, H), jnp.float32) for _ in range(RNN_LAYERS)]
  for t in range(T):
    inp = x[t]
    for l in range(RNN_LAYERS):
      gates = (inp @ raw["w_ih"][l].T + h[l] @ raw["w_hh"][l].T
               + raw["b_ih"][l] + raw["b_hh"][l])
      i = jax.nn.sigmoid(gates[:, 0 * H:1 * H])
      f = jax.nn.sigmoid(gates[:, 1 * H:2 * H])
      g = jnp.tanh(gates[:, 2 * H:3 * H])
      o = jax.nn.sigmoid(gates[:, 3 * H:4 * H])
      c[l] = f * c[l] + i * g
      h[l] = o * jnp.tanh(c[l])
      inp = h[l]
  logits = h[-1] @ raw["fc_w"].T + raw["fc_b"]
  return jax.nn.log_softmax(logits, axis=1)


if __name__ == "__main__":
  vocab_size = 50
  embedding_dim = 32
  context_size = 1   # required by the module's LSTM(input_size=embedding_dim)
  batch = 2
  seq_len = 8

  root = jax.random.PRNGKey(0)
  k_params, k_inputs = jax.random.split(root)
  params = init_params(k_params, vocab_size, embedding_dim)

  inputs = jax.random.randint(k_inputs, (batch, seq_len, context_size),
                              minval=0, maxval=vocab_size, dtype=jnp.int32)

  out = rnnlm2gram_forward(inputs, params)
  out = jax.block_until_ready(out)

  ref = reference_forward(inputs, params)
  np.testing.assert_allclose(np.asarray(out), np.asarray(ref),
                             rtol=1e-4, atol=1e-4)
  assert out.shape == (batch, vocab_size)

  print("KERNEL_OK")
</pallas_src>

<mosaic_0001>
module attributes {stable_mosaic.version = 11 : i64} {
  func.func @_lstm_fc_kernel(%arg0: i32, %arg1: memref<64x32xf32, #tpu.memory_space<vmem>>, %arg2: memref<32x512xf32, #tpu.memory_space<vmem>>, %arg3: memref<2x128x512xf32, #tpu.memory_space<vmem>>, %arg4: memref<3x128x512xf32, #tpu.memory_space<vmem>>, %arg5: memref<3x1x512xf32, #tpu.memory_space<vmem>>, %arg6: memref<128x128xf32, #tpu.memory_space<vmem>>, %arg7: memref<1x128xf32, #tpu.memory_space<vmem>>, %arg8: memref<8x128xf32, #tpu.memory_space<vmem>>) attributes {dimension_semantics = [#tpu.dimension_semantics<arbitrary>], iteration_bounds = array<i64: 1>, scalar_prefetch = 0 : i64, scratch_operands = 0 : i64, tpu.core_type = #tpu.core_type<tc>, window_params = [{pipeline_mode = #tpu.pipeline_mode<synchronous>, transform_indices = @transform_0, window_bounds = array<i64: 64, 32>}, {pipeline_mode = #tpu.pipeline_mode<synchronous>, transform_indices = @transform_1, window_bounds = array<i64: 32, 512>}, {pipeline_mode = #tpu.pipeline_mode<synchronous>, transform_indices = @transform_2, window_bounds = array<i64: 2, 128, 512>}, {pipeline_mode = #tpu.pipeline_mode<synchronous>, transform_indices = @transform_3, window_bounds = array<i64: 3, 128, 512>}, {pipeline_mode = #tpu.pipeline_mode<synchronous>, transform_indices = @transform_4, window_bounds = array<i64: 3, 1, 512>}, {pipeline_mode = #tpu.pipeline_mode<synchronous>, transform_indices = @transform_5, window_bounds = array<i64: 128, 128>}, {pipeline_mode = #tpu.pipeline_mode<synchronous>, transform_indices = @transform_6, window_bounds = array<i64: 1, 128>}, {pipeline_mode = #tpu.pipeline_mode<synchronous>, transform_indices = @transform_7, window_bounds = array<i64: 8, 128>}]} {
    %c0 = arith.constant 0 : index
    %c0_0 = arith.constant 0 : index
    %0 = vector.load %arg1[%c0, %c0_0] : memref<64x32xf32, #tpu.memory_space<vmem>>, vector<64x32xf32>
    %c0_1 = arith.constant 0 : index
    %c0_2 = arith.constant 0 : index
    %1 = vector.load %arg2[%c0_1, %c0_2] : memref<32x512xf32, #tpu.memory_space<vmem>>, vector<32x512xf32>
    %cst = arith.constant dense<0.000000e+00> : vector<64x512xf32>
    %2 = tpu.matmul %0, %1, %cst {dimension_numbers = #tpu.dot_dimension_numbers<[1], [0], [0], [1], [0, 0, 1, 1], [], []>} : vector<64x32xf32>, vector<32x512xf32>, vector<64x512xf32> -> vector<64x512xf32>
    %c0_3 = arith.constant 0 : index
    %c0_4 = arith.constant 0 : index
    %c0_5 = arith.constant 0 : index
    %3 = vector.load %arg5[%c0_3, %c0_4, %c0_5] : memref<3x1x512xf32, #tpu.memory_space<vmem>>, vector<1x1x512xf32>
    %4 = vector.shape_cast %3 : vector<1x1x512xf32> to vector<1x512xf32>
    %5 = vector.broadcast %4 : vector<1x512xf32> to vector<64x512xf32>
    %6 = arith.addf %2, %5 : vector<64x512xf32>
    %c0_6 = arith.constant 0 : index
    %c0_7 = arith.constant 0 : index
    %c0_8 = arith.constant 0 : index
    %7 = vector.load %arg4[%c0_6, %c0_7, %c0_8] : memref<3x128x512xf32, #tpu.memory_space<vmem>>, vector<1x128x512xf32>
    %8 = vector.shape_cast %7 : vector<1x128x512xf32> to vector<128x512xf32>
    %cst_9 = arith.constant 0.000000e+00 : f32
    %9 = vector.broadcast %cst_9 : f32 to vector<8x128xf32>
    %cst_10 = arith.constant 0.000000e+00 : f32
    %10 = vector.broadcast %cst_10 : f32 to vector<8x128xf32>
    %11 = vector.extract_strided_slice %6 {offsets = [0, 0], sizes = [8, 512], strides = [1, 1]} : vector<64x512xf32> to vector<8x512xf32>
    %cst_11 = arith.constant dense<0.000000e+00> : vector<8x512xf32>
    %12 = tpu.matmul %9, %8, %cst_11 {dimension_numbers = #tpu.dot_dimension_numbers<[1], [0], [0], [1], [0, 0, 1, 1], [], []>} : vector<8x128xf32>, vector<128x512xf32>, vector<8x512xf32> -> vector<8x512xf32>
    %13 = arith.addf %11, %12 : vector<8x512xf32>
    %14 = vector.extract_strided_slice %13 {offsets = [0, 0], sizes = [8, 128], strides = [1, 1]} : vector<8x512xf32> to vector<8x128xf32>
    %cst_12 = arith.constant 5.000000e-01 : f32
    %15 = vector.broadcast %cst_12 : f32 to vector<8x128xf32>
    %16 = arith.mulf %15, %14 : vector<8x128xf32>
    %17 = math.tanh %16 : vector<8x128xf32>
    %cst_13 = arith.constant 1.000000e+00 : f32
    %18 = vector.broadcast %cst_13 : f32 to vector<8x128xf32>
    %19 = arith.addf %18, %17 : vector<8x128xf32>
    %cst_14 = arith.constant 5.000000e-01 : f32
    %20 = vector.broadcast %cst_14 : f32 to vector<8x128xf32>
    %21 = arith.mulf %20, %19 : vector<8x128xf32>
    %22 = vector.extract_strided_slice %13 {offsets = [0, 128], sizes = [8, 128], strides = [1, 1]} : vector<8x512xf32> to vector<8x128xf32>
    %cst_15 = arith.constant 5.000000e-01 : f32
    %23 = vector.broadcast %cst_15 : f32 to vector<8x128xf32>
    %24 = arith.mulf %23, %22 : vector<8x128xf32>
    %25 = math.tanh %24 : vector<8x128xf32>
    %cst_16 = arith.constant 1.000000e+00 : f32
    %26 = vector.broadcast %cst_16 : f32 to vector<8x128xf32>
    %27 = arith.addf %26, %25 : vector<8x128xf32>
    %cst_17 = arith.constant 5.000000e-01 : f32
    %28 = vector.broadcast %cst_17 : f32 to vector<8x128xf32>
    %29 = arith.mulf %28, %27 : vector<8x128xf32>
    %30 = vector.extract_strided_slice %13 {offsets = [0, 256], sizes = [8, 128], strides = [1, 1]} : vector<8x512xf32> to vector<8x128xf32>
    %31 = math.tanh %30 : vector<8x128xf32>
    %32 = vector.extract_strided_slice %13 {offsets = [0, 384], sizes = [8, 128], strides = [1, 1]} : vector<8x512xf32> to vector<8x128xf32>
    %cst_18 = arith.constant 5.000000e-01 : f32
    %33 = vector.broadcast %cst_18 : f32 to vector<8x128xf32>
    %34 = arith.mulf %33, %32 : vector<8x128xf32>
    %35 = math.tanh %34 : vector<8x128xf32>
    %cst_19 = arith.constant 1.000000e+00 : f32
    %36 = vector.broadcast %cst_19 : f32 to vector<8x128xf32>
    %37 = arith.addf %36, %35 : vector<8x128xf32>
    %cst_20 = arith.constant 5.000000e-01 : f32
    %38 = vector.broadcast %cst_20 : f32 to vector<8x128xf32>
    %39 = arith.mulf %38, %37 : vector<8x128xf32>
    %40 = arith.mulf %29, %10 : vector<8x128xf32>
    %41 = arith.mulf %21, %31 : vector<8x128xf32>
    %42 = arith.addf %40, %41 : vector<8x128xf32>
    %43 = math.tanh %42 : vector<8x128xf32>
    %44 = arith.mulf %39, %43 : vector<8x128xf32>
    %45 = vector.extract_strided_slice %6 {offsets = [8, 0], sizes = [8, 512], strides = [1, 1]} : vector<64x512xf32> to vector<8x512xf32>
    %cst_21 = arith.constant dense<0.000000e+00> : vector<8x512xf32>
    %46 = tpu.matmul %44, %8, %cst_21 {dimension_numbers = #tpu.dot_dimension_numbers<[1], [0], [0], [1], [0, 0, 1, 1], [], []>} : vector<8x128xf32>, vector<128x512xf32>, vector<8x512xf32> -> vector<8x512xf32>
    %47 = arith.addf %45, %46 : vector<8x512xf32>
    %48 = vector.extract_strided_slice %47 {offsets = [0, 0], sizes = [8, 128], strides = [1, 1]} : vector<8x512xf32> to vector<8x128xf32>
    %cst_22 = arith.constant 5.000000e-01 : f32
    %49 = vector.broadcast %cst_22 : f32 to vector<8x128xf32>
    %50 = arith.mulf %49, %48 : vector<8x128xf32>
    %51 = math.tanh %50 : vector<8x128xf32>
    %cst_23 = arith.constant 1.000000e+00 : f32
    %52 = vector.broadcast %cst_23 : f32 to vector<8x128xf32>
    %53 = arith.addf %52, %51 : vector<8x128xf32>
    %cst_24 = arith.constant 5.000000e-01 : f32
    %54 = vector.broadcast %cst_24 : f32 to vector<8x128xf32>
    %55 = arith.mulf %54, %53 : vector<8x128xf32>
    %56 = vector.extract_strided_slice %47 {offsets = [0, 128], sizes = [8, 128], strides = [1, 1]} : vector<8x512xf32> to vector<8x128xf32>
    %cst_25 = arith.constant 5.000000e-01 : f32
    %57 = vector.broadcast %cst_25 : f32 to vector<8x128xf32>
    %58 = arith.mulf %57, %56 : vector<8x128xf32>
    %59 = math.tanh %58 : vector<8x128xf32>
    %cst_26 = arith.constant 1.000000e+00 : f32
    %60 = vector.broadcast %cst_26 : f32 to vector<8x128xf32>
    %61 = arith.addf %60, %59 : vector<8x128xf32>
    %cst_27 = arith.constant 5.000000e-01 : f32
    %62 = vector.broadcast %cst_27 : f32 to vector<8x128xf32>
    %63 = arith.mulf %62, %61 : vector<8x128xf32>
    %64 = vector.extract_strided_slice %47 {offsets = [0, 256], sizes = [8, 128], strides = [1, 1]} : vector<8x512xf32> to vector<8x128xf32>
    %65 = math.tanh %64 : vector<8x128xf32>
    %66 = vector.extract_strided_slice %47 {offsets = [0, 384], sizes = [8, 128], strides = [1, 1]} : vector<8x512xf32> to vector<8x128xf32>
    %cst_28 = arith.constant 5.000000e-01 : f32
    %67 = vector.broadcast %cst_28 : f32 to vector<8x128xf32>
    %68 = arith.mulf %67, %66 : vector<8x128xf32>
    %69 = math.tanh %68 : vector<8x128xf32>
    %cst_29 = arith.constant 1.000000e+00 : f32
    %70 = vector.broadcast %cst_29 : f32 to vector<8x128xf32>
    %71 = arith.addf %70, %69 : vector<8x128xf32>
    %cst_30 = arith.constant 5.000000e-01 : f32
    %72 = vector.broadcast %cst_30 : f32 to vector<8x128xf32>
    %73 = arith.mulf %72, %71 : vector<8x128xf32>
    %74 = arith.mulf %63, %42 : vector<8x128xf32>
    %75 = arith.mulf %55, %65 : vector<8x128xf32>
    %76 = arith.addf %74, %75 : vector<8x128xf32>
    %77 = math.tanh %76 : vector<8x128xf32>
    %78 = arith.mulf %73, %77 : vector<8x128xf32>
    %79 = vector.extract_strided_slice %6 {offsets = [16, 0], sizes = [8, 512], strides = [1, 1]} : vector<64x512xf32> to vector<8x512xf32>
    %cst_31 = arith.constant dense<0.000000e+00> : vector<8x512xf32>
    %80 = tpu.matmul %78, %8, %cst_31 {dimension_numbers = #tpu.dot_dimension_numbers<[1], [0], [0], [1], [0, 0, 1, 1], [], []>} : vector<8x128xf32>, vector<128x512xf32>, vector<8x512xf32> -> vector<8x512xf32>
    %81 = arith.addf %79, %80 : vector<8x512xf32>
    %82 = vector.extract_strided_slice %81 {offsets = [0, 0], sizes = [8, 128], strides = [1, 1]} : vector<8x512xf32> to vector<8x128xf32>
    %cst_32 = arith.constant 5.000000e-01 : f32
    %83 = vector.broadcast %cst_32 : f32 to vector<8x128xf32>
    %84 = arith.mulf %83, %82 : vector<8x128xf32>
    %85 = math.tanh %84 : vector<8x128xf32>
    %cst_33 = arith.constant 1.000000e+00 : f32
    %86 = vector.broadcast %cst_33 : f32 to vector<8x128xf32>
    %87 = arith.addf %86, %85 : vector<8x128xf32>
    %cst_34 = arith.constant 5.000000e-01 : f32
    %88 = vector.broadcast %cst_34 : f32 to vector<8x128xf32>
    %89 = arith.mulf %88, %87 : vector<8x128xf32>
    %90 = vector.extract_strided_slice %81 {offsets = [0, 128], sizes = [8, 128], strides = [1, 1]} : vector<8x512xf32> to vector<8x128xf32>
    %cst_35 = arith.constant 5.000000e-01 : f32
    %91 = vector.broadcast %cst_35 : f32 to vector<8x128xf32>
    %92 = arith.mulf %91, %90 : vector<8x128xf32>
    %93 = math.tanh %92 : vector<8x128xf32>
    %cst_36 = arith.constant 1.000000e+00 : f32
    %94 = vector.broadcast %cst_36 : f32 to vector<8x128xf32>
    %95 = arith.addf %94, %93 : vector<8x128xf32>
    %cst_37 = arith.constant 5.000000e-01 : f32
    %96 = vector.broadcast %cst_37 : f32 to vector<8x128xf32>
    %97 = arith.mulf %96, %95 : vector<8x128xf32>
    %98 = vector.extract_strided_slice %81 {offsets = [0, 256], sizes = [8, 128], strides = [1, 1]} : vector<8x512xf32> to vector<8x128xf32>
    %99 = math.tanh %98 : vector<8x128xf32>
    %100 = vector.extract_strided_slice %81 {offsets = [0, 384], sizes = [8, 128], strides = [1, 1]} : vector<8x512xf32> to vector<8x128xf32>
    %cst_38 = arith.constant 5.000000e-01 : f32
    %101 = vector.broadcast %cst_38 : f32 to vector<8x128xf32>
    %102 = arith.mulf %101, %100 : vector<8x128xf32>
    %103 = math.tanh %102 : vector<8x128xf32>
    %cst_39 = arith.constant 1.000000e+00 : f32
    %104 = vector.broadcast %cst_39 : f32 to vector<8x128xf32>
    %105 = arith.addf %104, %103 : vector<8x128xf32>
    %cst_40 = arith.constant 5.000000e-01 : f32
    %106 = vector.broadcast %cst_40 : f32 to vector<8x128xf32>
    %107 = arith.mulf %106, %105 : vector<8x128xf32>
    %108 = arith.mulf %97, %76 : vector<8x128xf32>
    %109 = arith.mulf %89, %99 : vector<8x128xf32>
    %110 = arith.addf %108, %109 : vector<8x128xf32>
    %111 = math.tanh %110 : vector<8x128xf32>
    %112 = arith.mulf %107, %111 : vector<8x128xf32>
    %113 = vector.extract_strided_slice %6 {offsets = [24, 0], sizes = [8, 512], strides = [1, 1]} : vector<64x512xf32> to vector<8x512xf32>
    %cst_41 = arith.constant dense<0.000000e+00> : vector<8x512xf32>
    %114 = tpu.matmul %112, %8, %cst_41 {dimension_numbers = #tpu.dot_dimension_numbers<[1], [0], [0], [1], [0, 0, 1, 1], [], []>} : vector<8x128xf32>, vector<128x512xf32>, vector<8x512xf32> -> vector<8x512xf32>
    %115 = arith.addf %113, %114 : vector<8x512xf32>
    %116 = vector.extract_strided_slice %115 {offsets = [0, 0], sizes = [8, 128], strides = [1, 1]} : vector<8x512xf32> to vector<8x128xf32>
    %cst_42 = arith.constant 5.000000e-01 : f32
    %117 = vector.broadcast %cst_42 : f32 to vector<8x128xf32>
    %118 = arith.mulf %117, %116 : vector<8x128xf32>
    %119 = math.tanh %118 : vector<8x128xf32>
    %cst_43 = arith.constant 1.000000e+00 : f32
    %120 = vector.broadcast %cst_43 : f32 to vector<8x128xf32>
    %121 = arith.addf %120, %119 : vector<8x128xf32>
    %cst_44 = arith.constant 5.000000e-01 : f32
    %122 = vector.broadcast %cst_44 : f32 to vector<8x128xf32>
    %123 = arith.mulf %122, %121 : vector<8x128xf32>
    %124 = vector.extract_strided_slice %115 {offsets = [0, 128], sizes = [8, 128], strides = [1, 1]} : vector<8x512xf32> to vector<8x128xf32>
    %cst_45 = arith.constant 5.000000e-01 : f32
    %125 = vector.broadcast %cst_45 : f32 to vector<8x128xf32>
    %126 = arith.mulf %125, %124 : vector<8x128xf32>
    %127 = math.tanh %126 : vector<8x128xf32>
    %cst_46 = arith.constant 1.000000e+00 : f32
    %128 = vector.broadcast %cst_46 : f32 to vector<8x128xf32>
    %129 = arith.addf %128, %127 : vector<8x128xf32>
    %cst_47 = arith.constant 5.000000e-01 : f32
    %130 = vector.broadcast %cst_47 : f32 to vector<8x128xf32>
    %131 = arith.mulf %130, %129 : vector<8x128xf32>
    %132 = vector.extract_strided_slice %115 {offsets = [0, 256], sizes = [8, 128], strides = [1, 1]} : vector<8x512xf32> to vector<8x128xf32>
    %133 = math.tanh %132 : vector<8x128xf32>
    %134 = vector.extract_strided_slice %115 {offsets = [0, 384], sizes = [8, 128], strides = [1, 1]} : vector<8x512xf32> to vector<8x128xf32>
    %cst_48 = arith.constant 5.000000e-01 : f32
    %135 = vector.broadcast %cst_48 : f32 to vector<8x128xf32>
    %136 = arith.mulf %135, %134 : vector<8x128xf32>
    %137 = math.tanh %136 : vector<8x128xf32>
    %cst_49 = arith.constant 1.000000e+00 : f32
    %138 = vector.broadcast %cst_49 : f32 to vector<8x128xf32>
    %139 = arith.addf %138, %137 : vector<8x128xf32>
    %cst_50 = arith.constant 5.000000e-01 : f32
    %140 = vector.broadcast %cst_50 : f32 to vector<8x128xf32>
    %141 = arith.mulf %140, %139 : vector<8x128xf32>
    %142 = arith.mulf %131, %110 : vector<8x128xf32>
    %143 = arith.mulf %123, %133 : vector<8x128xf32>
    %144 = arith.addf %142, %143 : vector<8x128xf32>
    %145 = math.tanh %144 : vector<8x128xf32>
    %146 = arith.mulf %141, %145 : vector<8x128xf32>
    %147 = vector.extract_strided_slice %6 {offsets = [32, 0], sizes = [8, 512], strides = [1, 1]} : vector<64x512xf32> to vector<8x512xf32>
    %cst_51 = arith.constant dense<0.000000e+00> : vector<8x512xf32>
    %148 = tpu.matmul %146, %8, %cst_51 {dimension_numbers = #tpu.dot_dimension_numbers<[1], [0], [0], [1], [0, 0, 1, 1], [], []>} : vector<8x128xf32>, vector<128x512xf32>, vector<8x512xf32> -> vector<8x512xf32>
    %149 = arith.addf %147, %148 : vector<8x512xf32>
    %150 = vector.extract_strided_slice %149 {offsets = [0, 0], sizes = [8, 128], strides = [1, 1]} : vector<8x512xf32> to vector<8x128xf32>
    %cst_52 = arith.constant 5.000000e-01 : f32
    %151 = vector.broadcast %cst_52 : f32 to vector<8x128xf32>
    %152 = arith.mulf %151, %150 : vector<8x128xf32>
    %153 = math.tanh %152 : vector<8x128xf32>
    %cst_53 = arith.constant 1.000000e+00 : f32
    %154 = vector.broadcast %cst_53 : f32 to vector<8x128xf32>
    %155 = arith.addf %154, %153 : vector<8x128xf32>
    %cst_54 = arith.constant 5.000000e-01 : f32
    %156 = vector.broadcast %cst_54 : f32 to vector<8x128xf32>
    %157 = arith.mulf %156, %155 : vector<8x128xf32>
    %158 = vector.extract_strided_slice %149 {offsets = [0, 128], sizes = [8, 128], strides = [1, 1]} : vector<8x512xf32> to vector<8x128xf32>
    %cst_55 = arith.constant 5.000000e-01 : f32
    %159 = vector.broadcast %cst_55 : f32 to vector<8x128xf32>
    %160 = arith.mulf %159, %158 : vector<8x128xf32>
    %161 = math.tanh %160 : vector<8x128xf32>
    %cst_56 = arith.constant 1.000000e+00 : f32
    %162 = vector.broadcast %cst_56 : f32 to vector<8x128xf32>
    %163 = arith.addf %162, %161 : vector<8x128xf32>
    %cst_57 = arith.constant 5.000000e-01 : f32
    %164 = vector.broadcast %cst_57 : f32 to vector<8x128xf32>
    %165 = arith.mulf %164, %163 : vector<8x128xf32>
    %166 = vector.extract_strided_slice %149 {offsets = [0, 256], sizes = [8, 128], strides = [1, 1]} : vector<8x512xf32> to vector<8x128xf32>
    %167 = math.tanh %166 : vector<8x128xf32>
    %168 = vector.extract_strided_slice %149 {offsets = [0, 384], sizes = [8, 128], strides = [1, 1]} : vector<8x512xf32> to vector<8x128xf32>
    %cst_58 = arith.constant 5.000000e-01 : f32
    %169 = vector.broadcast %cst_58 : f32 to vector<8x128xf32>
    %170 = arith.mulf %169, %168 : vector<8x128xf32>
    %171 = math.tanh %170 : vector<8x128xf32>
    %cst_59 = arith.constant 1.000000e+00 : f32
    %172 = vector.broadcast %cst_59 : f32 to vector<8x128xf32>
    %173 = arith.addf %172, %171 : vector<8x128xf32>
    %cst_60 = arith.constant 5.000000e-01 : f32
    %174 = vector.broadcast %cst_60 : f32 to vector<8x128xf32>
    %175 = arith.mulf %174, %173 : vector<8x128xf32>
    %176 = arith.mulf %165, %144 : vector<8x128xf32>
    %177 = arith.mulf %157, %167 : vector<8x128xf32>
    %178 = arith.addf %176, %177 : vector<8x128xf32>
    %179 = math.tanh %178 : vector<8x128xf32>
    %180 = arith.mulf %175, %179 : vector<8x128xf32>
    %181 = vector.extract_strided_slice %6 {offsets = [40, 0], sizes = [8, 512], strides = [1, 1]} : vector<64x512xf32> to vector<8x512xf32>
    %cst_61 = arith.constant dense<0.000000e+00> : vector<8x512xf32>
    %182 = tpu.matmul %180, %8, %cst_61 {dimension_numbers = #tpu.dot_dimension_numbers<[1], [0], [0], [1], [0, 0, 1, 1], [], []>} : vector<8x128xf32>, vector<128x512xf32>, vector<8x512xf32> -> vector<8x512xf32>
    %183 = arith.addf %181, %182 : vector<8x512xf32>
    %184 = vector.extract_strided_slice %183 {offsets = [0, 0], sizes = [8, 128], strides = [1, 1]} : vector<8x512xf32> to vector<8x128xf32>
    %cst_62 = arith.constant 5.000000e-01 : f32
    %185 = vector.broadcast %cst_62 : f32 to vector<8x128xf32>
    %186 = arith.mulf %185, %184 : vector<8x128xf32>
    %187 = math.tanh %186 : vector<8x128xf32>
    %cst_63 = arith.constant 1.000000e+00 : f32
    %188 = vector.broadcast %cst_63 : f32 to vector<8x128xf32>
    %189 = arith.addf %188, %187 : vector<8x128xf32>
    %cst_64 = arith.constant 5.000000e-01 : f32
    %190 = vector.broadcast %cst_64 : f32 to vector<8x128xf32>
    %191 = arith.mulf %190, %189 : vector<8x128xf32>
    %192 = vector.extract_strided_slice %183 {offsets = [0, 128], sizes = [8, 128], strides = [1, 1]} : vector<8x512xf32> to vector<8x128xf32>
    %cst_65 = arith.constant 5.000000e-01 : f32
    %193 = vector.broadcast %cst_65 : f32 to vector<8x128xf32>
    %194 = arith.mulf %193, %192 : vector<8x128xf32>
    %195 = math.tanh %194 : vector<8x128xf32>
    %cst_66 = arith.constant 1.000000e+00 : f32
    %196 = vector.broadcast %cst_66 : f32 to vector<8x128xf32>
    %197 = arith.addf %196, %195 : vector<8x128xf32>
    %cst_67 = arith.constant 5.000000e-01 : f32
    %198 = vector.broadcast %cst_67 : f32 to vector<8x128xf32>
    %199 = arith.mulf %198, %197 : vector<8x128xf32>
    %200 = vector.extract_strided_slice %183 {offsets = [0, 256], sizes = [8, 128], strides = [1, 1]} : vector<8x512xf32> to vector<8x128xf32>
    %201 = math.tanh %200 : vector<8x128xf32>
    %202 = vector.extract_strided_slice %183 {offsets = [0, 384], sizes = [8, 128], strides = [1, 1]} : vector<8x512xf32> to vector<8x128xf32>
    %cst_68 = arith.constant 5.000000e-01 : f32
    %203 = vector.broadcast %cst_68 : f32 to vector<8x128xf32>
    %204 = arith.mulf %203, %202 : vector<8x128xf32>
    %205 = math.tanh %204 : vector<8x128xf32>
    %cst_69 = arith.constant 1.000000e+00 : f32
    %206 = vector.broadcast %cst_69 : f32 to vector<8x128xf32>
    %207 = arith.addf %206, %205 : vector<8x128xf32>
    %cst_70 = arith.constant 5.000000e-01 : f32
    %208 = vector.broadcast %cst_70 : f32 to vector<8x128xf32>
    %209 = arith.mulf %208, %207 : vector<8x128xf32>
    %210 = arith.mulf %199, %178 : vector<8x128xf32>
    %211 = arith.mulf %191, %201 : vector<8x128xf32>
    %212 = arith.addf %210, %211 : vector<8x128xf32>
    %213 = math.tanh %212 : vector<8x128xf32>
    %214 = arith.mulf %209, %213 : vector<8x128xf32>
    %215 = vector.extract_strided_slice %6 {offsets = [48, 0], sizes = [8, 512], strides = [1, 1]} : vector<64x512xf32> to vector<8x512xf32>
    %cst_71 = arith.constant dense<0.000000e+00> : vector<8x512xf32>
    %216 = tpu.matmul %214, %8, %cst_71 {dimension_numbers = #tpu.dot_dimension_numbers<[1], [0], [0], [1], [0, 0, 1, 1], [], []>} : vector<8x128xf32>, vector<128x512xf32>, vector<8x512xf32> -> vector<8x512xf32>
    %217 = arith.addf %215, %216 : vector<8x512xf32>
    %218 = vector.extract_strided_slice %217 {offsets = [0, 0], sizes = [8, 128], strides = [1, 1]} : vector<8x512xf32> to vector<8x128xf32>
    %cst_72 = arith.constant 5.000000e-01 : f32
    %219 = vector.broadcast %cst_72 : f32 to vector<8x128xf32>
    %220 = arith.mulf %219, %218 : vector<8x128xf32>
    %221 = math.tanh %220 : vector<8x128xf32>
    %cst_73 = arith.constant 1.000000e+00 : f32
    %222 = vector.broadcast %cst_73 : f32 to vector<8x128xf32>
    %223 = arith.addf %222, %221 : vector<8x128xf32>
    %cst_74 = arith.constant 5.000000e-01 : f32
    %224 = vector.broadcast %cst_74 : f32 to vector<8x128xf32>
    %225 = arith.mulf %224, %223 : vector<8x128xf32>
    %226 = vector.extract_strided_slice %217 {offsets = [0, 128], sizes = [8, 128], strides = [1, 1]} : vector<8x512xf32> to vector<8x128xf32>
    %cst_75 = arith.constant 5.000000e-01 : f32
    %227 = vector.broadcast %cst_75 : f32 to vector<8x128xf32>
    %228 = arith.mulf %227, %226 : vector<8x128xf32>
    %229 = math.tanh %228 : vector<8x128xf32>
    %cst_76 = arith.constant 1.000000e+00 : f32
    %230 = vector.broadcast %cst_76 : f32 to vector<8x128xf32>
    %231 = arith.addf %230, %229 : vector<8x128xf32>
    %cst_77 = arith.constant 5.000000e-01 : f32
    %232 = vector.broadcast %cst_77 : f32 to vector<8x128xf32>
    %233 = arith.mulf %232, %231 : vector<8x128xf32>
    %234 = vector.extract_strided_slice %217 {offsets = [0, 256], sizes = [8, 128], strides = [1, 1]} : vector<8x512xf32> to vector<8x128xf32>
    %235 = math.tanh %234 : vector<8x128xf32>
    %236 = vector.extract_strided_slice %217 {offsets = [0, 384], sizes = [8, 128], strides = [1, 1]} : vector<8x512xf32> to vector<8x128xf32>
    %cst_78 = arith.constant 5.000000e-01 : f32
    %237 = vector.broadcast %cst_78 : f32 to vector<8x128xf32>
    %238 = arith.mulf %237, %236 : vector<8x128xf32>
    %239 = math.tanh %238 : vector<8x128xf32>
    %cst_79 = arith.constant 1.000000e+00 : f32
    %240 = vector.broadcast %cst_79 : f32 to vector<8x128xf32>
    %241 = arith.addf %240, %239 : vector<8x128xf32>
    %cst_80 = arith.constant 5.000000e-01 : f32
    %242 = vector.broadcast %cst_80 : f32 to vector<8x128xf32>
    %243 = arith.mulf %242, %241 : vector<8x128xf32>
    %244 = arith.mulf %233, %212 : vector<8x128xf32>
    %245 = arith.mulf %225, %235 : vector<8x128xf32>
    %246 = arith.addf %244, %245 : vector<8x128xf32>
    %247 = math.tanh %246 : vector<8x128xf32>
    %248 = arith.mulf %243, %247 : vector<8x128xf32>
    %249 = vector.extract_strided_slice %6 {offsets = [56, 0], sizes = [8, 512], strides = [1, 1]} : vector<64x512xf32> to vector<8x512xf32>
    %cst_81 = arith.constant dense<0.000000e+00> : vector<8x512xf32>
    %250 = tpu.matmul %248, %8, %cst_81 {dimension_numbers = #tpu.dot_dimension_numbers<[1], [0], [0], [1], [0, 0, 1, 1], [], []>} : vector<8x128xf32>, vector<128x512xf32>, vector<8x512xf32> -> vector<8x512xf32>
    %251 = arith.addf %249, %250 : vector<8x512xf32>
    %252 = vector.extract_strided_slice %251 {offsets = [0, 0], sizes = [8, 128], strides = [1, 1]} : vector<8x512xf32> to vector<8x128xf32>
    %cst_82 = arith.constant 5.000000e-01 : f32
    %253 = vector.broadcast %cst_82 : f32 to vector<8x128xf32>
    %254 = arith.mulf %253, %252 : vector<8x128xf32>
    %255 = math.tanh %254 : vector<8x128xf32>
    %cst_83 = arith.constant 1.000000e+00 : f32
    %256 = vector.broadcast %cst_83 : f32 to vector<8x128xf32>
    %257 = arith.addf %256, %255 : vector<8x128xf32>
    %cst_84 = arith.constant 5.000000e-01 : f32
    %258 = vector.broadcast %cst_84 : f32 to vector<8x128xf32>
    %259 = arith.mulf %258, %257 : vector<8x128xf32>
    %260 = vector.extract_strided_slice %251 {offsets = [0, 128], sizes = [8, 128], strides = [1, 1]} : vector<8x512xf32> to vector<8x128xf32>
    %cst_85 = arith.constant 5.000000e-01 : f32
    %261 = vector.broadcast %cst_85 : f32 to vector<8x128xf32>
    %262 = arith.mulf %261, %260 : vector<8x128xf32>
    %263 = math.tanh %262 : vector<8x128xf32>
    %cst_86 = arith.constant 1.000000e+00 : f32
    %264 = vector.broadcast %cst_86 : f32 to vector<8x128xf32>
    %265 = arith.addf %264, %263 : vector<8x128xf32>
    %cst_87 = arith.constant 5.000000e-01 : f32
    %266 = vector.broadcast %cst_87 : f32 to vector<8x128xf32>
    %267 = arith.mulf %266, %265 : vector<8x128xf32>
    %268 = vector.extract_strided_slice %251 {offsets = [0, 256], sizes = [8, 128], strides = [1, 1]} : vector<8x512xf32> to vector<8x128xf32>
    %269 = math.tanh %268 : vector<8x128xf32>
    %270 = vector.extract_strided_slice %251 {offsets = [0, 384], sizes = [8, 128], strides = [1, 1]} : vector<8x512xf32> to vector<8x128xf32>
    %cst_88 = arith.constant 5.000000e-01 : f32
    %271 = vector.broadcast %cst_88 : f32 to vector<8x128xf32>
    %272 = arith.mulf %271, %270 : vector<8x128xf32>
    %273 = math.tanh %272 : vector<8x128xf32>
    %cst_89 = arith.constant 1.000000e+00 : f32
    %274 = vector.broadcast %cst_89 : f32 to vector<8x128xf32>
    %275 = arith.addf %274, %273 : vector<8x128xf32>
    %cst_90 = arith.constant 5.000000e-01 : f32
    %276 = vector.broadcast %cst_90 : f32 to vector<8x128xf32>
    %277 = arith.mulf %276, %275 : vector<8x128xf32>
    %278 = arith.mulf %267, %246 : vector<8x128xf32>
    %279 = arith.mulf %259, %269 : vector<8x128xf32>
    %280 = arith.addf %278, %279 : vector<8x128xf32>
    %281 = math.tanh %280 : vector<8x128xf32>
    %282 = arith.mulf %277, %281 : vector<8x128xf32>
    %283 = tpu.concatenate %44, %78, %112, %146, %180, %214, %248, %282 in 0 : vector<8x128xf32>, vector<8x128xf32>, vector<8x128xf32>, vector<8x128xf32>, vector<8x128xf32>, vector<8x128xf32>, vector<8x128xf32>, vector<8x128xf32> -> vector<64x128xf32>
    %c0_91 = arith.constant 0 : index
    %c0_92 = arith.constant 0 : index
    %c0_93 = arith.constant 0 : index
    %284 = vector.load %arg3[%c0_91, %c0_92, %c0_93] : memref<2x128x512xf32, #tpu.memory_space<vmem>>, vector<1x128x512xf32>
    %285 = vector.shape_cast %284 : vector<1x128x512xf32> to vector<128x512xf32>
    %cst_94 = arith.constant dense<0.000000e+00> : vector<64x512xf32>
    %286 = tpu.matmul %283, %285, %cst_94 {dimension_numbers = #tpu.dot_dimension_numbers<[1], [0], [0], [1], [0, 0, 1, 1], [], []>} : vector<64x128xf32>, vector<128x512xf32>, vector<64x512xf32> -> vector<64x512xf32>
    %c1 = arith.constant 1 : index
    %c0_95 = arith.constant 0 : index
    %c0_96 = arith.constant 0 : index
    %287 = vector.load %arg5[%c1, %c0_95, %c0_96] : memref<3x1x512xf32, #tpu.memory_space<vmem>>, vector<1x1x512xf32>
    %288 = vector.shape_cast %287 : vector<1x1x512xf32> to vector<1x512xf32>
    %289 = vector.broadcast %288 : vector<1x512xf32> to vector<64x512xf32>
    %290 = arith.addf %286, %289 : vector<64x512xf32>
    %c1_97 = arith.constant 1 : index
    %c0_98 = arith.constant 0 : index
    %c0_99 = arith.constant 0 : index
    %291 = vector.load %arg4[%c1_97, %c0_98, %c0_99] : memref<3x128x512xf32, #tpu.memory_space<vmem>>, vector<1x128x512xf32>
    %292 = vector.shape_cast %291 : vector<1x128x512xf32> to vector<128x512xf32>
    %cst_100 = arith.constant 0.000000e+00 : f32
    %293 = vector.broadcast %cst_100 : f32 to vector<8x128xf32>
    %cst_101 = arith.constant 0.000000e+00 : f32
    %294 = vector.broadcast %cst_101 : f32 to vector<8x128xf32>
    %295 = vector.extract_strided_slice %290 {offsets = [0, 0], sizes = [8, 512], strides = [1, 1]} : vector<64x512xf32> to vector<8x512xf32>
    %cst_102 = arith.constant dense<0.000000e+00> : vector<8x512xf32>
    %296 = tpu.matmul %293, %292, %cst_102 {dimension_numbers = #tpu.dot_dimension_numbers<[1], [0], [0], [1], [0, 0, 1, 1], [], []>} : vector<8x128xf32>, vector<128x512xf32>, vector<8x512xf32> -> vector<8x512xf32>
    %297 = arith.addf %295, %296 : vector<8x512xf32>
    %298 = vector.extract_strided_slice %297 {offsets = [0, 0], sizes = [8, 128], strides = [1, 1]} : vector<8x512xf32> to vector<8x128xf32>
    %cst_103 = arith.constant 5.000000e-01 : f32
    %299 = vector.broadcast %cst_103 : f32 to vector<8x128xf32>
    %300 = arith.mulf %299, %298 : vector<8x128xf32>
    %301 = math.tanh %300 : vector<8x128xf32>
    %cst_104 = arith.constant 1.000000e+00 : f32
    %302 = vector.broadcast %cst_104 : f32 to vector<8x128xf32>
    %303 = arith.addf %302, %301 : vector<8x128xf32>
    %cst_105 = arith.constant 5.000000e-01 : f32
    %304 = vector.broadcast %cst_105 : f32 to vector<8x128xf32>
    %305 = arith.mulf %304, %303 : vector<8x128xf32>
    %306 = vector.extract_strided_slice %297 {offsets = [0, 128], sizes = [8, 128], strides = [1, 1]} : vector<8x512xf32> to vector<8x128xf32>
    %cst_106 = arith.constant 5.000000e-01 : f32
    %307 = vector.broadcast %cst_106 : f32 to vector<8x128xf32>
    %308 = arith.mulf %307, %306 : vector<8x128xf32>
    %309 = math.tanh %308 : vector<8x128xf32>
    %cst_107 = arith.constant 1.000000e+00 : f32
    %310 = vector.broadcast %cst_107 : f32 to vector<8x128xf32>
    %311 = arith.addf %310, %309 : vector<8x128xf32>
    %cst_108 = arith.constant 5.000000e-01 : f32
    %312 = vector.broadcast %cst_108 : f32 to vector<8x128xf32>
    %313 = arith.mulf %312, %311 : vector<8x128xf32>
    %314 = vector.extract_strided_slice %297 {offsets = [0, 256], sizes = [8, 128], strides = [1, 1]} : vector<8x512xf32> to vector<8x128xf32>
    %315 = math.tanh %314 : vector<8x128xf32>
    %316 = vector.extract_strided_slice %297 {offsets = [0, 384], sizes = [8, 128], strides = [1, 1]} : vector<8x512xf32> to vector<8x128xf32>
    %cst_109 = arith.constant 5.000000e-01 : f32
    %317 = vector.broadcast %cst_109 : f32 to vector<8x128xf32>
    %318 = arith.mulf %317, %316 : vector<8x128xf32>
    %319 = math.tanh %318 : vector<8x128xf32>
    %cst_110 = arith.constant 1.000000e+00 : f32
    %320 = vector.broadcast %cst_110 : f32 to vector<8x128xf32>
    %321 = arith.addf %320, %319 : vector<8x128xf32>
    %cst_111 = arith.constant 5.000000e-01 : f32
    %322 = vector.broadcast %cst_111 : f32 to vector<8x128xf32>
    %323 = arith.mulf %322, %321 : vector<8x128xf32>
    %324 = arith.mulf %313, %294 : vector<8x128xf32>
    %325 = arith.mulf %305, %315 : vector<8x128xf32>
    %326 = arith.addf %324, %325 : vector<8x128xf32>
    %327 = math.tanh %326 : vector<8x128xf32>
    %328 = arith.mulf %323, %327 : vector<8x128xf32>
    %329 = vector.extract_strided_slice %290 {offsets = [8, 0], sizes = [8, 512], strides = [1, 1]} : vector<64x512xf32> to vector<8x512xf32>
    %cst_112 = arith.constant dense<0.000000e+00> : vector<8x512xf32>
    %330 = tpu.matmul %328, %292, %cst_112 {dimension_numbers = #tpu.dot_dimension_numbers<[1], [0], [0], [1], [0, 0, 1, 1], [], []>} : vector<8x128xf32>, vector<128x512xf32>, vector<8x512xf32> -> vector<8x512xf32>
    %331 = arith.addf %329, %330 : vector<8x512xf32>
    %332 = vector.extract_strided_slice %331 {offsets = [0, 0], sizes = [8, 128], strides = [1, 1]} : vector<8x512xf32> to vector<8x128xf32>
    %cst_113 = arith.constant 5.000000e-01 : f32
    %333 = vector.broadcast %cst_113 : f32 to vector<8x128xf32>
    %334 = arith.mulf %333, %332 : vector<8x128xf32>
    %335 = math.tanh %334 : vector<8x128xf32>
    %cst_114 = arith.constant 1.000000e+00 : f32
    %336 = vector.broadcast %cst_114 : f32 to vector<8x128xf32>
    %337 = arith.addf %336, %335 : vector<8x128xf32>
    %cst_115 = arith.constant 5.000000e-01 : f32
    %338 = vector.broadcast %cst_115 : f32 to vector<8x128xf32>
    %339 = arith.mulf %338, %337 : vector<8x128xf32>
    %340 = vector.extract_strided_slice %331 {offsets = [0, 128], sizes = [8, 128], strides = [1, 1]} : vector<8x512xf32> to vector<8x128xf32>
    %cst_116 = arith.constant 5.000000e-01 : f32
    %341 = vector.broadcast %cst_116 : f32 to vector<8x128xf32>
    %342 = arith.mulf %341, %340 : vector<8x128xf32>
    %343 = math.tanh %342 : vector<8x128xf32>
    %cst_117 = arith.constant 1.000000e+00 : f32
    %344 = vector.broadcast %cst_117 : f32 to vector<8x128xf32>
    %345 = arith.addf %344, %343 : vector<8x128xf32>
    %cst_118 = arith.constant 5.000000e-01 : f32
    %346 = vector.broadcast %cst_118 : f32 to vector<8x128xf32>
    %347 = arith.mulf %346, %345 : vector<8x128xf32>
    %348 = vector.extract_strided_slice %331 {offsets = [0, 256], sizes = [8, 128], strides = [1, 1]} : vector<8x512xf32> to vector<8x128xf32>
    %349 = math.tanh %348 : vector<8x128xf32>
    %350 = vector.extract_strided_slice %331 {offsets = [0, 384], sizes = [8, 128], strides = [1, 1]} : vector<8x512xf32> to vector<8x128xf32>
    %cst_119 = arith.constant 5.000000e-01 : f32
    %351 = vector.broadcast %cst_119 : f32 to vector<8x128xf32>
    %352 = arith.mulf %351, %350 : vector<8x128xf32>
    %353 = math.tanh %352 : vector<8x128xf32>
    %cst_120 = arith.constant 1.000000e+00 : f32
    %354 = vector.broadcast %cst_120 : f32 to vector<8x128xf32>
    %355 = arith.addf %354, %353 : vector<8x128xf32>
    %cst_121 = arith.constant 5.000000e-01 : f32
    %356 = vector.broadcast %cst_121 : f32 to vector<8x128xf32>
    %357 = arith.mulf %356, %355 : vector<8x128xf32>
    %358 = arith.mulf %347, %326 : vector<8x128xf32>
    %359 = arith.mulf %339, %349 : vector<8x128xf32>
    %360 = arith.addf %358, %359 : vector<8x128xf32>
    %361 = math.tanh %360 : vector<8x128xf32>
    %362 = arith.mulf %357, %361 : vector<8x128xf32>
    %363 = vector.extract_strided_slice %290 {offsets = [16, 0], sizes = [8, 512], strides = [1, 1]} : vector<64x512xf32> to vector<8x512xf32>
    %cst_122 = arith.constant dense<0.000000e+00> : vector<8x512xf32>
    %364 = tpu.matmul %362, %292, %cst_122 {dimension_numbers = #tpu.dot_dimension_numbers<[1], [0], [0], [1], [0, 0, 1, 1], [], []>} : vector<8x128xf32>, vector<128x512xf32>, vector<8x512xf32> -> vector<8x512xf32>
    %365 = arith.addf %363, %364 : vector<8x512xf32>
    %366 = vector.extract_strided_slice %365 {offsets = [0, 0], sizes = [8, 128], strides = [1, 1]} : vector<8x512xf32> to vector<8x128xf32>
    %cst_123 = arith.constant 5.000000e-01 : f32
    %367 = vector.broadcast %cst_123 : f32 to vector<8x128xf32>
    %368 = arith.mulf %367, %366 : vector<8x128xf32>
    %369 = math.tanh %368 : vector<8x128xf32>
    %cst_124 = arith.constant 1.000000e+00 : f32
    %370 = vector.broadcast %cst_124 : f32 to vector<8x128xf32>
    %371 = arith.addf %370, %369 : vector<8x128xf32>
    %cst_125 = arith.constant 5.000000e-01 : f32
    %372 = vector.broadcast %cst_125 : f32 to vector<8x128xf32>
    %373 = arith.mulf %372, %371 : vector<8x128xf32>
    %374 = vector.extract_strided_slice %365 {offsets = [0, 128], sizes = [8, 128], strides = [1, 1]} : vector<8x512xf32> to vector<8x128xf32>
    %cst_126 = arith.constant 5.000000e-01 : f32
    %375 = vector.broadcast %cst_126 : f32 to vector<8x128xf32>
    %376 = arith.mulf %375, %374 : vector<8x128xf32>
    %377 = math.tanh %376 : vector<8x128xf32>
    %cst_127 = arith.constant 1.000000e+00 : f32
    %378 = vector.broadcast %cst_127 : f32 to vector<8x128xf32>
    %379 = arith.addf %378, %377 : vector<8x128xf32>
    %cst_128 = arith.constant 5.000000e-01 : f32
    %380 = vector.broadcast %cst_128 : f32 to vector<8x128xf32>
    %381 = arith.mulf %380, %379 : vector<8x128xf32>
    %382 = vector.extract_strided_slice %365 {offsets = [0, 256], sizes = [8, 128], strides = [1, 1]} : vector<8x512xf32> to vector<8x128xf32>
    %383 = math.tanh %382 : vector<8x128xf32>
    %384 = vector.extract_strided_slice %365 {offsets = [0, 384], sizes = [8, 128], strides = [1, 1]} : vector<8x512xf32> to vector<8x128xf32>
    %cst_129 = arith.constant 5.000000e-01 : f32
    %385 = vector.broadcast %cst_129 : f32 to vector<8x128xf32>
    %386 = arith.mulf %385, %384 : vector<8x128xf32>
    %387 = math.tanh %386 : vector<8x128xf32>
    %cst_130 = arith.constant 1.000000e+00 : f32
    %388 = vector.broadcast %cst_130 : f32 to vector<8x128xf32>
    %389 = arith.addf %388, %387 : vector<8x128xf32>
    %cst_131 = arith.constant 5.000000e-01 : f32
    %390 = vector.broadcast %cst_131 : f32 to vector<8x128xf32>
    %391 = arith.mulf %390, %389 : vector<8x128xf32>
    %392 = arith.mulf %381, %360 : vector<8x128xf32>
    %393 = arith.mulf %373, %383 : vector<8x128xf32>
    %394 = arith.addf %392, %393 : vector<8x128xf32>
    %395 = math.tanh %394 : vector<8x128xf32>
    %396 = arith.mulf %391, %395 : vector<8x128xf32>
    %397 = vector.extract_strided_slice %290 {offsets = [24, 0], sizes = [8, 512], strides = [1, 1]} : vector<64x512xf32> to vector<8x512xf32>
    %cst_132 = arith.constant dense<0.000000e+00> : vector<8x512xf32>
    %398 = tpu.matmul %396, %292, %cst_132 {dimension_numbers = #tpu.dot_dimension_numbers<[1], [0], [0], [1], [0, 0, 1, 1], [], []>} : vector<8x128xf32>, vector<128x512xf32>, vector<8x512xf32> -> vector<8x512xf32>
    %399 = arith.addf %397, %398 : vector<8x512xf32>
    %400 = vector.extract_strided_slice %399 {offsets = [0, 0], sizes = [8, 128], strides = [1, 1]} : vector<8x512xf32> to vector<8x128xf32>
    %cst_133 = arith.constant 5.000000e-01 : f32
    %401 = vector.broadcast %cst_133 : f32 to vector<8x128xf32>
    %402 = arith.mulf %401, %400 : vector<8x128xf32>
    %403 = math.tanh %402 : vector<8x128xf32>
    %cst_134 = arith.constant 1.000000e+00 : f32
    %404 = vector.broadcast %cst_134 : f32 to vector<8x128xf32>
    %405 = arith.addf %404, %403 : vector<8x128xf32>
    %cst_135 = arith.constant 5.000000e-01 : f32
    %406 = vector.broadcast %cst_135 : f32 to vector<8x128xf32>
    %407 = arith.mulf %406, %405 : vector<8x128xf32>
    %408 = vector.extract_strided_slice %399 {offsets = [0, 128], sizes = [8, 128], strides = [1, 1]} : vector<8x512xf32> to vector<8x128xf32>
    %cst_136 = arith.constant 5.000000e-01 : f32
    %409 = vector.broadcast %cst_136 : f32 to vector<8x128xf32>
    %410 = arith.mulf %409, %408 : vector<8x128xf32>
    %411 = math.tanh %410 : vector<8x128xf32>
    %cst_137 = arith.constant 1.000000e+00 : f32
    %412 = vector.broadcast %cst_137 : f32 to vector<8x128xf32>
    %413 = arith.addf %412, %411 : vector<8x128xf32>
    %cst_138 = arith.constant 5.000000e-01 : f32
    %414 = vector.broadcast %cst_138 : f32 to vector<8x128xf32>
    %415 = arith.mulf %414, %413 : vector<8x128xf32>
    %416 = vector.extract_strided_slice %399 {offsets = [0, 256], sizes = [8, 128], strides = [1, 1]} : vector<8x512xf32> to vector<8x128xf32>
    %417 = math.tanh %416 : vector<8x128xf32>
    %418 = vector.extract_strided_slice %399 {offsets = [0, 384], sizes = [8, 128], strides = [1, 1]} : vector<8x512xf32> to vector<8x128xf32>
    %cst_139 = arith.constant 5.000000e-01 : f32
    %419 = vector.broadcast %cst_139 : f32 to vector<8x128xf32>
    %420 = arith.mulf %419, %418 : vector<8x128xf32>
    %421 = math.tanh %420 : vector<8x128xf32>
    %cst_140 = arith.constant 1.000000e+00 : f32
    %422 = vector.broadcast %cst_140 : f32 to vector<8x128xf32>
    %423 = arith.addf %422, %421 : vector<8x128xf32>
    %cst_141 = arith.constant 5.000000e-01 : f32
    %424 = vector.broadcast %cst_141 : f32 to vector<8x128xf32>
    %425 = arith.mulf %424, %423 : vector<8x128xf32>
    %426 = arith.mulf %415, %394 : vector<8x128xf32>
    %427 = arith.mulf %407, %417 : vector<8x128xf32>
    %428 = arith.addf %426, %427 : vector<8x128xf32>
    %429 = math.tanh %428 : vector<8x128xf32>
    %430 = arith.mulf %425, %429 : vector<8x128xf32>
    %431 = vector.extract_strided_slice %290 {offsets = [32, 0], sizes = [8, 512], strides = [1, 1]} : vector<64x512xf32> to vector<8x512xf32>
    %cst_142 = arith.constant dense<0.000000e+00> : vector<8x512xf32>
    %432 = tpu.matmul %430, %292, %cst_142 {dimension_numbers = #tpu.dot_dimension_numbers<[1], [0], [0], [1], [0, 0, 1, 1], [], []>} : vector<8x128xf32>, vector<128x512xf32>, vector<8x512xf32> -> vector<8x512xf32>
    %433 = arith.addf %431, %432 : vector<8x512xf32>
    %434 = vector.extract_strided_slice %433 {offsets = [0, 0], sizes = [8, 128], strides = [1, 1]} : vector<8x512xf32> to vector<8x128xf32>
    %cst_143 = arith.constant 5.000000e-01 : f32
    %435 = vector.broadcast %cst_143 : f32 to vector<8x128xf32>
    %436 = arith.mulf %435, %434 : vector<8x128xf32>
    %437 = math.tanh %436 : vector<8x128xf32>
    %cst_144 = arith.constant 1.000000e+00 : f32
    %438 = vector.broadcast %cst_144 : f32 to vector<8x128xf32>
    %439 = arith.addf %438, %437 : vector<8x128xf32>
    %cst_145 = arith.constant 5.000000e-01 : f32
    %440 = vector.broadcast %cst_145 : f32 to vector<8x128xf32>
    %441 = arith.mulf %440, %439 : vector<8x128xf32>
    %442 = vector.extract_strided_slice %433 {offsets = [0, 128], sizes = [8, 128], strides = [1, 1]} : vector<8x512xf32> to vector<8x128xf32>
    %cst_146 = arith.constant 5.000000e-01 : f32
    %443 = vector.broadcast %cst_146 : f32 to vector<8x128xf32>
    %444 = arith.mulf %443, %442 : vector<8x128xf32>
    %445 = math.tanh %444 : vector<8x128xf32>
    %cst_147 = arith.constant 1.000000e+00 : f32
    %446 = vector.broadcast %cst_147 : f32 to vector<8x128xf32>
    %447 = arith.addf %446, %445 : vector<8x128xf32>
    %cst_148 = arith.constant 5.000000e-01 : f32
    %448 = vector.broadcast %cst_148 : f32 to vector<8x128xf32>
    %449 = arith.mulf %448, %447 : vector<8x128xf32>
    %450 = vector.extract_strided_slice %433 {offsets = [0, 256], sizes = [8, 128], strides = [1, 1]} : vector<8x512xf32> to vector<8x128xf32>
    %451 = math.tanh %450 : vector<8x128xf32>
    %452 = vector.extract_strided_slice %433 {offsets = [0, 384], sizes = [8, 128], strides = [1, 1]} : vector<8x512xf32> to vector<8x128xf32>
    %cst_149 = arith.constant 5.000000e-01 : f32
    %453 = vector.broadcast %cst_149 : f32 to vector<8x128xf32>
    %454 = arith.mulf %453, %452 : vector<8x128xf32>
    %455 = math.tanh %454 : vector<8x128xf32>
    %cst_150 = arith.constant 1.000000e+00 : f32
    %456 = vector.broadcast %cst_150 : f32 to vector<8x128xf32>
    %457 = arith.addf %456, %455 : vector<8x128xf32>
    %cst_151 = arith.constant 5.000000e-01 : f32
    %458 = vector.broadcast %cst_151 : f32 to vector<8x128xf32>
    %459 = arith.mulf %458, %457 : vector<8x128xf32>
    %460 = arith.mulf %449, %428 : vector<8x128xf32>
    %461 = arith.mulf %441, %451 : vector<8x128xf32>
    %462 = arith.addf %460, %461 : vector<8x128xf32>
    %463 = math.tanh %462 : vector<8x128xf32>
    %464 = arith.mulf %459, %463 : vector<8x128xf32>
    %465 = vector.extract_strided_slice %290 {offsets = [40, 0], sizes = [8, 512], strides = [1, 1]} : vector<64x512xf32> to vector<8x512xf32>
    %cst_152 = arith.constant dense<0.000000e+00> : vector<8x512xf32>
    %466 = tpu.matmul %464, %292, %cst_152 {dimension_numbers = #tpu.dot_dimension_numbers<[1], [0], [0], [1], [0, 0, 1, 1], [], []>} : vector<8x128xf32>, vector<128x512xf32>, vector<8x512xf32> -> vector<8x512xf32>
    %467 = arith.addf %465, %466 : vector<8x512xf32>
    %468 = vector.extract_strided_slice %467 {offsets = [0, 0], sizes = [8, 128], strides = [1, 1]} : vector<8x512xf32> to vector<8x128xf32>
    %cst_153 = arith.constant 5.000000e-01 : f32
    %469 = vector.broadcast %cst_153 : f32 to vector<8x128xf32>
    %470 = arith.mulf %469, %468 : vector<8x128xf32>
    %471 = math.tanh %470 : vector<8x128xf32>
    %cst_154 = arith.constant 1.000000e+00 : f32
    %472 = vector.broadcast %cst_154 : f32 to vector<8x128xf32>
    %473 = arith.addf %472, %471 : vector<8x128xf32>
    %cst_155 = arith.constant 5.000000e-01 : f32
    %474 = vector.broadcast %cst_155 : f32 to vector<8x128xf32>
    %475 = arith.mulf %474, %473 : vector<8x128xf32>
    %476 = vector.extract_strided_slice %467 {offsets = [0, 128], sizes = [8, 128], strides = [1, 1]} : vector<8x512xf32> to vector<8x128xf32>
    %cst_156 = arith.constant 5.000000e-01 : f32
    %477 = vector.broadcast %cst_156 : f32 to vector<8x128xf32>
    %478 = arith.mulf %477, %476 : vector<8x128xf32>
    %479 = math.tanh %478 : vector<8x128xf32>
    %cst_157 = arith.constant 1.000000e+00 : f32
    %480 = vector.broadcast %cst_157 : f32 to vector<8x128xf32>
    %481 = arith.addf %480, %479 : vector<8x128xf32>
    %cst_158 = arith.constant 5.000000e-01 : f32
    %482 = vector.broadcast %cst_158 : f32 to vector<8x128xf32>
    %483 = arith.mulf %482, %481 : vector<8x128xf32>
    %484 = vector.extract_strided_slice %467 {offsets = [0, 256], sizes = [8, 128], strides = [1, 1]} : vector<8x512xf32> to vector<8x128xf32>
    %485 = math.tanh %484 : vector<8x128xf32>
    %486 = vector.extract_strided_slice %467 {offsets = [0, 384], sizes = [8, 128], strides = [1, 1]} : vector<8x512xf32> to vector<8x128xf32>
    %cst_159 = arith.constant 5.000000e-01 : f32
    %487 = vector.broadcast %cst_159 : f32 to vector<8x128xf32>
    %488 = arith.mulf %487, %486 : vector<8x128xf32>
    %489 = math.tanh %488 : vector<8x128xf32>
    %cst_160 = arith.constant 1.000000e+00 : f32
    %490 = vector.broadcast %cst_160 : f32 to vector<8x128xf32>
    %491 = arith.addf %490, %489 : vector<8x128xf32>
    %cst_161 = arith.constant 5.000000e-01 : f32
    %492 = vector.broadcast %cst_161 : f32 to vector<8x128xf32>
    %493 = arith.mulf %492, %491 : vector<8x128xf32>
    %494 = arith.mulf %483, %462 : vector<8x128xf32>
    %495 = arith.mulf %475, %485 : vector<8x128xf32>
    %496 = arith.addf %494, %495 : vector<8x128xf32>
    %497 = math.tanh %496 : vector<8x128xf32>
    %498 = arith.mulf %493, %497 : vector<8x128xf32>
    %499 = vector.extract_strided_slice %290 {offsets = [48, 0], sizes = [8, 512], strides = [1, 1]} : vector<64x512xf32> to vector<8x512xf32>
    %cst_162 = arith.constant dense<0.000000e+00> : vector<8x512xf32>
    %500 = tpu.matmul %498, %292, %cst_162 {dimension_numbers = #tpu.dot_dimension_numbers<[1], [0], [0], [1], [0, 0, 1, 1], [], []>} : vector<8x128xf32>, vector<128x512xf32>, vector<8x512xf32> -> vector<8x512xf32>
    %501 = arith.addf %499, %500 : vector<8x512xf32>
    %502 = vector.extract_strided_slice %501 {offsets = [0, 0], sizes = [8, 128], strides = [1, 1]} : vector<8x512xf32> to vector<8x128xf32>
    %cst_163 = arith.constant 5.000000e-01 : f32
    %503 = vector.broadcast %cst_163 : f32 to vector<8x128xf32>
    %504 = arith.mulf %503, %502 : vector<8x128xf32>
    %505 = math.tanh %504 : vector<8x128xf32>
    %cst_164 = arith.constant 1.000000e+00 : f32
    %506 = vector.broadcast %cst_164 : f32 to vector<8x128xf32>
    %507 = arith.addf %506, %505 : vector<8x128xf32>
    %cst_165 = arith.constant 5.000000e-01 : f32
    %508 = vector.broadcast %cst_165 : f32 to vector<8x128xf32>
    %509 = arith.mulf %508, %507 : vector<8x128xf32>
    %510 = vector.extract_strided_slice %501 {offsets = [0, 128], sizes = [8, 128], strides = [1, 1]} : vector<8x512xf32> to vector<8x128xf32>
    %cst_166 = arith.constant 5.000000e-01 : f32
    %511 = vector.broadcast %cst_166 : f32 to vector<8x128xf32>
    %512 = arith.mulf %511, %510 : vector<8x128xf32>
    %513 = math.tanh %512 : vector<8x128xf32>
    %cst_167 = arith.constant 1.000000e+00 : f32
    %514 = vector.broadcast %cst_167 : f32 to vector<8x128xf32>
    %515 = arith.addf %514, %513 : vector<8x128xf32>
    %cst_168 = arith.constant 5.000000e-01 : f32
    %516 = vector.broadcast %cst_168 : f32 to vector<8x128xf32>
    %517 = arith.mulf %516, %515 : vector<8x128xf32>
    %518 = vector.extract_strided_slice %501 {offsets = [0, 256], sizes = [8, 128], strides = [1, 1]} : vector<8x512xf32> to vector<8x128xf32>
    %519 = math.tanh %518 : vector<8x128xf32>
    %520 = vector.extract_strided_slice %501 {offsets = [0, 384], sizes = [8, 128], strides = [1, 1]} : vector<8x512xf32> to vector<8x128xf32>
    %cst_169 = arith.constant 5.000000e-01 : f32
    %521 = vector.broadcast %cst_169 : f32 to vector<8x128xf32>
    %522 = arith.mulf %521, %520 : vector<8x128xf32>
    %523 = math.tanh %522 : vector<8x128xf32>
    %cst_170 = arith.constant 1.000000e+00 : f32
    %524 = vector.broadcast %cst_170 : f32 to vector<8x128xf32>
    %525 = arith.addf %524, %523 : vector<8x128xf32>
    %cst_171 = arith.constant 5.000000e-01 : f32
    %526 = vector.broadcast %cst_171 : f32 to vector<8x128xf32>
    %527 = arith.mulf %526, %525 : vector<8x128xf32>
    %528 = arith.mulf %517, %496 : vector<8x128xf32>
    %529 = arith.mulf %509, %519 : vector<8x128xf32>
    %530 = arith.addf %528, %529 : vector<8x128xf32>
    %531 = math.tanh %530 : vector<8x128xf32>
    %532 = arith.mulf %527, %531 : vector<8x128xf32>
    %533 = vector.extract_strided_slice %290 {offsets = [56, 0], sizes = [8, 512], strides = [1, 1]} : vector<64x512xf32> to vector<8x512xf32>
    %cst_172 = arith.constant dense<0.000000e+00> : vector<8x512xf32>
    %534 = tpu.matmul %532, %292, %cst_172 {dimension_numbers = #tpu.dot_dimension_numbers<[1], [0], [0], [1], [0, 0, 1, 1], [], []>} : vector<8x128xf32>, vector<128x512xf32>, vector<8x512xf32> -> vector<8x512xf32>
    %535 = arith.addf %533, %534 : vector<8x512xf32>
    %536 = vector.extract_strided_slice %535 {offsets = [0, 0], sizes = [8, 128], strides = [1, 1]} : vector<8x512xf32> to vector<8x128xf32>
    %cst_173 = arith.constant 5.000000e-01 : f32
    %537 = vector.broadcast %cst_173 : f32 to vector<8x128xf32>
    %538 = arith.mulf %537, %536 : vector<8x128xf32>
    %539 = math.tanh %538 : vector<8x128xf32>
    %cst_174 = arith.constant 1.000000e+00 : f32
    %540 = vector.broadcast %cst_174 : f32 to vector<8x128xf32>
    %541 = arith.addf %540, %539 : vector<8x128xf32>
    %cst_175 = arith.constant 5.000000e-01 : f32
    %542 = vector.broadcast %cst_175 : f32 to vector<8x128xf32>
    %543 = arith.mulf %542, %541 : vector<8x128xf32>
    %544 = vector.extract_strided_slice %535 {offsets = [0, 128], sizes = [8, 128], strides = [1, 1]} : vector<8x512xf32> to vector<8x128xf32>
    %cst_176 = arith.constant 5.000000e-01 : f32
    %545 = vector.broadcast %cst_176 : f32 to vector<8x128xf32>
    %546 = arith.mulf %545, %544 : vector<8x128xf32>
    %547 = math.tanh %546 : vector<8x128xf32>
    %cst_177 = arith.constant 1.000000e+00 : f32
    %548 = vector.broadcast %cst_177 : f32 to vector<8x128xf32>
    %549 = arith.addf %548, %547 : vector<8x128xf32>
    %cst_178 = arith.constant 5.000000e-01 : f32
    %550 = vector.broadcast %cst_178 : f32 to vector<8x128xf32>
    %551 = arith.mulf %550, %549 : vector<8x128xf32>
    %552 = vector.extract_strided_slice %535 {offsets = [0, 256], sizes = [8, 128], strides = [1, 1]} : vector<8x512xf32> to vector<8x128xf32>
    %553 = math.tanh %552 : vector<8x128xf32>
    %554 = vector.extract_strided_slice %535 {offsets = [0, 384], sizes = [8, 128], strides = [1, 1]} : vector<8x512xf32> to vector<8x128xf32>
    %cst_179 = arith.constant 5.000000e-01 : f32
    %555 = vector.broadcast %cst_179 : f32 to vector<8x128xf32>
    %556 = arith.mulf %555, %554 : vector<8x128xf32>
    %557 = math.tanh %556 : vector<8x128xf32>
    %cst_180 = arith.constant 1.000000e+00 : f32
    %558 = vector.broadcast %cst_180 : f32 to vector<8x128xf32>
    %559 = arith.addf %558, %557 : vector<8x128xf32>
    %cst_181 = arith.constant 5.000000e-01 : f32
    %560 = vector.broadcast %cst_181 : f32 to vector<8x128xf32>
    %561 = arith.mulf %560, %559 : vector<8x128xf32>
    %562 = arith.mulf %551, %530 : vector<8x128xf32>
    %563 = arith.mulf %543, %553 : vector<8x128xf32>
    %564 = arith.addf %562, %563 : vector<8x128xf32>
    %565 = math.tanh %564 : vector<8x128xf32>
    %566 = arith.mulf %561, %565 : vector<8x128xf32>
    %567 = tpu.concatenate %328, %362, %396, %430, %464, %498, %532, %566 in 0 : vector<8x128xf32>, vector<8x128xf32>, vector<8x128xf32>, vector<8x128xf32>, vector<8x128xf32>, vector<8x128xf32>, vector<8x128xf32>, vector<8x128xf32> -> vector<64x128xf32>
    %c1_182 = arith.constant 1 : index
    %c0_183 = arith.constant 0 : index
    %c0_184 = arith.constant 0 : index
    %568 = vector.load %arg3[%c1_182, %c0_183, %c0_184] : memref<2x128x512xf32, #tpu.memory_space<vmem>>, vector<1x128x512xf32>
    %569 = vector.shape_cast %568 : vector<1x128x512xf32> to vector<128x512xf32>
    %cst_185 = arith.constant dense<0.000000e+00> : vector<64x512xf32>
    %570 = tpu.matmul %567, %569, %cst_185 {dimension_numbers = #tpu.dot_dimension_numbers<[1], [0], [0], [1], [0, 0, 1, 1], [], []>} : vector<64x128xf32>, vector<128x512xf32>, vector<64x512xf32> -> vector<64x512xf32>
    %c2 = arith.constant 2 : index
    %c0_186 = arith.constant 0 : index
    %c0_187 = arith.constant 0 : index
    %571 = vector.load %arg5[%c2, %c0_186, %c0_187] : memref<3x1x512xf32, #tpu.memory_space<vmem>>, vector<1x1x512xf32>
    %572 = vector.shape_cast %571 : vector<1x1x512xf32> to vector<1x512xf32>
    %573 = vector.broadcast %572 : vector<1x512xf32> to vector<64x512xf32>
    %574 = arith.addf %570, %573 : vector<64x512xf32>
    %c2_188 = arith.constant 2 : index
    %c0_189 = arith.constant 0 : index
    %c0_190 = arith.constant 0 : index
    %575 = vector.load %arg4[%c2_188, %c0_189, %c0_190] : memref<3x128x512xf32, #tpu.memory_space<vmem>>, vector<1x128x512xf32>
    %576 = vector.shape_cast %575 : vector<1x128x512xf32> to vector<128x512xf32>
    %cst_191 = arith.constant 0.000000e+00 : f32
    %577 = vector.broadcast %cst_191 : f32 to vector<8x128xf32>
    %cst_192 = arith.constant 0.000000e+00 : f32
    %578 = vector.broadcast %cst_192 : f32 to vector<8x128xf32>
    %579 = vector.extract_strided_slice %574 {offsets = [0, 0], sizes = [8, 512], strides = [1, 1]} : vector<64x512xf32> to vector<8x512xf32>
    %cst_193 = arith.constant dense<0.000000e+00> : vector<8x512xf32>
    %580 = tpu.matmul %577, %576, %cst_193 {dimension_numbers = #tpu.dot_dimension_numbers<[1], [0], [0], [1], [0, 0, 1, 1], [], []>} : vector<8x128xf32>, vector<128x512xf32>, vector<8x512xf32> -> vector<8x512xf32>
    %581 = arith.addf %579, %580 : vector<8x512xf32>
    %582 = vector.extract_strided_slice %581 {offsets = [0, 0], sizes = [8, 128], strides = [1, 1]} : vector<8x512xf32> to vector<8x128xf32>
    %cst_194 = arith.constant 5.000000e-01 : f32
    %583 = vector.broadcast %cst_194 : f32 to vector<8x128xf32>
    %584 = arith.mulf %583, %582 : vector<8x128xf32>
    %585 = math.tanh %584 : vector<8x128xf32>
    %cst_195 = arith.constant 1.000000e+00 : f32
    %586 = vector.broadcast %cst_195 : f32 to vector<8x128xf32>
    %587 = arith.addf %586, %585 : vector<8x128xf32>
    %cst_196 = arith.constant 5.000000e-01 : f32
    %588 = vector.broadcast %cst_196 : f32 to vector<8x128xf32>
    %589 = arith.mulf %588, %587 : vector<8x128xf32>
    %590 = vector.extract_strided_slice %581 {offsets = [0, 128], sizes = [8, 128], strides = [1, 1]} : vector<8x512xf32> to vector<8x128xf32>
    %cst_197 = arith.constant 5.000000e-01 : f32
    %591 = vector.broadcast %cst_197 : f32 to vector<8x128xf32>
    %592 = arith.mulf %591, %590 : vector<8x128xf32>
    %593 = math.tanh %592 : vector<8x128xf32>
    %cst_198 = arith.constant 1.000000e+00 : f32
    %594 = vector.broadcast %cst_198 : f32 to vector<8x128xf32>
    %595 = arith.addf %594, %593 : vector<8x128xf32>
    %cst_199 = arith.constant 5.000000e-01 : f32
    %596 = vector.broadcast %cst_199 : f32 to vector<8x128xf32>
    %597 = arith.mulf %596, %595 : vector<8x128xf32>
    %598 = vector.extract_strided_slice %581 {offsets = [0, 256], sizes = [8, 128], strides = [1, 1]} : vector<8x512xf32> to vector<8x128xf32>
    %599 = math.tanh %598 : vector<8x128xf32>
    %600 = vector.extract_strided_slice %581 {offsets = [0, 384], sizes = [8, 128], strides = [1, 1]} : vector<8x512xf32> to vector<8x128xf32>
    %cst_200 = arith.constant 5.000000e-01 : f32
    %601 = vector.broadcast %cst_200 : f32 to vector<8x128xf32>
    %602 = arith.mulf %601, %600 : vector<8x128xf32>
    %603 = math.tanh %602 : vector<8x128xf32>
    %cst_201 = arith.constant 1.000000e+00 : f32
    %604 = vector.broadcast %cst_201 : f32 to vector<8x128xf32>
    %605 = arith.addf %604, %603 : vector<8x128xf32>
    %cst_202 = arith.constant 5.000000e-01 : f32
    %606 = vector.broadcast %cst_202 : f32 to vector<8x128xf32>
    %607 = arith.mulf %606, %605 : vector<8x128xf32>
    %608 = arith.mulf %597, %578 : vector<8x128xf32>
    %609 = arith.mulf %589, %599 : vector<8x128xf32>
    %610 = arith.addf %608, %609 : vector<8x128xf32>
    %611 = math.tanh %610 : vector<8x128xf32>
    %612 = arith.mulf %607, %611 : vector<8x128xf32>
    %613 = vector.extract_strided_slice %574 {offsets = [8, 0], sizes = [8, 512], strides = [1, 1]} : vector<64x512xf32> to vector<8x512xf32>
    %cst_203 = arith.constant dense<0.000000e+00> : vector<8x512xf32>
    %614 = tpu.matmul %612, %576, %cst_203 {dimension_numbers = #tpu.dot_dimension_numbers<[1], [0], [0], [1], [0, 0, 1, 1], [], []>} : vector<8x128xf32>, vector<128x512xf32>, vector<8x512xf32> -> vector<8x512xf32>
    %615 = arith.addf %613, %614 : vector<8x512xf32>
    %616 = vector.extract_strided_slice %615 {offsets = [0, 0], sizes = [8, 128], strides = [1, 1]} : vector<8x512xf32> to vector<8x128xf32>
    %cst_204 = arith.constant 5.000000e-01 : f32
    %617 = vector.broadcast %cst_204 : f32 to vector<8x128xf32>
    %618 = arith.mulf %617, %616 : vector<8x128xf32>
    %619 = math.tanh %618 : vector<8x128xf32>
    %cst_205 = arith.constant 1.000000e+00 : f32
    %620 = vector.broadcast %cst_205 : f32 to vector<8x128xf32>
    %621 = arith.addf %620, %619 : vector<8x128xf32>
    %cst_206 = arith.constant 5.000000e-01 : f32
    %622 = vector.broadcast %cst_206 : f32 to vector<8x128xf32>
    %623 = arith.mulf %622, %621 : vector<8x128xf32>
    %624 = vector.extract_strided_slice %615 {offsets = [0, 128], sizes = [8, 128], strides = [1, 1]} : vector<8x512xf32> to vector<8x128xf32>
    %cst_207 = arith.constant 5.000000e-01 : f32
    %625 = vector.broadcast %cst_207 : f32 to vector<8x128xf32>
    %626 = arith.mulf %625, %624 : vector<8x128xf32>
    %627 = math.tanh %626 : vector<8x128xf32>
    %cst_208 = arith.constant 1.000000e+00 : f32
    %628 = vector.broadcast %cst_208 : f32 to vector<8x128xf32>
    %629 = arith.addf %628, %627 : vector<8x128xf32>
    %cst_209 = arith.constant 5.000000e-01 : f32
    %630 = vector.broadcast %cst_209 : f32 to vector<8x128xf32>
    %631 = arith.mulf %630, %629 : vector<8x128xf32>
    %632 = vector.extract_strided_slice %615 {offsets = [0, 256], sizes = [8, 128], strides = [1, 1]} : vector<8x512xf32> to vector<8x128xf32>
    %633 = math.tanh %632 : vector<8x128xf32>
    %634 = vector.extract_strided_slice %615 {offsets = [0, 384], sizes = [8, 128], strides = [1, 1]} : vector<8x512xf32> to vector<8x128xf32>
    %cst_210 = arith.constant 5.000000e-01 : f32
    %635 = vector.broadcast %cst_210 : f32 to vector<8x128xf32>
    %636 = arith.mulf %635, %634 : vector<8x128xf32>
    %637 = math.tanh %636 : vector<8x128xf32>
    %cst_211 = arith.constant 1.000000e+00 : f32
    %638 = vector.broadcast %cst_211 : f32 to vector<8x128xf32>
    %639 = arith.addf %638, %637 : vector<8x128xf32>
    %cst_212 = arith.constant 5.000000e-01 : f32
    %640 = vector.broadcast %cst_212 : f32 to vector<8x128xf32>
    %641 = arith.mulf %640, %639 : vector<8x128xf32>
    %642 = arith.mulf %631, %610 : vector<8x128xf32>
    %643 = arith.mulf %623, %633 : vector<8x128xf32>
    %644 = arith.addf %642, %643 : vector<8x128xf32>
    %645 = math.tanh %644 : vector<8x128xf32>
    %646 = arith.mulf %641, %645 : vector<8x128xf32>
    %647 = vector.extract_strided_slice %574 {offsets = [16, 0], sizes = [8, 512], strides = [1, 1]} : vector<64x512xf32> to vector<8x512xf32>
    %cst_213 = arith.constant dense<0.000000e+00> : vector<8x512xf32>
    %648 = tpu.matmul %646, %576, %cst_213 {dimension_numbers = #tpu.dot_dimension_numbers<[1], [0], [0], [1], [0, 0, 1, 1], [], []>} : vector<8x128xf32>, vector<128x512xf32>, vector<8x512xf32> -> vector<8x512xf32>
    %649 = arith.addf %647, %648 : vector<8x512xf32>
    %650 = vector.extract_strided_slice %649 {offsets = [0, 0], sizes = [8, 128], strides = [1, 1]} : vector<8x512xf32> to vector<8x128xf32>
    %cst_214 = arith.constant 5.000000e-01 : f32
    %651 = vector.broadcast %cst_214 : f32 to vector<8x128xf32>
    %652 = arith.mulf %651, %650 : vector<8x128xf32>
    %653 = math.tanh %652 : vector<8x128xf32>
    %cst_215 = arith.constant 1.000000e+00 : f32
    %654 = vector.broadcast %cst_215 : f32 to vector<8x128xf32>
    %655 = arith.addf %654, %653 : vector<8x128xf32>
    %cst_216 = arith.constant 5.000000e-01 : f32
    %656 = vector.broadcast %cst_216 : f32 to vector<8x128xf32>
    %657 = arith.mulf %656, %655 : vector<8x128xf32>
    %658 = vector.extract_strided_slice %649 {offsets = [0, 128], sizes = [8, 128], strides = [1, 1]} : vector<8x512xf32> to vector<8x128xf32>
    %cst_217 = arith.constant 5.000000e-01 : f32
    %659 = vector.broadcast %cst_217 : f32 to vector<8x128xf32>
    %660 = arith.mulf %659, %658 : vector<8x128xf32>
    %661 = math.tanh %660 : vector<8x128xf32>
    %cst_218 = arith.constant 1.000000e+00 : f32
    %662 = vector.broadcast %cst_218 : f32 to vector<8x128xf32>
    %663 = arith.addf %662, %661 : vector<8x128xf32>
    %cst_219 = arith.constant 5.000000e-01 : f32
    %664 = vector.broadcast %cst_219 : f32 to vector<8x128xf32>
    %665 = arith.mulf %664, %663 : vector<8x128xf32>
    %666 = vector.extract_strided_slice %649 {offsets = [0, 256], sizes = [8, 128], strides = [1, 1]} : vector<8x512xf32> to vector<8x128xf32>
    %667 = math.tanh %666 : vector<8x128xf32>
    %668 = vector.extract_strided_slice %649 {offsets = [0, 384], sizes = [8, 128], strides = [1, 1]} : vector<8x512xf32> to vector<8x128xf32>
    %cst_220 = arith.constant 5.000000e-01 : f32
    %669 = vector.broadcast %cst_220 : f32 to vector<8x128xf32>
    %670 = arith.mulf %669, %668 : vector<8x128xf32>
    %671 = math.tanh %670 : vector<8x128xf32>
    %cst_221 = arith.constant 1.000000e+00 : f32
    %672 = vector.broadcast %cst_221 : f32 to vector<8x128xf32>
    %673 = arith.addf %672, %671 : vector<8x128xf32>
    %cst_222 = arith.constant 5.000000e-01 : f32
    %674 = vector.broadcast %cst_222 : f32 to vector<8x128xf32>
    %675 = arith.mulf %674, %673 : vector<8x128xf32>
    %676 = arith.mulf %665, %644 : vector<8x128xf32>
    %677 = arith.mulf %657, %667 : vector<8x128xf32>
    %678 = arith.addf %676, %677 : vector<8x128xf32>
    %679 = math.tanh %678 : vector<8x128xf32>
    %680 = arith.mulf %675, %679 : vector<8x128xf32>
    %681 = vector.extract_strided_slice %574 {offsets = [24, 0], sizes = [8, 512], strides = [1, 1]} : vector<64x512xf32> to vector<8x512xf32>
    %cst_223 = arith.constant dense<0.000000e+00> : vector<8x512xf32>
    %682 = tpu.matmul %680, %576, %cst_223 {dimension_numbers = #tpu.dot_dimension_numbers<[1], [0], [0], [1], [0, 0, 1, 1], [], []>} : vector<8x128xf32>, vector<128x512xf32>, vector<8x512xf32> -> vector<8x512xf32>
    %683 = arith.addf %681, %682 : vector<8x512xf32>
    %684 = vector.extract_strided_slice %683 {offsets = [0, 0], sizes = [8, 128], strides = [1, 1]} : vector<8x512xf32> to vector<8x128xf32>
    %cst_224 = arith.constant 5.000000e-01 : f32
    %685 = vector.broadcast %cst_224 : f32 to vector<8x128xf32>
    %686 = arith.mulf %685, %684 : vector<8x128xf32>
    %687 = math.tanh %686 : vector<8x128xf32>
    %cst_225 = arith.constant 1.000000e+00 : f32
    %688 = vector.broadcast %cst_225 : f32 to vector<8x128xf32>
    %689 = arith.addf %688, %687 : vector<8x128xf32>
    %cst_226 = arith.constant 5.000000e-01 : f32
    %690 = vector.broadcast %cst_226 : f32 to vector<8x128xf32>
    %691 = arith.mulf %690, %689 : vector<8x128xf32>
    %692 = vector.extract_strided_slice %683 {offsets = [0, 128], sizes = [8, 128], strides = [1, 1]} : vector<8x512xf32> to vector<8x128xf32>
    %cst_227 = arith.constant 5.000000e-01 : f32
    %693 = vector.broadcast %cst_227 : f32 to vector<8x128xf32>
    %694 = arith.mulf %693, %692 : vector<8x128xf32>
    %695 = math.tanh %694 : vector<8x128xf32>
    %cst_228 = arith.constant 1.000000e+00 : f32
    %696 = vector.broadcast %cst_228 : f32 to vector<8x128xf32>
    %697 = arith.addf %696, %695 : vector<8x128xf32>
    %cst_229 = arith.constant 5.000000e-01 : f32
    %698 = vector.broadcast %cst_229 : f32 to vector<8x128xf32>
    %699 = arith.mulf %698, %697 : vector<8x128xf32>
    %700 = vector.extract_strided_slice %683 {offsets = [0, 256], sizes = [8, 128], strides = [1, 1]} : vector<8x512xf32> to vector<8x128xf32>
    %701 = math.tanh %700 : vector<8x128xf32>
    %702 = vector.extract_strided_slice %683 {offsets = [0, 384], sizes = [8, 128], strides = [1, 1]} : vector<8x512xf32> to vector<8x128xf32>
    %cst_230 = arith.constant 5.000000e-01 : f32
    %703 = vector.broadcast %cst_230 : f32 to vector<8x128xf32>
    %704 = arith.mulf %703, %702 : vector<8x128xf32>
    %705 = math.tanh %704 : vector<8x128xf32>
    %cst_231 = arith.constant 1.000000e+00 : f32
    %706 = vector.broadcast %cst_231 : f32 to vector<8x128xf32>
    %707 = arith.addf %706, %705 : vector<8x128xf32>
    %cst_232 = arith.constant 5.000000e-01 : f32
    %708 = vector.broadcast %cst_232 : f32 to vector<8x128xf32>
    %709 = arith.mulf %708, %707 : vector<8x128xf32>
    %710 = arith.mulf %699, %678 : vector<8x128xf32>
    %711 = arith.mulf %691, %701 : vector<8x128xf32>
    %712 = arith.addf %710, %711 : vector<8x128xf32>
    %713 = math.tanh %712 : vector<8x128xf32>
    %714 = arith.mulf %709, %713 : vector<8x128xf32>
    %715 = vector.extract_strided_slice %574 {offsets = [32, 0], sizes = [8, 512], strides = [1, 1]} : vector<64x512xf32> to vector<8x512xf32>
    %cst_233 = arith.constant dense<0.000000e+00> : vector<8x512xf32>
    %716 = tpu.matmul %714, %576, %cst_233 {dimension_numbers = #tpu.dot_dimension_numbers<[1], [0], [0], [1], [0, 0, 1, 1], [], []>} : vector<8x128xf32>, vector<128x512xf32>, vector<8x512xf32> -> vector<8x512xf32>
    %717 = arith.addf %715, %716 : vector<8x512xf32>
    %718 = vector.extract_strided_slice %717 {offsets = [0, 0], sizes = [8, 128], strides = [1, 1]} : vector<8x512xf32> to vector<8x128xf32>
    %cst_234 = arith.constant 5.000000e-01 : f32
    %719 = vector.broadcast %cst_234 : f32 to vector<8x128xf32>
    %720 = arith.mulf %719, %718 : vector<8x128xf32>
    %721 = math.tanh %720 : vector<8x128xf32>
    %cst_235 = arith.constant 1.000000e+00 : f32
    %722 = vector.broadcast %cst_235 : f32 to vector<8x128xf32>
    %723 = arith.addf %722, %721 : vector<8x128xf32>
    %cst_236 = arith.constant 5.000000e-01 : f32
    %724 = vector.broadcast %cst_236 : f32 to vector<8x128xf32>
    %725 = arith.mulf %724, %723 : vector<8x128xf32>
    %726 = vector.extract_strided_slice %717 {offsets = [0, 128], sizes = [8, 128], strides = [1, 1]} : vector<8x512xf32> to vector<8x128xf32>
    %cst_237 = arith.constant 5.000000e-01 : f32
    %727 = vector.broadcast %cst_237 : f32 to vector<8x128xf32>
    %728 = arith.mulf %727, %726 : vector<8x128xf32>
    %729 = math.tanh %728 : vector<8x128xf32>
    %cst_238 = arith.constant 1.000000e+00 : f32
    %730 = vector.broadcast %cst_238 : f32 to vector<8x128xf32>
    %731 = arith.addf %730, %729 : vector<8x128xf32>
    %cst_239 = arith.constant 5.000000e-01 : f32
    %732 = vector.broadcast %cst_239 : f32 to vector<8x128xf32>
    %733 = arith.mulf %732, %731 : vector<8x128xf32>
    %734 = vector.extract_strided_slice %717 {offsets = [0, 256], sizes = [8, 128], strides = [1, 1]} : vector<8x512xf32> to vector<8x128xf32>
    %735 = math.tanh %734 : vector<8x128xf32>
    %736 = vector.extract_strided_slice %717 {offsets = [0, 384], sizes = [8, 128], strides = [1, 1]} : vector<8x512xf32> to vector<8x128xf32>
    %cst_240 = arith.constant 5.000000e-01 : f32
    %737 = vector.broadcast %cst_240 : f32 to vector<8x128xf32>
    %738 = arith.mulf %737, %736 : vector<8x128xf32>
    %739 = math.tanh %738 : vector<8x128xf32>
    %cst_241 = arith.constant 1.000000e+00 : f32
    %740 = vector.broadcast %cst_241 : f32 to vector<8x128xf32>
    %741 = arith.addf %740, %739 : vector<8x128xf32>
    %cst_242 = arith.constant 5.000000e-01 : f32
    %742 = vector.broadcast %cst_242 : f32 to vector<8x128xf32>
    %743 = arith.mulf %742, %741 : vector<8x128xf32>
    %744 = arith.mulf %733, %712 : vector<8x128xf32>
    %745 = arith.mulf %725, %735 : vector<8x128xf32>
    %746 = arith.addf %744, %745 : vector<8x128xf32>
    %747 = math.tanh %746 : vector<8x128xf32>
    %748 = arith.mulf %743, %747 : vector<8x128xf32>
    %749 = vector.extract_strided_slice %574 {offsets = [40, 0], sizes = [8, 512], strides = [1, 1]} : vector<64x512xf32> to vector<8x512xf32>
    %cst_243 = arith.constant dense<0.000000e+00> : vector<8x512xf32>
    %750 = tpu.matmul %748, %576, %cst_243 {dimension_numbers = #tpu.dot_dimension_numbers<[1], [0], [0], [1], [0, 0, 1, 1], [], []>} : vector<8x128xf32>, vector<128x512xf32>, vector<8x512xf32> -> vector<8x512xf32>
    %751 = arith.addf %749, %750 : vector<8x512xf32>
    %752 = vector.extract_strided_slice %751 {offsets = [0, 0], sizes = [8, 128], strides = [1, 1]} : vector<8x512xf32> to vector<8x128xf32>
    %cst_244 = arith.constant 5.000000e-01 : f32
    %753 = vector.broadcast %cst_244 : f32 to vector<8x128xf32>
    %754 = arith.mulf %753, %752 : vector<8x128xf32>
    %755 = math.tanh %754 : vector<8x128xf32>
    %cst_245 = arith.constant 1.000000e+00 : f32
    %756 = vector.broadcast %cst_245 : f32 to vector<8x128xf32>
    %757 = arith.addf %756, %755 : vector<8x128xf32>
    %cst_246 = arith.constant 5.000000e-01 : f32
    %758 = vector.broadcast %cst_246 : f32 to vector<8x128xf32>
    %759 = arith.mulf %758, %757 : vector<8x128xf32>
    %760 = vector.extract_strided_slice %751 {offsets = [0, 128], sizes = [8, 128], strides = [1, 1]} : vector<8x512xf32> to vector<8x128xf32>
    %cst_247 = arith.constant 5.000000e-01 : f32
    %761 = vector.broadcast %cst_247 : f32 to vector<8x128xf32>
    %762 = arith.mulf %761, %760 : vector<8x128xf32>
    %763 = math.tanh %762 : vector<8x128xf32>
    %cst_248 = arith.constant 1.000000e+00 : f32
    %764 = vector.broadcast %cst_248 : f32 to vector<8x128xf32>
    %765 = arith.addf %764, %763 : vector<8x128xf32>
    %cst_249 = arith.constant 5.000000e-01 : f32
    %766 = vector.broadcast %cst_249 : f32 to vector<8x128xf32>
    %767 = arith.mulf %766, %765 : vector<8x128xf32>
    %768 = vector.extract_strided_slice %751 {offsets = [0, 256], sizes = [8, 128], strides = [1, 1]} : vector<8x512xf32> to vector<8x128xf32>
    %769 = math.tanh %768 : vector<8x128xf32>
    %770 = vector.extract_strided_slice %751 {offsets = [0, 384], sizes = [8, 128], strides = [1, 1]} : vector<8x512xf32> to vector<8x128xf32>
    %cst_250 = arith.constant 5.000000e-01 : f32
    %771 = vector.broadcast %cst_250 : f32 to vector<8x128xf32>
    %772 = arith.mulf %771, %770 : vector<8x128xf32>
    %773 = math.tanh %772 : vector<8x128xf32>
    %cst_251 = arith.constant 1.000000e+00 : f32
    %774 = vector.broadcast %cst_251 : f32 to vector<8x128xf32>
    %775 = arith.addf %774, %773 : vector<8x128xf32>
    %cst_252 = arith.constant 5.000000e-01 : f32
    %776 = vector.broadcast %cst_252 : f32 to vector<8x128xf32>
    %777 = arith.mulf %776, %775 : vector<8x128xf32>
    %778 = arith.mulf %767, %746 : vector<8x128xf32>
    %779 = arith.mulf %759, %769 : vector<8x128xf32>
    %780 = arith.addf %778, %779 : vector<8x128xf32>
    %781 = math.tanh %780 : vector<8x128xf32>
    %782 = arith.mulf %777, %781 : vector<8x128xf32>
    %783 = vector.extract_strided_slice %574 {offsets = [48, 0], sizes = [8, 512], strides = [1, 1]} : vector<64x512xf32> to vector<8x512xf32>
    %cst_253 = arith.constant dense<0.000000e+00> : vector<8x512xf32>
    %784 = tpu.matmul %782, %576, %cst_253 {dimension_numbers = #tpu.dot_dimension_numbers<[1], [0], [0], [1], [0, 0, 1, 1], [], []>} : vector<8x128xf32>, vector<128x512xf32>, vector<8x512xf32> -> vector<8x512xf32>
    %785 = arith.addf %783, %784 : vector<8x512xf32>
    %786 = vector.extract_strided_slice %785 {offsets = [0, 0], sizes = [8, 128], strides = [1, 1]} : vector<8x512xf32> to vector<8x128xf32>
    %cst_254 = arith.constant 5.000000e-01 : f32
    %787 = vector.broadcast %cst_254 : f32 to vector<8x128xf32>
    %788 = arith.mulf %787, %786 : vector<8x128xf32>
    %789 = math.tanh %788 : vector<8x128xf32>
    %cst_255 = arith.constant 1.000000e+00 : f32
    %790 = vector.broadcast %cst_255 : f32 to vector<8x128xf32>
    %791 = arith.addf %790, %789 : vector<8x128xf32>
    %cst_256 = arith.constant 5.000000e-01 : f32
    %792 = vector.broadcast %cst_256 : f32 to vector<8x128xf32>
    %793 = arith.mulf %792, %791 : vector<8x128xf32>
    %794 = vector.extract_strided_slice %785 {offsets = [0, 128], sizes = [8, 128], strides = [1, 1]} : vector<8x512xf32> to vector<8x128xf32>
    %cst_257 = arith.constant 5.000000e-01 : f32
    %795 = vector.broadcast %cst_257 : f32 to vector<8x128xf32>
    %796 = arith.mulf %795, %794 : vector<8x128xf32>
    %797 = math.tanh %796 : vector<8x128xf32>
    %cst_258 = arith.constant 1.000000e+00 : f32
    %798 = vector.broadcast %cst_258 : f32 to vector<8x128xf32>
    %799 = arith.addf %798, %797 : vector<8x128xf32>
    %cst_259 = arith.constant 5.000000e-01 : f32
    %800 = vector.broadcast %cst_259 : f32 to vector<8x128xf32>
    %801 = arith.mulf %800, %799 : vector<8x128xf32>
    %802 = vector.extract_strided_slice %785 {offsets = [0, 256], sizes = [8, 128], strides = [1, 1]} : vector<8x512xf32> to vector<8x128xf32>
    %803 = math.tanh %802 : vector<8x128xf32>
    %804 = vector.extract_strided_slice %785 {offsets = [0, 384], sizes = [8, 128], strides = [1, 1]} : vector<8x512xf32> to vector<8x128xf32>
    %cst_260 = arith.constant 5.000000e-01 : f32
    %805 = vector.broadcast %cst_260 : f32 to vector<8x128xf32>
    %806 = arith.mulf %805, %804 : vector<8x128xf32>
    %807 = math.tanh %806 : vector<8x128xf32>
    %cst_261 = arith.constant 1.000000e+00 : f32
    %808 = vector.broadcast %cst_261 : f32 to vector<8x128xf32>
    %809 = arith.addf %808, %807 : vector<8x128xf32>
    %cst_262 = arith.constant 5.000000e-01 : f32
    %810 = vector.broadcast %cst_262 : f32 to vector<8x128xf32>
    %811 = arith.mulf %810, %809 : vector<8x128xf32>
    %812 = arith.mulf %801, %780 : vector<8x128xf32>
    %813 = arith.mulf %793, %803 : vector<8x128xf32>
    %814 = arith.addf %812, %813 : vector<8x128xf32>
    %815 = math.tanh %814 : vector<8x128xf32>
    %816 = arith.mulf %811, %815 : vector<8x128xf32>
    %817 = vector.extract_strided_slice %574 {offsets = [56, 0], sizes = [8, 512], strides = [1, 1]} : vector<64x512xf32> to vector<8x512xf32>
    %cst_263 = arith.constant dense<0.000000e+00> : vector<8x512xf32>
    %818 = tpu.matmul %816, %576, %cst_263 {dimension_numbers = #tpu.dot_dimension_numbers<[1], [0], [0], [1], [0, 0, 1, 1], [], []>} : vector<8x128xf32>, vector<128x512xf32>, vector<8x512xf32> -> vector<8x512xf32>
    %819 = arith.addf %817, %818 : vector<8x512xf32>
    %820 = vector.extract_strided_slice %819 {offsets = [0, 0], sizes = [8, 128], strides = [1, 1]} : vector<8x512xf32> to vector<8x128xf32>
    %cst_264 = arith.constant 5.000000e-01 : f32
    %821 = vector.broadcast %cst_264 : f32 to vector<8x128xf32>
    %822 = arith.mulf %821, %820 : vector<8x128xf32>
    %823 = math.tanh %822 : vector<8x128xf32>
    %cst_265 = arith.constant 1.000000e+00 : f32
    %824 = vector.broadcast %cst_265 : f32 to vector<8x128xf32>
    %825 = arith.addf %824, %823 : vector<8x128xf32>
    %cst_266 = arith.constant 5.000000e-01 : f32
    %826 = vector.broadcast %cst_266 : f32 to vector<8x128xf32>
    %827 = arith.mulf %826, %825 : vector<8x128xf32>
    %828 = vector.extract_strided_slice %819 {offsets = [0, 128], sizes = [8, 128], strides = [1, 1]} : vector<8x512xf32> to vector<8x128xf32>
    %cst_267 = arith.constant 5.000000e-01 : f32
    %829 = vector.broadcast %cst_267 : f32 to vector<8x128xf32>
    %830 = arith.mulf %829, %828 : vector<8x128xf32>
    %831 = math.tanh %830 : vector<8x128xf32>
    %cst_268 = arith.constant 1.000000e+00 : f32
    %832 = vector.broadcast %cst_268 : f32 to vector<8x128xf32>
    %833 = arith.addf %832, %831 : vector<8x128xf32>
    %cst_269 = arith.constant 5.000000e-01 : f32
    %834 = vector.broadcast %cst_269 : f32 to vector<8x128xf32>
    %835 = arith.mulf %834, %833 : vector<8x128xf32>
    %836 = vector.extract_strided_slice %819 {offsets = [0, 256], sizes = [8, 128], strides = [1, 1]} : vector<8x512xf32> to vector<8x128xf32>
    %837 = math.tanh %836 : vector<8x128xf32>
    %838 = vector.extract_strided_slice %819 {offsets = [0, 384], sizes = [8, 128], strides = [1, 1]} : vector<8x512xf32> to vector<8x128xf32>
    %cst_270 = arith.constant 5.000000e-01 : f32
    %839 = vector.broadcast %cst_270 : f32 to vector<8x128xf32>
    %840 = arith.mulf %839, %838 : vector<8x128xf32>
    %841 = math.tanh %840 : vector<8x128xf32>
    %cst_271 = arith.constant 1.000000e+00 : f32
    %842 = vector.broadcast %cst_271 : f32 to vector<8x128xf32>
    %843 = arith.addf %842, %841 : vector<8x128xf32>
    %cst_272 = arith.constant 5.000000e-01 : f32
    %844 = vector.broadcast %cst_272 : f32 to vector<8x128xf32>
    %845 = arith.mulf %844, %843 : vector<8x128xf32>
    %846 = arith.mulf %835, %814 : vector<8x128xf32>
    %847 = arith.mulf %827, %837 : vector<8x128xf32>
    %848 = arith.addf %846, %847 : vector<8x128xf32>
    %849 = math.tanh %848 : vector<8x128xf32>
    %850 = arith.mulf %845, %849 : vector<8x128xf32>
    %c0_273 = arith.constant 0 : index
    %c0_274 = arith.constant 0 : index
    %851 = vector.load %arg6[%c0_273, %c0_274] : memref<128x128xf32, #tpu.memory_space<vmem>>, vector<128x128xf32>
    %cst_275 = arith.constant dense<0.000000e+00> : vector<8x128xf32>
    %852 = tpu.matmul %850, %851, %cst_275 {dimension_numbers = #tpu.dot_dimension_numbers<[1], [0], [0], [1], [0, 0, 1, 1], [], []>} : vector<8x128xf32>, vector<128x128xf32>, vector<8x128xf32> -> vector<8x128xf32>
    %c0_276 = arith.constant 0 : index
    %c0_277 = arith.constant 0 : index
    %853 = vector.load %arg7[%c0_276, %c0_277] : memref<1x128xf32, #tpu.memory_space<vmem>>, vector<1x128xf32>
    %854 = vector.broadcast %853 : vector<1x128xf32> to vector<8x128xf32>
    %855 = arith.addf %852, %854 : vector<8x128xf32>
    %cst_278 = arith.constant dense<0xFF800000> : vector<8xf32>
    %856 = vector.multi_reduction <maximumf>, %855, %cst_278 [1] : vector<8x128xf32> to vector<8xf32>
    %857 = vector.shape_cast %856 : vector<8xf32> to vector<8x1xf32>
    %858 = vector.broadcast %857 : vector<8x1xf32> to vector<8x128xf32>
    %859 = arith.subf %855, %858 : vector<8x128xf32>
    %860 = math.exp %859 : vector<8x128xf32>
    %cst_279 = arith.constant dense<0.000000e+00> : vector<8xf32>
    %861 = vector.multi_reduction <add>, %860, %cst_279 [1] : vector<8x128xf32> to vector<8xf32>
    %862 = vector.shape_cast %861 : vector<8xf32> to vector<8x1xf32>
    %863 = math.log %862 : vector<8x1xf32>
    %864 = vector.broadcast %863 : vector<8x1xf32> to vector<8x128xf32>
    %865 = arith.subf %859, %864 : vector<8x128xf32>
    %c0_280 = arith.constant 0 : index
    %c0_281 = arith.constant 0 : index
    %866 = vector.load %arg8[%c0_280, %c0_281] : memref<8x128xf32, #tpu.memory_space<vmem>>, vector<8x128xf32>
    tpu.vector_store %arg8[%c0_280, %c0_281], %865 {strides = array<i32>} : memref<8x128xf32, #tpu.memory_space<vmem>>, vector<8x128xf32>,
    return
  }
  func.func @transform_0(%arg0: i32) -> (i32, i32) {
    %c0_i32 = arith.constant 0 : i32
    %c0_i32_0 = arith.constant 0 : i32
    %c0_i32_1 = arith.constant 0 : i32
    return %c0_i32, %c0_i32_0 : i32, i32
  }
  func.func @transform_1(%arg0: i32) -> (i32, i32) {
    %c0_i32 = arith.constant 0 : i32
    %c0_i32_0 = arith.constant 0 : i32
    %c0_i32_1 = arith.constant 0 : i32
    return %c0_i32, %c0_i32_0 : i32, i32
  }
  func.func @transform_2(%arg0: i32) -> (i32, i32, i32) {
    %c0_i32 = arith.constant 0 : i32
    %c0_i32_0 = arith.constant 0 : i32
    %c0_i32_1 = arith.constant 0 : i32
    %c0_i32_2 = arith.constant 0 : i32
    return %c0_i32, %c0_i32_0, %c0_i32_1 : i32, i32, i32
  }
  func.func @transform_3(%arg0: i32) -> (i32, i32, i32) {
    %c0_i32 = arith.constant 0 : i32
    %c0_i32_0 = arith.constant 0 : i32
    %c0_i32_1 = arith.constant 0 : i32
    %c0_i32_2 = arith.constant 0 : i32
    return %c0_i32, %c0_i32_0, %c0_i32_1 : i32, i32, i32
  }
  func.func @transform_4(%arg0: i32) -> (i32, i32, i32) {
    %c0_i32 = arith.constant 0 : i32
    %c0_i32_0 = arith.constant 0 : i32
    %c0_i32_1 = arith.constant 0 : i32
    %c0_i32_2 = arith.constant 0 : i32
    return %c0_i32, %c0_i32_0, %c0_i32_1 : i32, i32, i32
  }
  func.func @transform_5(%arg0: i32) -> (i32, i32) {
    %c0_i32 = arith.constant 0 : i32
    %c0_i32_0 = arith.constant 0 : i32
    %c0_i32_1 = arith.constant 0 : i32
    return %c0_i32, %c0_i32_0 : i32, i32
  }
  func.func @transform_6(%arg0: i32) -> (i32, i32) {
    %c0_i32 = arith.constant 0 : i32
    %c0_i32_0 = arith.constant 0 : i32
    %c0_i32_1 = arith.constant 0 : i32
    return %c0_i32, %c0_i32_0 : i32, i32
  }
  func.func @transform_7(%arg0: i32) -> (i32, i32) {
    %c0_i32 = arith.constant 0 : i32
    %c0_i32_0 = arith.constant 0 : i32
    %c0_i32_1 = arith.constant 0 : i32
    return %c0_i32, %c0_i32_0 : i32, i32
  }
}

</mosaic_0001>

<llo_original>
// kernel: tpu_custom_call.1
$region0: #{tpu_custom_call.1}
  #allocation0 [shape = 'u32[]', space=smem, size = 0x4, offset = 0x4, fixed_abs, tag = 'smem constant byte address 0x4 - core index']
  #allocation1 [shape = 'u32[72,128]{1,0:T(1,128)}', space=vmem, size = 0x9000, scoped, tag = 'internal scratch']
  %s0 = inlined_call_operand.vmem [shape: f32[64,32], index: 0, kind: input, shape index: {}]
  %s1 = inlined_call_operand.hbm [shape: f32[32,512], index: 1, kind: input, shape index: {}]
  %s2 = inlined_call_operand.hbm [shape: f32[2,128,512], index: 2, kind: input, shape index: {}]
  %s3 = inlined_call_operand.hbm [shape: f32[3,128,512], index: 3, kind: input, shape index: {}]
  %s4 = inlined_call_operand.vmem [shape: f32[3,1,512], index: 4, kind: input, shape index: {}]
  %s5 = inlined_call_operand.hbm [shape: f32[128,128], index: 5, kind: input, shape index: {}]
  %s6 = inlined_call_operand.vmem [shape: f32[1,128], index: 6, kind: input, shape index: {}]
  %s7 = inlined_call_operand.hbm [shape: f32[8,128], index: 7, kind: output, shape index: {}]
  %s8 = sld [smem:[#allocation0]]
  $region54: #{tpu_custom_call.1} parent=0
    _
  %s10 = ssub.s32 1, %s8
  %s11 = scalar_select 0, %s10, %s8
  $region1: #{tpu_custom_call.1} parent=0
    #allocation2 [shape = 'u8[65536]{0}', space=vmem, size = 0x10000, scoped, tag = 'input window, operand 1, single buffered']
    #allocation3 [shape = 's32[1]{0}', space=sflag, size = 0x4, scoped, tag = 'scoped memory for tpu_custom_call.1']
    #allocation4 [shape = 's32[1]{0}', space=sflag, size = 0x4, scoped, tag = 'scoped memory for tpu_custom_call.1']
    #allocation5 [shape = 'u8[524288]{0}', space=vmem, size = 0x80000, scoped, tag = 'input window, operand 2, single buffered']
    #allocation6 [shape = 's32[1]{0}', space=sflag, size = 0x4, scoped, tag = 'scoped memory for tpu_custom_call.1']
    #allocation7 [shape = 'u8[786432]{0}', space=vmem, size = 0xc0000, scoped, tag = 'input window, operand 3, single buffered']
    #allocation8 [shape = 'u8[65536]{0}', space=vmem, size = 0x10000, scoped, tag = 'input window, operand 5, single buffered']
    #allocation9 [shape = 's32[1]{0}', space=sflag, size = 0x4, scoped, tag = 'scoped memory for tpu_custom_call.1']
    #allocation10 [shape = 'u8[4096]{0}', space=vmem, size = 0x1000, scoped, tag = 'output window, operand 0, single buffered']
    %12 = vsyncpa [#allocation3], 0
    %13 = vsyncpa [#allocation6], 0
    %14 = vsyncpa [#allocation9], 0
    %15 = vsyncpa [#allocation4], 0
    // Predicated region
    $region2: #{tpu_custom_call.1} parent=1 // pred_check
      _
    $region3: #{tpu_custom_call.1} parent=1 // pred_check_branch
      %17 = sbr.rel (0) target = $region5
    $region4: #{tpu_custom_call.1} parent=1 // pred_region
      _
    $region5: #{tpu_custom_call.1} parent=1 // pred_fallthru
      _
    // Predicated region
    $region6: #{tpu_custom_call.1} parent=1 // pred_check
      _
    $region7: #{tpu_custom_call.1} parent=1 // pred_check_branch
      %19 = sbr.rel (0) target = $region9
    $region8: #{tpu_custom_call.1} parent=1 // pred_region
      %21 = vsyncadd [#allocation3], 0
      %s22 = sshll.u32 %s1, 4
      %s23 = int_to_ptr.hbm [resolvable:$true] %s22
      %s24 = sshll.u32 [#allocation2], 4
      %s25 = int_to_ptr.vmem [resolvable:$true] %s24
      %30 = dma.hbm_to_vmem [thread:$0]  %s23, 2048, %s25, [#allocation3], 512, 512, 32
    $region9: #{tpu_custom_call.1} parent=1 // pred_fallthru
      _
    // Predicated region
    $region10: #{tpu_custom_call.1} parent=1 // pred_check
      _
    $region11: #{tpu_custom_call.1} parent=1 // pred_check_branch
      %32 = sbr.rel (0) target = $region13
    $region12: #{tpu_custom_call.1} parent=1 // pred_region
      %34 = vsyncadd [#allocation6], 0
      %s35 = sshll.u32 %s2, 4
      %s36 = int_to_ptr.hbm [resolvable:$true] %s35
      %s37 = sshll.u32 [#allocation5], 4
      %s38 = int_to_ptr.vmem [resolvable:$true] %s37
      %43 = dma.hbm_to_vmem [thread:$0]  %s36, 16384, %s38, [#allocation6], 512, 512, 32
    $region13: #{tpu_custom_call.1} parent=1 // pred_fallthru
      _
    // Predicated region
    $region14: #{tpu_custom_call.1} parent=1 // pred_check
      _
    $region15: #{tpu_custom_call.1} parent=1 // pred_check_branch
      %45 = sbr.rel (0) target = $region17
    $region16: #{tpu_custom_call.1} parent=1 // pred_region
      %47 = vsyncadd [#allocation6], 0
      %s48 = sshll.u32 %s3, 4
      %s49 = int_to_ptr.hbm [resolvable:$true] %s48
      %s50 = sshll.u32 [#allocation7], 4
      %s51 = int_to_ptr.vmem [resolvable:$true] %s50
      %56 = dma.hbm_to_vmem [thread:$0]  %s49, 24576, %s51, [#allocation6], 512, 512, 32
    $region17: #{tpu_custom_call.1} parent=1 // pred_fallthru
      _
    // Predicated region
    $region18: #{tpu_custom_call.1} parent=1 // pred_check
      _
    $region19: #{tpu_custom_call.1} parent=1 // pred_check_branch
      %58 = sbr.rel (0) target = $region21
    $region20: #{tpu_custom_call.1} parent=1 // pred_region
      _
    $region21: #{tpu_custom_call.1} parent=1 // pred_fallthru
      _
    // Predicated region
    $region22: #{tpu_custom_call.1} parent=1 // pred_check
      _
    $region23: #{tpu_custom_call.1} parent=1 // pred_check_branch
      %60 = sbr.rel (0) target = $region25
    $region24: #{tpu_custom_call.1} parent=1 // pred_region
      %62 = vsyncadd [#allocation9], 0
      %s63 = sshll.u32 %s5, 4
      %s64 = int_to_ptr.hbm [resolvable:$true] %s63
      %s65 = sshll.u32 [#allocation8], 4
      %s66 = int_to_ptr.vmem [resolvable:$true] %s65
      %71 = dma.hbm_to_vmem [thread:$0]  %s64, 2048, %s66, [#allocation9], 128, 128, 8
    $region25: #{tpu_custom_call.1} parent=1 // pred_fallthru
      _
    // Predicated region
    $region26: #{tpu_custom_call.1} parent=1 // pred_check
      _
    $region27: #{tpu_custom_call.1} parent=1 // pred_check_branch
      %73 = sbr.rel (0) target = $region29
    $region28: #{tpu_custom_call.1} parent=1 // pred_region
      _
    $region29: #{tpu_custom_call.1} parent=1 // pred_fallthru
      _
    // Predicated region
    $region30: #{tpu_custom_call.1} parent=1 // pred_check
      _
    $region31: #{tpu_custom_call.1} parent=1 // pred_check_branch
      %75 = sbr.rel (0) target = $region33
    $region32: #{tpu_custom_call.1} parent=1 // pred_region
      %77 = dma.done [#allocation3], 2048
    $region33: #{tpu_custom_call.1} parent=1 // pred_fallthru
      _
    // Predicated region
    $region34: #{tpu_custom_call.1} parent=1 // pred_check
      _
    $region35: #{tpu_custom_call.1} parent=1 // pred_check_branch
      %79 = sbr.rel (0) target = $region37
    $region36: #{tpu_custom_call.1} parent=1 // pred_region
      %81 = dma.done [#allocation6], 16384
    $region37: #{tpu_custom_call.1} parent=1 // pred_fallthru
      _
    // Predicated region
    $region38: #{tpu_custom_call.1} parent=1 // pred_check
      _
    $region39: #{tpu_custom_call.1} parent=1 // pred_check_branch
      %83 = sbr.rel (0) target = $region41
    $region40: #{tpu_custom_call.1} parent=1 // pred_region
      %85 = dma.done [#allocation6], 24576
    $region41: #{tpu_custom_call.1} parent=1 // pred_fallthru
      _
    // Predicated region
    $region42: #{tpu_custom_call.1} parent=1 // pred_check
      _
    $region43: #{tpu_custom_call.1} parent=1 // pred_check_branch
      %87 = sbr.rel (0) target = $region45
    $region44: #{tpu_custom_call.1} parent=1 // pred_region
      %89 = dma.done [#allocation9], 2048
    $region45: #{tpu_custom_call.1} parent=1 // pred_fallthru
      _
    %v90 = vld [vmem:[%s0] sm:$0xff]
    %v91 = vld [vmem:[%s0 + $0x8] sm:$0xff]
    %v92 = vld [vmem:[%s0 + $0x10] sm:$0xff]
    %v93 = vld [vmem:[%s0 + $0x18] sm:$0xff]
    %v94 = vld [vmem:[%s0 + $0x20] sm:$0xff]
    %v95 = vld [vmem:[%s0 + $0x28] sm:$0xff]
    %v96 = vld [vmem:[%s0 + $0x30] sm:$0xff]
    %v97 = vld [vmem:[%s0 + $0x38] sm:$0xff]
    %v98 = vld [vmem:[#allocation2] sm:$0xff]
    %v99 = vld [vmem:[#allocation2 + $0x8] sm:$0xff]
    %v100 = vld [vmem:[#allocation2 + $0x10] sm:$0xff]
    %v101 = vld [vmem:[#allocation2 + $0x18] sm:$0xff]
    %v102 = vld [vmem:[#allocation2 + $0x20] sm:$0xff]
    %v103 = vld [vmem:[#allocation2 + $0x28] sm:$0xff]
    %v104 = vld [vmem:[#allocation2 + $0x30] sm:$0xff]
    %v105 = vld [vmem:[#allocation2 + $0x38] sm:$0xff]
    %v106 = vld [vmem:[#allocation2 + $0x40] sm:$0xff]
    %v107 = vld [vmem:[#allocation2 + $0x48] sm:$0xff]
    %v108 = vld [vmem:[#allocation2 + $0x50] sm:$0xff]
    %v109 = vld [vmem:[#allocation2 + $0x58] sm:$0xff]
    %v110 = vld [vmem:[#allocation2 + $0x60] sm:$0xff]
    %v111 = vld [vmem:[#allocation2 + $0x68] sm:$0xff]
    %v112 = vld [vmem:[#allocation2 + $0x70] sm:$0xff]
    %v113 = vld [vmem:[#allocation2 + $0x78] sm:$0xff]
    %v114 = vld [vmem:[%s4] sm:$0xf]
    %v116 = vperm.slane %v114, 0
    %v117 = vperm.slane %v114, 1
    %v118 = vperm.slane %v114, 2
    %v119 = vperm.slane %v114, 3
    %vm124 = vcmask 261120
    %v126 = vsel %vm124, %v90, 0
    %v129 = vsel %vm124, %v91, 0
    %v132 = vsel %vm124, %v92, 0
    %v135 = vsel %vm124, %v93, 0
    %v138 = vsel %vm124, %v94, 0
    %v141 = vsel %vm124, %v95, 0
    %v144 = vsel %vm124, %v96, 0
    %v147 = vsel %vm124, %v97, 0
    %149 = vmatpush.msra.mxu0 0.0
    %150 = vmatpush.msra.mxu0 0.0
    %151 = vmatpush.msra.mxu0 0.0
    %152 = vmatpush.msra.mxu0 0.0
    %153 = vmatpush.msra.mxu0 0.0
    %154 = vmatpush.msra.mxu0 0.0
    %155 = vmatpush.msra.mxu0 0.0
    %156 = vmatpush.msra.mxu0 0.0
    %157 = vmatpush.msra.mxu0 0.0
    %158 = vmatpush.msra.mxu0 0.0
    %159 = vmatpush.msra.mxu0 0.0
    %160 = vmatpush.msra.mxu0 0.0
    %161 = vmatpush.msra.mxu0 %v110
    %162 = vmatpush.msra.mxu0 %v106
    %163 = vmatpush.msra.mxu0 %v102
    %164 = vmatpush.msra.mxu0 %v98
    %165 = vmatmul.f32.gmra.mxu0 %v126
    %v166 = vpop.f32.mrf.mxu0
    %v167 = vadd.f32 %v116, %v166
    %168 = vmatmul.f32.gmra.mxu0 %v129
    %v169 = vpop.f32.mrf.mxu0
    %v170 = vadd.f32 %v116, %v169
    %171 = vmatmul.f32.gmra.mxu0 %v132
    %v172 = vpop.f32.mrf.mxu0
    %v173 = vadd.f32 %v116, %v172
    %174 = vmatmul.f32.gmra.mxu0 %v135
    %v175 = vpop.f32.mrf.mxu0
    %v176 = vadd.f32 %v116, %v175
    %177 = vmatmul.f32.gmra.mxu0 %v138
    %v178 = vpop.f32.mrf.mxu0
    %v179 = vadd.f32 %v116, %v178
    %180 = vmatmul.f32.gmra.mxu0 %v141
    %v181 = vpop.f32.mrf.mxu0
    %v182 = vadd.f32 %v116, %v181
    %183 = vmatmul.f32.gmra.mxu0 %v144
    %v184 = vpop.f32.mrf.mxu0
    %v185 = vadd.f32 %v116, %v184
    %186 = vmatmul.f32.gmra.mxu0 %v147
    %v187 = vpop.f32.mrf.mxu0
    %v188 = vadd.f32 %v116, %v187
    %189 = vdwg.mxu0
    %190 = vmatpush.msra.mxu0 0.0
    %191 = vmatpush.msra.mxu0 0.0
    %192 = vmatpush.msra.mxu0 0.0
    %193 = vmatpush.msra.mxu0 0.0
    %194 = vmatpush.msra.mxu0 0.0
    %195 = vmatpush.msra.mxu0 0.0
    %196 = vmatpush.msra.mxu0 0.0
    %197 = vmatpush.msra.mxu0 0.0
    %198 = vmatpush.msra.mxu0 0.0
    %199 = vmatpush.msra.mxu0 0.0
    %200 = vmatpush.msra.mxu0 0.0
    %201 = vmatpush.msra.mxu0 0.0
    %202 = vmatpush.msra.mxu0 %v111
    %203 = vmatpush.msra.mxu0 %v107
    %204 = vmatpush.msra.mxu0 %v103
    %205 = vmatpush.msra.mxu0 %v99
    %206 = vmatmul.f32.gmra.mxu0 %v126
    %v207 = vpop.f32.mrf.mxu0
    %v208 = vadd.f32 %v117, %v207
    %209 = vmatmul.f32.gmra.mxu0 %v129
    %v210 = vpop.f32.mrf.mxu0
    %v211 = vadd.f32 %v117, %v210
    %212 = vmatmul.f32.gmra.mxu0 %v132
    %v213 = vpop.f32.mrf.mxu0
    %v214 = vadd.f32 %v117, %v213
    %215 = vmatmul.f32.gmra.mxu0 %v135
    %v216 = vpop.f32.mrf.mxu0
    %v217 = vadd.f32 %v117, %v216
    %218 = vmatmul.f32.gmra.mxu0 %v138
    %v219 = vpop.f32.mrf.mxu0
    %v220 = vadd.f32 %v117, %v219
    %221 = vmatmul.f32.gmra.mxu0 %v141
    %v222 = vpop.f32.mrf.mxu0
    %v223 = vadd.f32 %v117, %v222
    %224 = vmatmul.f32.gmra.mxu0 %v144
    %v225 = vpop.f32.mrf.mxu0
    %v226 = vadd.f32 %v117, %v225
    %227 = vmatmul.f32.gmra.mxu0 %v147
    %v228 = vpop.f32.mrf.mxu0
    %v229 = vadd.f32 %v117, %v228
    %230 = vdwg.mxu0
    %231 = vmatpush.msra.mxu0 0.0
    %232 = vmatpush.msra.mxu0 0.0
    %233 = vmatpush.msra.mxu0 0.0
    %234 = vmatpush.msra.mxu0 0.0
    %235 = vmatpush.msra.mxu0 0.0
    %236 = vmatpush.msra.mxu0 0.0
    %237 = vmatpush.msra.mxu0 0.0
    %238 = vmatpush.msra.mxu0 0.0
    %239 = vmatpush.msra.mxu0 0.0
    %240 = vmatpush.msra.mxu0 0.0
    %241 = vmatpush.msra.mxu0 0.0
    %242 = vmatpush.msra.mxu0 0.0
    %243 = vmatpush.msra.mxu0 %v112
    %244 = vmatpush.msra.mxu0 %v108
    %245 = vmatpush.msra.mxu0 %v104
    %246 = vmatpush.msra.mxu0 %v100
    %247 = vmatmul.f32.gmra.mxu0 %v126
    %v248 = vpop.f32.mrf.mxu0
    %v249 = vadd.f32 %v118, %v248
    %250 = vmatmul.f32.gmra.mxu0 %v129
    %v251 = vpop.f32.mrf.mxu0
    %v252 = vadd.f32 %v118, %v251
    %253 = vmatmul.f32.gmra.mxu0 %v132
    %v254 = vpop.f32.mrf.mxu0
    %v255 = vadd.f32 %v118, %v254
    %256 = vmatmul.f32.gmra.mxu0 %v135
    %v257 = vpop.f32.mrf.mxu0
    %v258 = vadd.f32 %v118, %v257
    %259 = vmatmul.f32.gmra.mxu0 %v138
    %v260 = vpop.f32.mrf.mxu0
    %v261 = vadd.f32 %v118, %v260
    %262 = vmatmul.f32.gmra.mxu0 %v141
    %v263 = vpop.f32.mrf.mxu0
    %v264 = vadd.f32 %v118, %v263
    %265 = vmatmul.f32.gmra.mxu0 %v144
    %v266 = vpop.f32.mrf.mxu0
    %v267 = vadd.f32 %v118, %v266
    %268 = vmatmul.f32.gmra.mxu0 %v147
    %v269 = vpop.f32.mrf.mxu0
    %v270 = vadd.f32 %v118, %v269
    %271 = vdwg.mxu0
    %272 = vmatpush.msra.mxu0 0.0
    %273 = vmatpush.msra.mxu0 0.0
    %274 = vmatpush.msra.mxu0 0.0
    %275 = vmatpush.msra.mxu0 0.0
    %276 = vmatpush.msra.mxu0 0.0
    %277 = vmatpush.msra.mxu0 0.0
    %278 = vmatpush.msra.mxu0 0.0
    %279 = vmatpush.msra.mxu0 0.0
    %280 = vmatpush.msra.mxu0 0.0
    %281 = vmatpush.msra.mxu0 0.0
    %282 = vmatpush.msra.mxu0 0.0
    %283 = vmatpush.msra.mxu0 0.0
    %284 = vmatpush.msra.mxu0 %v113
    %285 = vmatpush.msra.mxu0 %v109
    %286 = vmatpush.msra.mxu0 %v105
    %287 = vmatpush.msra.mxu0 %v101
    %288 = vmatmul.f32.gmra.mxu0 %v126
    %v289 = vpop.f32.mrf.mxu0
    %v290 = vadd.f32 %v119, %v289
    %291 = vmatmul.f32.gmra.mxu0 %v129
    %v292 = vpop.f32.mrf.mxu0
    %v293 = vadd.f32 %v119, %v292
    %294 = vmatmul.f32.gmra.mxu0 %v132
    %v295 = vpop.f32.mrf.mxu0
    %v296 = vadd.f32 %v119, %v295
    %297 = vmatmul.f32.gmra.mxu0 %v135
    %v298 = vpop.f32.mrf.mxu0
    %v299 = vadd.f32 %v119, %v298
    %300 = vmatmul.f32.gmra.mxu0 %v138
    %v301 = vpop.f32.mrf.mxu0
    %v302 = vadd.f32 %v119, %v301
    %303 = vmatmul.f32.gmra.mxu0 %v141
    %v304 = vpop.f32.mrf.mxu0
    %v305 = vadd.f32 %v119, %v304
    %306 = vmatmul.f32.gmra.mxu0 %v144
    %v307 = vpop.f32.mrf.mxu0
    %v308 = vadd.f32 %v119, %v307
    %309 = vmatmul.f32.gmra.mxu0 %v147
    %v310 = vpop.f32.mrf.mxu0
    %v311 = vadd.f32 %v119, %v310
    %312 = vdwg.mxu0
    %v313 = vld [vmem:[#allocation7] sm:$0xff]
    %v314 = vld [vmem:[#allocation7 + $0x8] sm:$0xff]
    %v315 = vld [vmem:[#allocation7 + $0x10] sm:$0xff]
    %v316 = vld [vmem:[#allocation7 + $0x18] sm:$0xff]
    %v317 = vld [vmem:[#allocation7 + $0x20] sm:$0xff]
    %v318 = vld [vmem:[#allocation7 + $0x28] sm:$0xff]
    %v319 = vld [vmem:[#allocation7 + $0x30] sm:$0xff]
    %v320 = vld [vmem:[#allocation7 + $0x38] sm:$0xff]
    %v321 = vld [vmem:[#allocation7 + $0x40] sm:$0xff]
    %v322 = vld [vmem:[#allocation7 + $0x48] sm:$0xff]
    %v323 = vld [vmem:[#allocation7 + $0x50] sm:$0xff]
    %v324 = vld [vmem:[#allocation7 + $0x58] sm:$0xff]
    %v325 = vld [vmem:[#allocation7 + $0x60] sm:$0xff]
    %v326 = vld [vmem:[#allocation7 + $0x68] sm:$0xff]
    %v327 = vld [vmem:[#allocation7 + $0x70] sm:$0xff]
    %v328 = vld [vmem:[#allocation7 + $0x78] sm:$0xff]
    %v329 = vld [vmem:[#allocation7 + $0x80] sm:$0xff]
    %v330 = vld [vmem:[#allocation7 + $0x88] sm:$0xff]
    %v331 = vld [vmem:[#allocation7 + $0x90] sm:$0xff]
    %v332 = vld [vmem:[#allocation7 + $0x98] sm:$0xff]
    %v333 = vld [vmem:[#allocation7 + $0xa0] sm:$0xff]
    %v334 = vld [vmem:[#allocation7 + $0xa8] sm:$0xff]
    %v335 = vld [vmem:[#allocation7 + $0xb0] sm:$0xff]
    %v336 = vld [vmem:[#allocation7 + $0xb8] sm:$0xff]
    %v337 = vld [vmem:[#allocation7 + $0xc0] sm:$0xff]
    %v338 = vld [vmem:[#allocation7 + $0xc8] sm:$0xff]
    %v339 = vld [vmem:[#allocation7 + $0xd0] sm:$0xff]
    %v340 = vld [vmem:[#allocation7 + $0xd8] sm:$0xff]
    %v341 = vld [vmem:[#allocation7 + $0xe0] sm:$0xff]
    %v342 = vld [vmem:[#allocation7 + $0xe8] sm:$0xff]
    %v343 = vld [vmem:[#allocation7 + $0xf0] sm:$0xff]
    %v344 = vld [vmem:[#allocation7 + $0xf8] sm:$0xff]
    %v345 = vld [vmem:[#allocation7 + $0x100] sm:$0xff]
    %v346 = vld [vmem:[#allocation7 + $0x108] sm:$0xff]
    %v347 = vld [vmem:[#allocation7 + $0x110] sm:$0xff]
    %v348 = vld [vmem:[#allocation7 + $0x118] sm:$0xff]
    %v349 = vld [vmem:[#allocation7 + $0x120] sm:$0xff]
    %v350 = vld [vmem:[#allocation7 + $0x128] sm:$0xff]
    %v351 = vld [vmem:[#allocation7 + $0x130] sm:$0xff]
    %v352 = vld [vmem:[#allocation7 + $0x138] sm:$0xff]
    %v353 = vld [vmem:[#allocation7 + $0x140] sm:$0xff]
    %v354 = vld [vmem:[#allocation7 + $0x148] sm:$0xff]
    %v355 = vld [vmem:[#allocation7 + $0x150] sm:$0xff]
    %v356 = vld [vmem:[#allocation7 + $0x158] sm:$0xff]
    %v357 = vld [vmem:[#allocation7 + $0x160] sm:$0xff]
    %v358 = vld [vmem:[#allocation7 + $0x168] sm:$0xff]
    %v359 = vld [vmem:[#allocation7 + $0x170] sm:$0xff]
    %v360 = vld [vmem:[#allocation7 + $0x178] sm:$0xff]
    %v361 = vld [vmem:[#allocation7 + $0x180] sm:$0xff]
    %v362 = vld [vmem:[#allocation7 + $0x188] sm:$0xff]
    %v363 = vld [vmem:[#allocation7 + $0x190] sm:$0xff]
    %v364 = vld [vmem:[#allocation7 + $0x198] sm:$0xff]
    %v365 = vld [vmem:[#allocation7 + $0x1a0] sm:$0xff]
    %v366 = vld [vmem:[#allocation7 + $0x1a8] sm:$0xff]
    %v367 = vld [vmem:[#allocation7 + $0x1b0] sm:$0xff]
    %v368 = vld [vmem:[#allocation7 + $0x1b8] sm:$0xff]
    %v369 = vld [vmem:[#allocation7 + $0x1c0] sm:$0xff]
    %v370 = vld [vmem:[#allocation7 + $0x1c8] sm:$0xff]
    %v371 = vld [vmem:[#allocation7 + $0x1d0] sm:$0xff]
    %v372 = vld [vmem:[#allocation7 + $0x1d8] sm:$0xff]
    %v373 = vld [vmem:[#allocation7 + $0x1e0] sm:$0xff]
    %v374 = vld [vmem:[#allocation7 + $0x1e8] sm:$0xff]
    %v375 = vld [vmem:[#allocation7 + $0x1f0] sm:$0xff]
    %v376 = vld [vmem:[#allocation7 + $0x1f8] sm:$0xff]
    %377 = vmatpush.msra.mxu0 %v373
    %378 = vmatpush.msra.mxu0 %v369
    %379 = vmatpush.msra.mxu0 %v365
    %380 = vmatpush.msra.mxu0 %v361
    %381 = vmatpush.msra.mxu0 %v357
    %382 = vmatpush.msra.mxu0 %v353
    %383 = vmatpush.msra.mxu0 %v349
    %384 = vmatpush.msra.mxu0 %v345
    %385 = vmatpush.msra.mxu0 %v341
    %386 = vmatpush.msra.mxu0 %v337
    %387 = vmatpush.msra.mxu0 %v333
    %388 = vmatpush.msra.mxu0 %v329
    %389 = vmatpush.msra.mxu0 %v325
    %390 = vmatpush.msra.mxu0 %v321
    %391 = vmatpush.msra.mxu0 %v317
    %392 = vmatpush.msra.mxu0 %v313
    %393 = vmatmul.f32.gmra.mxu0 0.0
    %v394 = vpop.f32.mrf.mxu0
    %v395 = vadd.f32 0.0, %v394
    %396 = vdwg.mxu0
    %397 = vmatpush.msra.mxu0 %v374
    %398 = vmatpush.msra.mxu0 %v370
    %399 = vmatpush.msra.mxu0 %v366
    %400 = vmatpush.msra.mxu0 %v362
    %401 = vmatpush.msra.mxu0 %v358
    %402 = vmatpush.msra.mxu0 %v354
    %403 = vmatpush.msra.mxu0 %v350
    %404 = vmatpush.msra.mxu0 %v346
    %405 = vmatpush.msra.mxu0 %v342
    %406 = vmatpush.msra.mxu0 %v338
    %407 = vmatpush.msra.mxu0 %v334
    %408 = vmatpush.msra.mxu0 %v330
    %409 = vmatpush.msra.mxu0 %v326
    %410 = vmatpush.msra.mxu0 %v322
    %411 = vmatpush.msra.mxu0 %v318
    %412 = vmatpush.msra.mxu0 %v314
    %413 = vmatmul.f32.gmra.mxu0 0.0
    %v414 = vpop.f32.mrf.mxu0
    %v415 = vadd.f32 0.0, %v414
    %416 = vdwg.mxu0
    %417 = vmatpush.msra.mxu0 %v375
    %418 = vmatpush.msra.mxu0 %v371
    %419 = vmatpush.msra.mxu0 %v367
    %420 = vmatpush.msra.mxu0 %v363
    %421 = vmatpush.msra.mxu0 %v359
    %422 = vmatpush.msra.mxu0 %v355
    %423 = vmatpush.msra.mxu0 %v351
    %424 = vmatpush.msra.mxu0 %v347
    %425 = vmatpush.msra.mxu0 %v343
    %426 = vmatpush.msra.mxu0 %v339
    %427 = vmatpush.msra.mxu0 %v335
    %428 = vmatpush.msra.mxu0 %v331
    %429 = vmatpush.msra.mxu0 %v327
    %430 = vmatpush.msra.mxu0 %v323
    %431 = vmatpush.msra.mxu0 %v319
    %432 = vmatpush.msra.mxu0 %v315
    %433 = vmatmul.f32.gmra.mxu0 0.0
    %v434 = vpop.f32.mrf.mxu0
    %v435 = vadd.f32 0.0, %v434
    %436 = vdwg.mxu0
    %437 = vmatpush.msra.mxu0 %v376
    %438 = vmatpush.msra.mxu0 %v372
    %439 = vmatpush.msra.mxu0 %v368
    %440 = vmatpush.msra.mxu0 %v364
    %441 = vmatpush.msra.mxu0 %v360
    %442 = vmatpush.msra.mxu0 %v356
    %443 = vmatpush.msra.mxu0 %v352
    %444 = vmatpush.msra.mxu0 %v348
    %445 = vmatpush.msra.mxu0 %v344
    %446 = vmatpush.msra.mxu0 %v340
    %447 = vmatpush.msra.mxu0 %v336
    %448 = vmatpush.msra.mxu0 %v332
    %449 = vmatpush.msra.mxu0 %v328
    %450 = vmatpush.msra.mxu0 %v324
    %451 = vmatpush.msra.mxu0 %v320
    %452 = vmatpush.msra.mxu0 %v316
    %453 = vmatmul.f32.gmra.mxu0 0.0
    %v454 = vpop.f32.mrf.mxu0
    %v455 = vadd.f32 0.0, %v454
    %456 = vdwg.mxu0
    %v457 = vadd.f32 %v167, %v395
    %v458 = vadd.f32 %v208, %v415
    %v459 = vadd.f32 %v249, %v435
    %v460 = vadd.f32 %v290, %v455
    %v461 = vmul.f32 %v457, 0.5
    %v462 = vtanh.pop %v461
    %v463 = vadd.f32 %v462, 1.0
    %v464 = vmul.f32 %v463, 0.5
    %v465 = vmul.f32 %v458, 0.5
    %v466 = vtanh.pop %v465
    %v467 = vadd.f32 %v466, 1.0
    %v468 = vmul.f32 %v467, 0.5
    %v469 = vtanh.pop %v459
    %v470 = vmul.f32 %v460, 0.5
    %v471 = vtanh.pop %v470
    %v472 = vadd.f32 %v471, 1.0
    %v473 = vmul.f32 %v472, 0.5
    %v474 = vmul.f32 %v468, 0.0
    %v475 = vmul.f32 %v464, %v469
    %v476 = vadd.f32 %v474, %v475
    %v477 = vtanh.pop %v476
    %v478 = vmul.f32 %v473, %v477
    %479 = vmatpush.msra.mxu0 %v373
    %480 = vmatpush.msra.mxu0 %v369
    %481 = vmatpush.msra.mxu0 %v365
    %482 = vmatpush.msra.mxu0 %v361
    %483 = vmatpush.msra.mxu0 %v357
    %484 = vmatpush.msra.mxu0 %v353
    %485 = vmatpush.msra.mxu0 %v349
    %486 = vmatpush.msra.mxu0 %v345
    %487 = vmatpush.msra.mxu0 %v341
    %488 = vmatpush.msra.mxu0 %v337
    %489 = vmatpush.msra.mxu0 %v333
    %490 = vmatpush.msra.mxu0 %v329
    %491 = vmatpush.msra.mxu0 %v325
    %492 = vmatpush.msra.mxu0 %v321
    %493 = vmatpush.msra.mxu0 %v317
    %494 = vmatpush.msra.mxu0 %v313
    %495 = vmatmul.f32.gmra.mxu0 %v478
    %v496 = vpop.f32.mrf.mxu0
    %v497 = vadd.f32 0.0, %v496
    %498 = vdwg.mxu0
    %499 = vmatpush.msra.mxu0 %v374
    %500 = vmatpush.msra.mxu0 %v370
    %501 = vmatpush.msra.mxu0 %v366
    %502 = vmatpush.msra.mxu0 %v362
    %503 = vmatpush.msra.mxu0 %v358
    %504 = vmatpush.msra.mxu0 %v354
    %505 = vmatpush.msra.mxu0 %v350
    %506 = vmatpush.msra.mxu0 %v346
    %507 = vmatpush.msra.mxu0 %v342
    %508 = vmatpush.msra.mxu0 %v338
    %509 = vmatpush.msra.mxu0 %v334
    %510 = vmatpush.msra.mxu0 %v330
    %511 = vmatpush.msra.mxu0 %v326
    %512 = vmatpush.msra.mxu0 %v322
    %513 = vmatpush.msra.mxu0 %v318
    %514 = vmatpush.msra.mxu0 %v314
    %515 = vmatmul.f32.gmra.mxu0 %v478
    %v516 = vpop.f32.mrf.mxu0
    %v517 = vadd.f32 0.0, %v516
    %518 = vdwg.mxu0
    %519 = vmatpush.msra.mxu0 %v375
    %520 = vmatpush.msra.mxu0 %v371
    %521 = vmatpush.msra.mxu0 %v367
    %522 = vmatpush.msra.mxu0 %v363
    %523 = vmatpush.msra.mxu0 %v359
    %524 = vmatpush.msra.mxu0 %v355
    %525 = vmatpush.msra.mxu0 %v351
    %526 = vmatpush.msra.mxu0 %v347
    %527 = vmatpush.msra.mxu0 %v343
    %528 = vmatpush.msra.mxu0 %v339
    %529 = vmatpush.msra.mxu0 %v335
    %530 = vmatpush.msra.mxu0 %v331
    %531 = vmatpush.msra.mxu0 %v327
    %532 = vmatpush.msra.mxu0 %v323
    %533 = vmatpush.msra.mxu0 %v319
    %534 = vmatpush.msra.mxu0 %v315
    %535 = vmatmul.f32.gmra.mxu0 %v478
    %v536 = vpop.f32.mrf.mxu0
    %v537 = vadd.f32 0.0, %v536
    %538 = vdwg.mxu0
    %539 = vmatpush.msra.mxu0 %v376
    %540 = vmatpush.msra.mxu0 %v372
    %541 = vmatpush.msra.mxu0 %v368
    %542 = vmatpush.msra.mxu0 %v364
    %543 = vmatpush.msra.mxu0 %v360
    %544 = vmatpush.msra.mxu0 %v356
    %545 = vmatpush.msra.mxu0 %v352
    %546 = vmatpush.msra.mxu0 %v348
    %547 = vmatpush.msra.mxu0 %v344
    %548 = vmatpush.msra.mxu0 %v340
    %549 = vmatpush.msra.mxu0 %v336
    %550 = vmatpush.msra.mxu0 %v332
    %551 = vmatpush.msra.mxu0 %v328
    %552 = vmatpush.msra.mxu0 %v324
    %553 = vmatpush.msra.mxu0 %v320
    %554 = vmatpush.msra.mxu0 %v316
    %555 = vmatmul.f32.gmra.mxu0 %v478
    %v556 = vpop.f32.mrf.mxu0
    %v557 = vadd.f32 0.0, %v556
    %558 = vdwg.mxu0
    %v559 = vadd.f32 %v170, %v497
    %v560 = vadd.f32 %v211, %v517
    %v561 = vadd.f32 %v252, %v537
    %v562 = vadd.f32 %v293, %v557
    %v563 = vmul.f32 %v559, 0.5
    %v564 = vtanh.pop %v563
    %v565 = vadd.f32 %v564, 1.0
    %v566 = vmul.f32 %v565, 0.5
    %v567 = vmul.f32 %v560, 0.5
    %v568 = vtanh.pop %v567
    %v569 = vadd.f32 %v568, 1.0
    %v570 = vmul.f32 %v569, 0.5
    %v571 = vtanh.pop %v561
    %v572 = vmul.f32 %v562, 0.5
    %v573 = vtanh.pop %v572
    %v574 = vadd.f32 %v573, 1.0
    %v575 = vmul.f32 %v574, 0.5
    %v576 = vmul.f32 %v570, %v476
    %v577 = vmul.f32 %v566, %v571
    %v578 = vadd.f32 %v576, %v577
    %v579 = vtanh.pop %v578
    %v580 = vmul.f32 %v575, %v579
    %581 = vmatpush.msra.mxu0 %v373
    %582 = vmatpush.msra.mxu0 %v369
    %583 = vmatpush.msra.mxu0 %v365
    %584 = vmatpush.msra.mxu0 %v361
    %585 = vmatpush.msra.mxu0 %v357
    %586 = vmatpush.msra.mxu0 %v353
    %587 = vmatpush.msra.mxu0 %v349
    %588 = vmatpush.msra.mxu0 %v345
    %589 = vmatpush.msra.mxu0 %v341
    %590 = vmatpush.msra.mxu0 %v337
    %591 = vmatpush.msra.mxu0 %v333
    %592 = vmatpush.msra.mxu0 %v329
    %593 = vmatpush.msra.mxu0 %v325
    %594 = vmatpush.msra.mxu0 %v321
    %595 = vmatpush.msra.mxu0 %v317
    %596 = vmatpush.msra.mxu0 %v313
    %597 = vmatmul.f32.gmra.mxu0 %v580
    %v598 = vpop.f32.mrf.mxu0
    %v599 = vadd.f32 0.0, %v598
    %600 = vdwg.mxu0
    %601 = vmatpush.msra.mxu0 %v374
    %602 = vmatpush.msra.mxu0 %v370
    %603 = vmatpush.msra.mxu0 %v366
    %604 = vmatpush.msra.mxu0 %v362
    %605 = vmatpush.msra.mxu0 %v358
    %606 = vmatpush.msra.mxu0 %v354
    %607 = vmatpush.msra.mxu0 %v350
    %608 = vmatpush.msra.mxu0 %v346
    %609 = vmatpush.msra.mxu0 %v342
    %610 = vmatpush.msra.mxu0 %v338
    %611 = vmatpush.msra.mxu0 %v334
    %612 = vmatpush.msra.mxu0 %v330
    %613 = vmatpush.msra.mxu0 %v326
    %614 = vmatpush.msra.mxu0 %v322
    %615 = vmatpush.msra.mxu0 %v318
    %616 = vmatpush.msra.mxu0 %v314
    %617 = vmatmul.f32.gmra.mxu0 %v580
    %v618 = vpop.f32.mrf.mxu0
    %v619 = vadd.f32 0.0, %v618
    %620 = vdwg.mxu0
    %621 = vmatpush.msra.mxu0 %v375
    %622 = vmatpush.msra.mxu0 %v371
    %623 = vmatpush.msra.mxu0 %v367
    %624 = vmatpush.msra.mxu0 %v363
    %625 = vmatpush.msra.mxu0 %v359
    %626 = vmatpush.msra.mxu0 %v355
    %627 = vmatpush.msra.mxu0 %v351
    %628 = vmatpush.msra.mxu0 %v347
    %629 = vmatpush.msra.mxu0 %v343
    %630 = vmatpush.msra.mxu0 %v339
    %631 = vmatpush.msra.mxu0 %v335
    %632 = vmatpush.msra.mxu0 %v331
    %633 = vmatpush.msra.mxu0 %v327
    %634 = vmatpush.msra.mxu0 %v323
    %635 = vmatpush.msra.mxu0 %v319
    %636 = vmatpush.msra.mxu0 %v315
    %637 = vmatmul.f32.gmra.mxu0 %v580
    %v638 = vpop.f32.mrf.mxu0
    %v639 = vadd.f32 0.0, %v638
    %640 = vdwg.mxu0
    %641 = vmatpush.msra.mxu0 %v376
    %642 = vmatpush.msra.mxu0 %v372
    %643 = vmatpush.msra.mxu0 %v368
    %644 = vmatpush.msra.mxu0 %v364
    %645 = vmatpush.msra.mxu0 %v360
    %646 = vmatpush.msra.mxu0 %v356
    %647 = vmatpush.msra.mxu0 %v352
    %648 = vmatpush.msra.mxu0 %v348
    %649 = vmatpush.msra.mxu0 %v344
    %650 = vmatpush.msra.mxu0 %v340
    %651 = vmatpush.msra.mxu0 %v336
    %652 = vmatpush.msra.mxu0 %v332
    %653 = vmatpush.msra.mxu0 %v328
    %654 = vmatpush.msra.mxu0 %v324
    %655 = vmatpush.msra.mxu0 %v320
    %656 = vmatpush.msra.mxu0 %v316
    %657 = vmatmul.f32.gmra.mxu0 %v580
    %v658 = vpop.f32.mrf.mxu0
    %v659 = vadd.f32 0.0, %v658
    %660 = vdwg.mxu0
    %v661 = vadd.f32 %v173, %v599
    %v662 = vadd.f32 %v214, %v619
    %v663 = vadd.f32 %v255, %v639
    %v664 = vadd.f32 %v296, %v659
    %v665 = vmul.f32 %v661, 0.5
    %v666 = vtanh.pop %v665
    %v667 = vadd.f32 %v666, 1.0
    %v668 = vmul.f32 %v667, 0.5
    %v669 = vmul.f32 %v662, 0.5
    %v670 = vtanh.pop %v669
    %v671 = vadd.f32 %v670, 1.0
    %v672 = vmul.f32 %v671, 0.5
    %v673 = vtanh.pop %v663
    %v674 = vmul.f32 %v664, 0.5
    %v675 = vtanh.pop %v674
    %v676 = vadd.f32 %v675, 1.0
    %v677 = vmul.f32 %v676, 0.5
    %v678 = vmul.f32 %v672, %v578
    %v679 = vmul.f32 %v668, %v673
    %v680 = vadd.f32 %v678, %v679
    %v681 = vtanh.pop %v680
    %v682 = vmul.f32 %v677, %v681
    %683 = vmatpush.msra.mxu0 %v373
    %684 = vmatpush.msra.mxu0 %v369
    %685 = vmatpush.msra.mxu0 %v365
    %686 = vmatpush.msra.mxu0 %v361
    %687 = vmatpush.msra.mxu0 %v357
    %688 = vmatpush.msra.mxu0 %v353
    %689 = vmatpush.msra.mxu0 %v349
    %690 = vmatpush.msra.mxu0 %v345
    %691 = vmatpush.msra.mxu0 %v341
    %692 = vmatpush.msra.mxu0 %v337
    %693 = vmatpush.msra.mxu0 %v333
    %694 = vmatpush.msra.mxu0 %v329
    %695 = vmatpush.msra.mxu0 %v325
    %696 = vmatpush.msra.mxu0 %v321
    %697 = vmatpush.msra.mxu0 %v317
    %698 = vmatpush.msra.mxu0 %v313
    %699 = vmatmul.f32.gmra.mxu0 %v682
    %v700 = vpop.f32.mrf.mxu0
    %v701 = vadd.f32 0.0, %v700
    %702 = vdwg.mxu0
    %703 = vmatpush.msra.mxu0 %v374
    %704 = vmatpush.msra.mxu0 %v370
    %705 = vmatpush.msra.mxu0 %v366
    %706 = vmatpush.msra.mxu0 %v362
    %707 = vmatpush.msra.mxu0 %v358
    %708 = vmatpush.msra.mxu0 %v354
    %709 = vmatpush.msra.mxu0 %v350
    %710 = vmatpush.msra.mxu0 %v346
    %711 = vmatpush.msra.mxu0 %v342
    %712 = vmatpush.msra.mxu0 %v338
    %713 = vmatpush.msra.mxu0 %v334
    %714 = vmatpush.msra.mxu0 %v330
    %715 = vmatpush.msra.mxu0 %v326
    %716 = vmatpush.msra.mxu0 %v322
    %717 = vmatpush.msra.mxu0 %v318
    %718 = vmatpush.msra.mxu0 %v314
    %719 = vmatmul.f32.gmra.mxu0 %v682
    %v720 = vpop.f32.mrf.mxu0
    %v721 = vadd.f32 0.0, %v720
    %722 = vdwg.mxu0
    %723 = vmatpush.msra.mxu0 %v375
    %724 = vmatpush.msra.mxu0 %v371
    %725 = vmatpush.msra.mxu0 %v367
    %726 = vmatpush.msra.mxu0 %v363
    %727 = vmatpush.msra.mxu0 %v359
    %728 = vmatpush.msra.mxu0 %v355
    %729 = vmatpush.msra.mxu0 %v351
    %730 = vmatpush.msra.mxu0 %v347
    %731 = vmatpush.msra.mxu0 %v343
    %732 = vmatpush.msra.mxu0 %v339
    %733 = vmatpush.msra.mxu0 %v335
    %734 = vmatpush.msra.mxu0 %v331
    %735 = vmatpush.msra.mxu0 %v327
    %736 = vmatpush.msra.mxu0 %v323
    %737 = vmatpush.msra.mxu0 %v319
    %738 = vmatpush.msra.mxu0 %v315
    %739 = vmatmul.f32.gmra.mxu0 %v682
    %v740 = vpop.f32.mrf.mxu0
    %v741 = vadd.f32 0.0, %v740
    %742 = vdwg.mxu0
    %743 = vmatpush.msra.mxu0 %v376
    %744 = vmatpush.msra.mxu0 %v372
    %745 = vmatpush.msra.mxu0 %v368
    %746 = vmatpush.msra.mxu0 %v364
    %747 = vmatpush.msra.mxu0 %v360
    %748 = vmatpush.msra.mxu0 %v356
    %749 = vmatpush.msra.mxu0 %v352
    %750 = vmatpush.msra.mxu0 %v348
    %751 = vmatpush.msra.mxu0 %v344
    %752 = vmatpush.msra.mxu0 %v340
    %753 = vmatpush.msra.mxu0 %v336
    %754 = vmatpush.msra.mxu0 %v332
    %755 = vmatpush.msra.mxu0 %v328
    %756 = vmatpush.msra.mxu0 %v324
    %757 = vmatpush.msra.mxu0 %v320
    %758 = vmatpush.msra.mxu0 %v316
    %759 = vmatmul.f32.gmra.mxu0 %v682
    %v760 = vpop.f32.mrf.mxu0
    %v761 = vadd.f32 0.0, %v760
    %762 = vdwg.mxu0
    %v763 = vadd.f32 %v176, %v701
    %v764 = vadd.f32 %v217, %v721
    %v765 = vadd.f32 %v258, %v741
    %v766 = vadd.f32 %v299, %v761
    %v767 = vmul.f32 %v763, 0.5
    %v768 = vtanh.pop %v767
    %v769 = vadd.f32 %v768, 1.0
    %v770 = vmul.f32 %v769, 0.5
    %v771 = vmul.f32 %v764, 0.5
    %v772 = vtanh.pop %v771
    %v773 = vadd.f32 %v772, 1.0
    %v774 = vmul.f32 %v773, 0.5
    %v775 = vtanh.pop %v765
    %v776 = vmul.f32 %v766, 0.5
    %v777 = vtanh.pop %v776
    %v778 = vadd.f32 %v777, 1.0
    %v779 = vmul.f32 %v778, 0.5
    %v780 = vmul.f32 %v774, %v680
    %v781 = vmul.f32 %v770, %v775
    %v782 = vadd.f32 %v780, %v781
    %v783 = vtanh.pop %v782
    %v784 = vmul.f32 %v779, %v783
    %785 = vmatpush.msra.mxu0 %v373
    %786 = vmatpush.msra.mxu0 %v369
    %787 = vmatpush.msra.mxu0 %v365
    %788 = vmatpush.msra.mxu0 %v361
    %789 = vmatpush.msra.mxu0 %v357
    %790 = vmatpush.msra.mxu0 %v353
    %791 = vmatpush.msra.mxu0 %v349
    %792 = vmatpush.msra.mxu0 %v345
    %793 = vmatpush.msra.mxu0 %v341
    %794 = vmatpush.msra.mxu0 %v337
    %795 = vmatpush.msra.mxu0 %v333
    %796 = vmatpush.msra.mxu0 %v329
    %797 = vmatpush.msra.mxu0 %v325
    %798 = vmatpush.msra.mxu0 %v321
    %799 = vmatpush.msra.mxu0 %v317
    %800 = vmatpush.msra.mxu0 %v313
    %801 = vmatmul.f32.gmra.mxu0 %v784
    %v802 = vpop.f32.mrf.mxu0
    %v803 = vadd.f32 0.0, %v802
    %804 = vdwg.mxu0
    %805 = vmatpush.msra.mxu0 %v374
    %806 = vmatpush.msra.mxu0 %v370
    %807 = vmatpush.msra.mxu0 %v366
    %808 = vmatpush.msra.mxu0 %v362
    %809 = vmatpush.msra.mxu0 %v358
    %810 = vmatpush.msra.mxu0 %v354
    %811 = vmatpush.msra.mxu0 %v350
    %812 = vmatpush.msra.mxu0 %v346
    %813 = vmatpush.msra.mxu0 %v342
    %814 = vmatpush.msra.mxu0 %v338
    %815 = vmatpush.msra.mxu0 %v334
    %816 = vmatpush.msra.mxu0 %v330
    %817 = vmatpush.msra.mxu0 %v326
    %818 = vmatpush.msra.mxu0 %v322
    %819 = vmatpush.msra.mxu0 %v318
    %820 = vmatpush.msra.mxu0 %v314
    %821 = vmatmul.f32.gmra.mxu0 %v784
    %v822 = vpop.f32.mrf.mxu0
    %v823 = vadd.f32 0.0, %v822
    %824 = vdwg.mxu0
    %825 = vmatpush.msra.mxu0 %v375
    %826 = vmatpush.msra.mxu0 %v371
    %827 = vmatpush.msra.mxu0 %v367
    %828 = vmatpush.msra.mxu0 %v363
    %829 = vmatpush.msra.mxu0 %v359
    %830 = vmatpush.msra.mxu0 %v355
    %831 = vmatpush.msra.mxu0 %v351
    %832 = vmatpush.msra.mxu0 %v347
    %833 = vmatpush.msra.mxu0 %v343
    %834 = vmatpush.msra.mxu0 %v339
    %835 = vmatpush.msra.mxu0 %v335
    %836 = vmatpush.msra.mxu0 %v331
    %837 = vmatpush.msra.mxu0 %v327
    %838 = vmatpush.msra.mxu0 %v323
    %839 = vmatpush.msra.mxu0 %v319
    %840 = vmatpush.msra.mxu0 %v315
    %841 = vmatmul.f32.gmra.mxu0 %v784
    %v842 = vpop.f32.mrf.mxu0
    %v843 = vadd.f32 0.0, %v842
    %844 = vdwg.mxu0
    %845 = vmatpush.msra.mxu0 %v376
    %846 = vmatpush.msra.mxu0 %v372
    %847 = vmatpush.msra.mxu0 %v368
    %848 = vmatpush.msra.mxu0 %v364
    %849 = vmatpush.msra.mxu0 %v360
    %850 = vmatpush.msra.mxu0 %v356
    %851 = vmatpush.msra.mxu0 %v352
    %852 = vmatpush.msra.mxu0 %v348
    %853 = vmatpush.msra.mxu0 %v344
    %854 = vmatpush.msra.mxu0 %v340
    %855 = vmatpush.msra.mxu0 %v336
    %856 = vmatpush.msra.mxu0 %v332
    %857 = vmatpush.msra.mxu0 %v328
    %858 = vmatpush.msra.mxu0 %v324
    %859 = vmatpush.msra.mxu0 %v320
    %860 = vmatpush.msra.mxu0 %v316
    %861 = vmatmul.f32.gmra.mxu0 %v784
    %v862 = vpop.f32.mrf.mxu0
    %v863 = vadd.f32 0.0, %v862
    %864 = vdwg.mxu0
    %v865 = vadd.f32 %v179, %v803
    %v866 = vadd.f32 %v220, %v823
    %v867 = vadd.f32 %v261, %v843
    %v868 = vadd.f32 %v302, %v863
    %v869 = vmul.f32 %v865, 0.5
    %v870 = vtanh.pop %v869
    %v871 = vadd.f32 %v870, 1.0
    %v872 = vmul.f32 %v871, 0.5
    %v873 = vmul.f32 %v866, 0.5
    %v874 = vtanh.pop %v873
    %v875 = vadd.f32 %v874, 1.0
    %v876 = vmul.f32 %v875, 0.5
    %v877 = vtanh.pop %v867
    %v878 = vmul.f32 %v868, 0.5
    %v879 = vtanh.pop %v878
    %v880 = vadd.f32 %v879, 1.0
    %v881 = vmul.f32 %v880, 0.5
    %v882 = vmul.f32 %v876, %v782
    %v883 = vmul.f32 %v872, %v877
    %v884 = vadd.f32 %v882, %v883
    %v885 = vtanh.pop %v884
    %v886 = vmul.f32 %v881, %v885
    %887 = vmatpush.msra.mxu0 %v373
    %888 = vmatpush.msra.mxu0 %v369
    %889 = vmatpush.msra.mxu0 %v365
    %890 = vmatpush.msra.mxu0 %v361
    %891 = vmatpush.msra.mxu0 %v357
    %892 = vmatpush.msra.mxu0 %v353
    %893 = vmatpush.msra.mxu0 %v349
    %894 = vmatpush.msra.mxu0 %v345
    %895 = vmatpush.msra.mxu0 %v341
    %896 = vmatpush.msra.mxu0 %v337
    %897 = vmatpush.msra.mxu0 %v333
    %898 = vmatpush.msra.mxu0 %v329
    %899 = vmatpush.msra.mxu0 %v325
    %900 = vmatpush.msra.mxu0 %v321
    %901 = vmatpush.msra.mxu0 %v317
    %902 = vmatpush.msra.mxu0 %v313
    %903 = vmatmul.f32.gmra.mxu0 %v886
    %v904 = vpop.f32.mrf.mxu0
    %v905 = vadd.f32 0.0, %v904
    %906 = vdwg.mxu0
    %907 = vmatpush.msra.mxu0 %v374
    %908 = vmatpush.msra.mxu0 %v370
    %909 = vmatpush.msra.mxu0 %v366
    %910 = vmatpush.msra.mxu0 %v362
    %911 = vmatpush.msra.mxu0 %v358
    %912 = vmatpush.msra.mxu0 %v354
    %913 = vmatpush.msra.mxu0 %v350
    %914 = vmatpush.msra.mxu0 %v346
    %915 = vmatpush.msra.mxu0 %v342
    %916 = vmatpush.msra.mxu0 %v338
    %917 = vmatpush.msra.mxu0 %v334
    %918 = vmatpush.msra.mxu0 %v330
    %919 = vmatpush.msra.mxu0 %v326
    %920 = vmatpush.msra.mxu0 %v322
    %921 = vmatpush.msra.mxu0 %v318
    %922 = vmatpush.msra.mxu0 %v314
    %923 = vmatmul.f32.gmra.mxu0 %v886
    %v924 = vpop.f32.mrf.mxu0
    %v925 = vadd.f32 0.0, %v924
    %926 = vdwg.mxu0
    %927 = vmatpush.msra.mxu0 %v375
    %928 = vmatpush.msra.mxu0 %v371
    %929 = vmatpush.msra.mxu0 %v367
    %930 = vmatpush.msra.mxu0 %v363
    %931 = vmatpush.msra.mxu0 %v359
    %932 = vmatpush.msra.mxu0 %v355
    %933 = vmatpush.msra.mxu0 %v351
    %934 = vmatpush.msra.mxu0 %v347
    %935 = vmatpush.msra.mxu0 %v343
    %936 = vmatpush.msra.mxu0 %v339
    %937 = vmatpush.msra.mxu0 %v335
    %938 = vmatpush.msra.mxu0 %v331
    %939 = vmatpush.msra.mxu0 %v327
    %940 = vmatpush.msra.mxu0 %v323
    %941 = vmatpush.msra.mxu0 %v319
    %942 = vmatpush.msra.mxu0 %v315
    %943 = vmatmul.f32.gmra.mxu0 %v886
    %v944 = vpop.f32.mrf.mxu0
    %v945 = vadd.f32 0.0, %v944
    %946 = vdwg.mxu0
    %947 = vmatpush.msra.mxu0 %v376
    %948 = vmatpush.msra.mxu0 %v372
    %949 = vmatpush.msra.mxu0 %v368
    %950 = vmatpush.msra.mxu0 %v364
    %951 = vmatpush.msra.mxu0 %v360
    %952 = vmatpush.msra.mxu0 %v356
    %953 = vmatpush.msra.mxu0 %v352
    %954 = vmatpush.msra.mxu0 %v348
    %955 = vmatpush.msra.mxu0 %v344
    %956 = vmatpush.msra.mxu0 %v340
    %957 = vmatpush.msra.mxu0 %v336
    %958 = vmatpush.msra.mxu0 %v332
    %959 = vmatpush.msra.mxu0 %v328
    %960 = vmatpush.msra.mxu0 %v324
    %961 = vmatpush.msra.mxu0 %v320
    %962 = vmatpush.msra.mxu0 %v316
    %963 = vmatmul.f32.gmra.mxu0 %v886
    %v964 = vpop.f32.mrf.mxu0
    %v965 = vadd.f32 0.0, %v964
    %966 = vdwg.mxu0
    %v967 = vadd.f32 %v182, %v905
    %v968 = vadd.f32 %v223, %v925
    %v969 = vadd.f32 %v264, %v945
    %v970 = vadd.f32 %v305, %v965
    %v971 = vmul.f32 %v967, 0.5
    %v972 = vtanh.pop %v971
    %v973 = vadd.f32 %v972, 1.0
    %v974 = vmul.f32 %v973, 0.5
    %v975 = vmul.f32 %v968, 0.5
    %v976 = vtanh.pop %v975
    %v977 = vadd.f32 %v976, 1.0
    %v978 = vmul.f32 %v977, 0.5
    %v979 = vtanh.pop %v969
    %v980 = vmul.f32 %v970, 0.5
    %v981 = vtanh.pop %v980
    %v982 = vadd.f32 %v981, 1.0
    %v983 = vmul.f32 %v982, 0.5
    %v984 = vmul.f32 %v978, %v884
    %v985 = vmul.f32 %v974, %v979
    %v986 = vadd.f32 %v984, %v985
    %v987 = vtanh.pop %v986
    %v988 = vmul.f32 %v983, %v987
    %989 = vmatpush.msra.mxu0 %v373
    %990 = vmatpush.msra.mxu0 %v369
    %991 = vmatpush.msra.mxu0 %v365
    %992 = vmatpush.msra.mxu0 %v361
    %993 = vmatpush.msra.mxu0 %v357
    %994 = vmatpush.msra.mxu0 %v353
    %995 = vmatpush.msra.mxu0 %v349
    %996 = vmatpush.msra.mxu0 %v345
    %997 = vmatpush.msra.mxu0 %v341
    %998 = vmatpush.msra.mxu0 %v337
    %999 = vmatpush.msra.mxu0 %v333
    %1000 = vmatpush.msra.mxu0 %v329
    %1001 = vmatpush.msra.mxu0 %v325
    %1002 = vmatpush.msra.mxu0 %v321
    %1003 = vmatpush.msra.mxu0 %v317
    %1004 = vmatpush.msra.mxu0 %v313
    %1005 = vmatmul.f32.gmra.mxu0 %v988
    %v1006 = vpop.f32.mrf.mxu0
    %v1007 = vadd.f32 0.0, %v1006
    %1008 = vdwg.mxu0
    %1009 = vmatpush.msra.mxu0 %v374
    %1010 = vmatpush.msra.mxu0 %v370
    %1011 = vmatpush.msra.mxu0 %v366
    %1012 = vmatpush.msra.mxu0 %v362
    %1013 = vmatpush.msra.mxu0 %v358
    %1014 = vmatpush.msra.mxu0 %v354
    %1015 = vmatpush.msra.mxu0 %v350
    %1016 = vmatpush.msra.mxu0 %v346
    %1017 = vmatpush.msra.mxu0 %v342
    %1018 = vmatpush.msra.mxu0 %v338
    %1019 = vmatpush.msra.mxu0 %v334
    %1020 = vmatpush.msra.mxu0 %v330
    %1021 = vmatpush.msra.mxu0 %v326
    %1022 = vmatpush.msra.mxu0 %v322
    %1023 = vmatpush.msra.mxu0 %v318
    %1024 = vmatpush.msra.mxu0 %v314
    %1025 = vmatmul.f32.gmra.mxu0 %v988
    %v1026 = vpop.f32.mrf.mxu0
    %v1027 = vadd.f32 0.0, %v1026
    %1028 = vdwg.mxu0
    %1029 = vmatpush.msra.mxu0 %v375
    %1030 = vmatpush.msra.mxu0 %v371
    %1031 = vmatpush.msra.mxu0 %v367
    %1032 = vmatpush.msra.mxu0 %v363
    %1033 = vmatpush.msra.mxu0 %v359
    %1034 = vmatpush.msra.mxu0 %v355
    %1035 = vmatpush.msra.mxu0 %v351
    %1036 = vmatpush.msra.mxu0 %v347
    %1037 = vmatpush.msra.mxu0 %v343
    %1038 = vmatpush.msra.mxu0 %v339
    %1039 = vmatpush.msra.mxu0 %v335
    %1040 = vmatpush.msra.mxu0 %v331
    %1041 = vmatpush.msra.mxu0 %v327
    %1042 = vmatpush.msra.mxu0 %v323
    %1043 = vmatpush.msra.mxu0 %v319
    %1044 = vmatpush.msra.mxu0 %v315
    %1045 = vmatmul.f32.gmra.mxu0 %v988
    %v1046 = vpop.f32.mrf.mxu0
    %v1047 = vadd.f32 0.0, %v1046
    %1048 = vdwg.mxu0
    %1049 = vmatpush.msra.mxu0 %v376
    %1050 = vmatpush.msra.mxu0 %v372
    %1051 = vmatpush.msra.mxu0 %v368
    %1052 = vmatpush.msra.mxu0 %v364
    %1053 = vmatpush.msra.mxu0 %v360
    %1054 = vmatpush.msra.mxu0 %v356
    %1055 = vmatpush.msra.mxu0 %v352
    %1056 = vmatpush.msra.mxu0 %v348
    %1057 = vmatpush.msra.mxu0 %v344
    %1058 = vmatpush.msra.mxu0 %v340
    %1059 = vmatpush.msra.mxu0 %v336
    %1060 = vmatpush.msra.mxu0 %v332
    %1061 = vmatpush.msra.mxu0 %v328
    %1062 = vmatpush.msra.mxu0 %v324
    %1063 = vmatpush.msra.mxu0 %v320
    %1064 = vmatpush.msra.mxu0 %v316
    %1065 = vmatmul.f32.gmra.mxu0 %v988
    %v1066 = vpop.f32.mrf.mxu0
    %v1067 = vadd.f32 0.0, %v1066
    %1068 = vdwg.mxu0
    %v1069 = vadd.f32 %v185, %v1007
    %v1070 = vadd.f32 %v226, %v1027
    %v1071 = vadd.f32 %v267, %v1047
    %v1072 = vadd.f32 %v308, %v1067
    %v1073 = vmul.f32 %v1069, 0.5
    %v1074 = vtanh.pop %v1073
    %v1075 = vadd.f32 %v1074, 1.0
    %v1076 = vmul.f32 %v1075, 0.5
    %v1077 = vmul.f32 %v1070, 0.5
    %v1078 = vtanh.pop %v1077
    %v1079 = vadd.f32 %v1078, 1.0
    %v1080 = vmul.f32 %v1079, 0.5
    %v1081 = vtanh.pop %v1071
    %v1082 = vmul.f32 %v1072, 0.5
    %v1083 = vtanh.pop %v1082
    %v1084 = vadd.f32 %v1083, 1.0
    %v1085 = vmul.f32 %v1084, 0.5
    %v1086 = vmul.f32 %v1080, %v986
    %v1087 = vmul.f32 %v1076, %v1081
    %v1088 = vadd.f32 %v1086, %v1087
    %v1089 = vtanh.pop %v1088
    %v1090 = vmul.f32 %v1085, %v1089
    %1091 = vmatpush.msra.mxu0 %v373
    %1092 = vmatpush.msra.mxu0 %v369
    %1093 = vmatpush.msra.mxu0 %v365
    %1094 = vmatpush.msra.mxu0 %v361
    %1095 = vmatpush.msra.mxu0 %v357
    %1096 = vmatpush.msra.mxu0 %v353
    %1097 = vmatpush.msra.mxu0 %v349
    %1098 = vmatpush.msra.mxu0 %v345
    %1099 = vmatpush.msra.mxu0 %v341
    %1100 = vmatpush.msra.mxu0 %v337
    %1101 = vmatpush.msra.mxu0 %v333
    %1102 = vmatpush.msra.mxu0 %v329
    %1103 = vmatpush.msra.mxu0 %v325
    %1104 = vmatpush.msra.mxu0 %v321
    %1105 = vmatpush.msra.mxu0 %v317
    %1106 = vmatpush.msra.mxu0 %v313
    %1107 = vmatmul.f32.gmra.mxu0 %v1090
    %v1108 = vpop.f32.mrf.mxu0
    %v1109 = vadd.f32 0.0, %v1108
    %1110 = vdwg.mxu0
    %1111 = vmatpush.msra.mxu0 %v374
    %1112 = vmatpush.msra.mxu0 %v370
    %1113 = vmatpush.msra.mxu0 %v366
    %1114 = vmatpush.msra.mxu0 %v362
    %1115 = vmatpush.msra.mxu0 %v358
    %1116 = vmatpush.msra.mxu0 %v354
    %1117 = vmatpush.msra.mxu0 %v350
    %1118 = vmatpush.msra.mxu0 %v346
    %1119 = vmatpush.msra.mxu0 %v342
    %1120 = vmatpush.msra.mxu0 %v338
    %1121 = vmatpush.msra.mxu0 %v334
    %1122 = vmatpush.msra.mxu0 %v330
    %1123 = vmatpush.msra.mxu0 %v326
    %1124 = vmatpush.msra.mxu0 %v322
    %1125 = vmatpush.msra.mxu0 %v318
    %1126 = vmatpush.msra.mxu0 %v314
    %1127 = vmatmul.f32.gmra.mxu0 %v1090
    %v1128 = vpop.f32.mrf.mxu0
    %v1129 = vadd.f32 0.0, %v1128
    %1130 = vdwg.mxu0
    %1131 = vmatpush.msra.mxu0 %v375
    %1132 = vmatpush.msra.mxu0 %v371
    %1133 = vmatpush.msra.mxu0 %v367
    %1134 = vmatpush.msra.mxu0 %v363
    %1135 = vmatpush.msra.mxu0 %v359
    %1136 = vmatpush.msra.mxu0 %v355
    %1137 = vmatpush.msra.mxu0 %v351
    %1138 = vmatpush.msra.mxu0 %v347
    %1139 = vmatpush.msra.mxu0 %v343
    %1140 = vmatpush.msra.mxu0 %v339
    %1141 = vmatpush.msra.mxu0 %v335
    %1142 = vmatpush.msra.mxu0 %v331
    %1143 = vmatpush.msra.mxu0 %v327
    %1144 = vmatpush.msra.mxu0 %v323
    %1145 = vmatpush.msra.mxu0 %v319
    %1146 = vmatpush.msra.mxu0 %v315
    %1147 = vmatmul.f32.gmra.mxu0 %v1090
    %v1148 = vpop.f32.mrf.mxu0
    %v1149 = vadd.f32 0.0, %v1148
    %1150 = vdwg.mxu0
    %1151 = vmatpush.msra.mxu0 %v376
    %1152 = vmatpush.msra.mxu0 %v372
    %1153 = vmatpush.msra.mxu0 %v368
    %1154 = vmatpush.msra.mxu0 %v364
    %1155 = vmatpush.msra.mxu0 %v360
    %1156 = vmatpush.msra.mxu0 %v356
    %1157 = vmatpush.msra.mxu0 %v352
    %1158 = vmatpush.msra.mxu0 %v348
    %1159 = vmatpush.msra.mxu0 %v344
    %1160 = vmatpush.msra.mxu0 %v340
    %1161 = vmatpush.msra.mxu0 %v336
    %1162 = vmatpush.msra.mxu0 %v332
    %1163 = vmatpush.msra.mxu0 %v328
    %1164 = vmatpush.msra.mxu0 %v324
    %1165 = vmatpush.msra.mxu0 %v320
    %1166 = vmatpush.msra.mxu0 %v316
    %1167 = vmatmul.f32.gmra.mxu0 %v1090
    %v1168 = vpop.f32.mrf.mxu0
    %v1169 = vadd.f32 0.0, %v1168
    %1170 = vdwg.mxu0
    %v1171 = vadd.f32 %v188, %v1109
    %v1172 = vadd.f32 %v229, %v1129
    %v1173 = vadd.f32 %v270, %v1149
    %v1174 = vadd.f32 %v311, %v1169
    %v1175 = vmul.f32 %v1171, 0.5
    %v1176 = vtanh.pop %v1175
    %v1177 = vadd.f32 %v1176, 1.0
    %v1178 = vmul.f32 %v1177, 0.5
    %v1179 = vmul.f32 %v1172, 0.5
    %v1180 = vtanh.pop %v1179
    %v1181 = vadd.f32 %v1180, 1.0
    %v1182 = vmul.f32 %v1181, 0.5
    %v1183 = vtanh.pop %v1173
    %v1184 = vmul.f32 %v1174, 0.5
    %v1185 = vtanh.pop %v1184
    %v1186 = vadd.f32 %v1185, 1.0
    %v1187 = vmul.f32 %v1186, 0.5
    %v1188 = vmul.f32 %v1182, %v1088
    %v1189 = vmul.f32 %v1178, %v1183
    %v1190 = vadd.f32 %v1188, %v1189
    %v1191 = vtanh.pop %v1190
    %v1192 = vmul.f32 %v1187, %v1191
    %v1193 = vld [vmem:[#allocation5] sm:$0xff]
    %v1194 = vld [vmem:[#allocation5 + $0x8] sm:$0xff]
    %v1195 = vld [vmem:[#allocation5 + $0x10] sm:$0xff]
    %v1196 = vld [vmem:[#allocation5 + $0x18] sm:$0xff]
    %v1197 = vld [vmem:[#allocation5 + $0x20] sm:$0xff]
    %v1198 = vld [vmem:[#allocation5 + $0x28] sm:$0xff]
    %v1199 = vld [vmem:[#allocation5 + $0x30] sm:$0xff]
    %v1200 = vld [vmem:[#allocation5 + $0x38] sm:$0xff]
    %v1201 = vld [vmem:[#allocation5 + $0x40] sm:$0xff]
    %v1202 = vld [vmem:[#allocation5 + $0x48] sm:$0xff]
    %v1203 = vld [vmem:[#allocation5 + $0x50] sm:$0xff]
    %v1204 = vld [vmem:[#allocation5 + $0x58] sm:$0xff]
    %v1205 = vld [vmem:[#allocation5 + $0x60] sm:$0xff]
    %v1206 = vld [vmem:[#allocation5 + $0x68] sm:$0xff]
    %v1207 = vld [vmem:[#allocation5 + $0x70] sm:$0xff]
    %v1208 = vld [vmem:[#allocation5 + $0x78] sm:$0xff]
    %v1209 = vld [vmem:[#allocation5 + $0x80] sm:$0xff]
    %v1210 = vld [vmem:[#allocation5 + $0x88] sm:$0xff]
    %v1211 = vld [vmem:[#allocation5 + $0x90] sm:$0xff]
    %v1212 = vld [vmem:[#allocation5 + $0x98] sm:$0xff]
    %v1213 = vld [vmem:[#allocation5 + $0xa0] sm:$0xff]
    %v1214 = vld [vmem:[#allocation5 + $0xa8] sm:$0xff]
    %v1215 = vld [vmem:[#allocation5 + $0xb0] sm:$0xff]
    %v1216 = vld [vmem:[#allocation5 + $0xb8] sm:$0xff]
    %v1217 = vld [vmem:[#allocation5 + $0xc0] sm:$0xff]
    %v1218 = vld [vmem:[#allocation5 + $0xc8] sm:$0xff]
    %v1219 = vld [vmem:[#allocation5 + $0xd0] sm:$0xff]
    %v1220 = vld [vmem:[#allocation5 + $0xd8] sm:$0xff]
    %v1221 = vld [vmem:[#allocation5 + $0xe0] sm:$0xff]
    %v1222 = vld [vmem:[#allocation5 + $0xe8] sm:$0xff]
    %v1223 = vld [vmem:[#allocation5 + $0xf0] sm:$0xff]
    %v1224 = vld [vmem:[#allocation5 + $0xf8] sm:$0xff]
    %v1225 = vld [vmem:[#allocation5 + $0x100] sm:$0xff]
    %v1226 = vld [vmem:[#allocation5 + $0x108] sm:$0xff]
    %v1227 = vld [vmem:[#allocation5 + $0x110] sm:$0xff]
    %v1228 = vld [vmem:[#allocation5 + $0x118] sm:$0xff]
    %v1229 = vld [vmem:[#allocation5 + $0x120] sm:$0xff]
    %v1230 = vld [vmem:[#allocation5 + $0x128] sm:$0xff]
    %v1231 = vld [vmem:[#allocation5 + $0x130] sm:$0xff]
    %v1232 = vld [vmem:[#allocation5 + $0x138] sm:$0xff]
    %v1233 = vld [vmem:[#allocation5 + $0x140] sm:$0xff]
    %v1234 = vld [vmem:[#allocation5 + $0x148] sm:$0xff]
    %v1235 = vld [vmem:[#allocation5 + $0x150] sm:$0xff]
    %v1236 = vld [vmem:[#allocation5 + $0x158] sm:$0xff]
    %v1237 = vld [vmem:[#allocation5 + $0x160] sm:$0xff]
    %v1238 = vld [vmem:[#allocation5 + $0x168] sm:$0xff]
    %v1239 = vld [vmem:[#allocation5 + $0x170] sm:$0xff]
    %v1240 = vld [vmem:[#allocation5 + $0x178] sm:$0xff]
    %v1241 = vld [vmem:[#allocation5 + $0x180] sm:$0xff]
    %v1242 = vld [vmem:[#allocation5 + $0x188] sm:$0xff]
    %v1243 = vld [vmem:[#allocation5 + $0x190] sm:$0xff]
    %v1244 = vld [vmem:[#allocation5 + $0x198] sm:$0xff]
    %v1245 = vld [vmem:[#allocation5 + $0x1a0] sm:$0xff]
    %v1246 = vld [vmem:[#allocation5 + $0x1a8] sm:$0xff]
    %v1247 = vld [vmem:[#allocation5 + $0x1b0] sm:$0xff]
    %v1248 = vld [vmem:[#allocation5 + $0x1b8] sm:$0xff]
    %v1249 = vld [vmem:[#allocation5 + $0x1c0] sm:$0xff]
    %v1250 = vld [vmem:[#allocation5 + $0x1c8] sm:$0xff]
    %v1251 = vld [vmem:[#allocation5 + $0x1d0] sm:$0xff]
    %v1252 = vld [vmem:[#allocation5 + $0x1d8] sm:$0xff]
    %v1253 = vld [vmem:[#allocation5 + $0x1e0] sm:$0xff]
    %v1254 = vld [vmem:[#allocation5 + $0x1e8] sm:$0xff]
    %v1255 = vld [vmem:[#allocation5 + $0x1f0] sm:$0xff]
    %v1256 = vld [vmem:[#allocation5 + $0x1f8] sm:$0xff]
    %s1257 = scalar_lea.vmem %s4, 4
    %v1258 = vld [vmem:[%s1257] sm:$0xf]
    %v1260 = vperm.slane %v1258, 0
    %v1261 = vperm.slane %v1258, 1
    %v1262 = vperm.slane %v1258, 2
    %v1263 = vperm.slane %v1258, 3
    %1268 = vmatpush.msra.mxu0 %v1253
    %1269 = vmatpush.msra.mxu0 %v1249
    %1270 = vmatpush.msra.mxu0 %v1245
    %1271 = vmatpush.msra.mxu0 %v1241
    %1272 = vmatpush.msra.mxu0 %v1237
    %1273 = vmatpush.msra.mxu0 %v1233
    %1274 = vmatpush.msra.mxu0 %v1229
    %1275 = vmatpush.msra.mxu0 %v1225
    %1276 = vmatpush.msra.mxu0 %v1221
    %1277 = vmatpush.msra.mxu0 %v1217
    %1278 = vmatpush.msra.mxu0 %v1213
    %1279 = vmatpush.msra.mxu0 %v1209
    %1280 = vmatpush.msra.mxu0 %v1205
    %1281 = vmatpush.msra.mxu0 %v1201
    %1282 = vmatpush.msra.mxu0 %v1197
    %1283 = vmatpush.msra.mxu0 %v1193
    %1284 = vmatmul.f32.gmra.mxu0 %v478
    %v1285 = vpop.f32.mrf.mxu0
    %v1286 = vadd.f32 %v1260, %v1285
    %1287 = vmatmul.f32.gmra.mxu0 %v580
    %v1288 = vpop.f32.mrf.mxu0
    %v1289 = vadd.f32 %v1260, %v1288
    %1290 = vmatmul.f32.gmra.mxu0 %v682
    %v1291 = vpop.f32.mrf.mxu0
    %v1292 = vadd.f32 %v1260, %v1291
    %1293 = vmatmul.f32.gmra.mxu0 %v784
    %v1294 = vpop.f32.mrf.mxu0
    %v1295 = vadd.f32 %v1260, %v1294
    %1296 = vmatmul.f32.gmra.mxu0 %v886
    %v1297 = vpop.f32.mrf.mxu0
    %v1298 = vadd.f32 %v1260, %v1297
    %1299 = vmatmul.f32.gmra.mxu0 %v988
    %v1300 = vpop.f32.mrf.mxu0
    %v1301 = vadd.f32 %v1260, %v1300
    %1302 = vmatmul.f32.gmra.mxu0 %v1090
    %v1303 = vpop.f32.mrf.mxu0
    %v1304 = vadd.f32 %v1260, %v1303
    %1305 = vmatmul.f32.gmra.mxu0 %v1192
    %v1306 = vpop.f32.mrf.mxu0
    %v1307 = vadd.f32 %v1260, %v1306
    %1308 = vdwg.mxu0
    %1309 = vmatpush.msra.mxu0 %v1254
    %1310 = vmatpush.msra.mxu0 %v1250
    %1311 = vmatpush.msra.mxu0 %v1246
    %1312 = vmatpush.msra.mxu0 %v1242
    %1313 = vmatpush.msra.mxu0 %v1238
    %1314 = vmatpush.msra.mxu0 %v1234
    %1315 = vmatpush.msra.mxu0 %v1230
    %1316 = vmatpush.msra.mxu0 %v1226
    %1317 = vmatpush.msra.mxu0 %v1222
    %1318 = vmatpush.msra.mxu0 %v1218
    %1319 = vmatpush.msra.mxu0 %v1214
    %1320 = vmatpush.msra.mxu0 %v1210
    %1321 = vmatpush.msra.mxu0 %v1206
    %1322 = vmatpush.msra.mxu0 %v1202
    %1323 = vmatpush.msra.mxu0 %v1198
    %1324 = vmatpush.msra.mxu0 %v1194
    %1325 = vmatmul.f32.gmra.mxu0 %v478
    %v1326 = vpop.f32.mrf.mxu0
    %v1327 = vadd.f32 %v1261, %v1326
    %1328 = vmatmul.f32.gmra.mxu0 %v580
    %v1329 = vpop.f32.mrf.mxu0
    %v1330 = vadd.f32 %v1261, %v1329
    %1331 = vmatmul.f32.gmra.mxu0 %v682
    %v1332 = vpop.f32.mrf.mxu0
    %v1333 = vadd.f32 %v1261, %v1332
    %1334 = vmatmul.f32.gmra.mxu0 %v784
    %v1335 = vpop.f32.mrf.mxu0
    %v1336 = vadd.f32 %v1261, %v1335
    %1337 = vmatmul.f32.gmra.mxu0 %v886
    %v1338 = vpop.f32.mrf.mxu0
    %v1339 = vadd.f32 %v1261, %v1338
    %1340 = vmatmul.f32.gmra.mxu0 %v988
    %v1341 = vpop.f32.mrf.mxu0
    %v1342 = vadd.f32 %v1261, %v1341
    %1343 = vmatmul.f32.gmra.mxu0 %v1090
    %v1344 = vpop.f32.mrf.mxu0
    %v1345 = vadd.f32 %v1261, %v1344
    %1346 = vmatmul.f32.gmra.mxu0 %v1192
    %v1347 = vpop.f32.mrf.mxu0
    %v1348 = vadd.f32 %v1261, %v1347
    %1349 = vdwg.mxu0
    %1350 = vmatpush.msra.mxu0 %v1255
    %1351 = vmatpush.msra.mxu0 %v1251
    %1352 = vmatpush.msra.mxu0 %v1247
    %1353 = vmatpush.msra.mxu0 %v1243
    %1354 = vmatpush.msra.mxu0 %v1239
    %1355 = vmatpush.msra.mxu0 %v1235
    %1356 = vmatpush.msra.mxu0 %v1231
    %1357 = vmatpush.msra.mxu0 %v1227
    %1358 = vmatpush.msra.mxu0 %v1223
    %1359 = vmatpush.msra.mxu0 %v1219
    %1360 = vmatpush.msra.mxu0 %v1215
    %1361 = vmatpush.msra.mxu0 %v1211
    %1362 = vmatpush.msra.mxu0 %v1207
    %1363 = vmatpush.msra.mxu0 %v1203
    %1364 = vmatpush.msra.mxu0 %v1199
    %1365 = vmatpush.msra.mxu0 %v1195
    %1366 = vmatmul.f32.gmra.mxu0 %v478
    %v1367 = vpop.f32.mrf.mxu0
    %v1368 = vadd.f32 %v1262, %v1367
    %1369 = vmatmul.f32.gmra.mxu0 %v580
    %v1370 = vpop.f32.mrf.mxu0
    %v1371 = vadd.f32 %v1262, %v1370
    %1372 = vmatmul.f32.gmra.mxu0 %v682
    %v1373 = vpop.f32.mrf.mxu0
    %v1374 = vadd.f32 %v1262, %v1373
    %1375 = vmatmul.f32.gmra.mxu0 %v784
    %v1376 = vpop.f32.mrf.mxu0
    %v1377 = vadd.f32 %v1262, %v1376
    %1378 = vmatmul.f32.gmra.mxu0 %v886
    %v1379 = vpop.f32.mrf.mxu0
    %v1380 = vadd.f32 %v1262, %v1379
    %1381 = vmatmul.f32.gmra.mxu0 %v988
    %v1382 = vpop.f32.mrf.mxu0
    %v1383 = vadd.f32 %v1262, %v1382
    %1384 = vmatmul.f32.gmra.mxu0 %v1090
    %v1385 = vpop.f32.mrf.mxu0
    %v1386 = vadd.f32 %v1262, %v1385
    %1387 = vmatmul.f32.gmra.mxu0 %v1192
    %v1388 = vpop.f32.mrf.mxu0
    %v1389 = vadd.f32 %v1262, %v1388
    %1390 = vdwg.mxu0
    %1391 = vmatpush.msra.mxu0 %v1256
    %1392 = vmatpush.msra.mxu0 %v1252
    %1393 = vmatpush.msra.mxu0 %v1248
    %1394 = vmatpush.msra.mxu0 %v1244
    %1395 = vmatpush.msra.mxu0 %v1240
    %1396 = vmatpush.msra.mxu0 %v1236
    %1397 = vmatpush.msra.mxu0 %v1232
    %1398 = vmatpush.msra.mxu0 %v1228
    %1399 = vmatpush.msra.mxu0 %v1224
    %1400 = vmatpush.msra.mxu0 %v1220
    %1401 = vmatpush.msra.mxu0 %v1216
    %1402 = vmatpush.msra.mxu0 %v1212
    %1403 = vmatpush.msra.mxu0 %v1208
    %1404 = vmatpush.msra.mxu0 %v1204
    %1405 = vmatpush.msra.mxu0 %v1200
    %1406 = vmatpush.msra.mxu0 %v1196
    %1407 = vmatmul.f32.gmra.mxu0 %v478
    %v1408 = vpop.f32.mrf.mxu0
    %v1409 = vadd.f32 %v1263, %v1408
    %1410 = vmatmul.f32.gmra.mxu0 %v580
    %v1411 = vpop.f32.mrf.mxu0
    %v1412 = vadd.f32 %v1263, %v1411
    %1413 = vmatmul.f32.gmra.mxu0 %v682
    %v1414 = vpop.f32.mrf.mxu0
    %v1415 = vadd.f32 %v1263, %v1414
    %1416 = vmatmul.f32.gmra.mxu0 %v784
    %v1417 = vpop.f32.mrf.mxu0
    %v1418 = vadd.f32 %v1263, %v1417
    %1419 = vmatmul.f32.gmra.mxu0 %v886
    %v1420 = vpop.f32.mrf.mxu0
    %v1421 = vadd.f32 %v1263, %v1420
    %1422 = vmatmul.f32.gmra.mxu0 %v988
    %v1423 = vpop.f32.mrf.mxu0
    %v1424 = vadd.f32 %v1263, %v1423
    %1425 = vmatmul.f32.gmra.mxu0 %v1090
    %v1426 = vpop.f32.mrf.mxu0
    %v1427 = vadd.f32 %v1263, %v1426
    %1428 = vmatmul.f32.gmra.mxu0 %v1192
    %v1429 = vpop.f32.mrf.mxu0
    %v1430 = vadd.f32 %v1263, %v1429
    %1431 = vdwg.mxu0
    %s1432 = scalar_lea.vmem [#allocation7], 512
    %v1433 = vld [vmem:[%s1432] sm:$0xff]
    %v1434 = vld [vmem:[%s1432 + $0x8] sm:$0xff]
    %v1435 = vld [vmem:[%s1432 + $0x10] sm:$0xff]
    %v1436 = vld [vmem:[%s1432 + $0x18] sm:$0xff]
    %v1437 = vld [vmem:[%s1432 + $0x20] sm:$0xff]
    %v1438 = vld [vmem:[%s1432 + $0x28] sm:$0xff]
    %v1439 = vld [vmem:[%s1432 + $0x30] sm:$0xff]
    %v1440 = vld [vmem:[%s1432 + $0x38] sm:$0xff]
    %v1441 = vld [vmem:[%s1432 + $0x40] sm:$0xff]
    %v1442 = vld [vmem:[%s1432 + $0x48] sm:$0xff]
    %v1443 = vld [vmem:[%s1432 + $0x50] sm:$0xff]
    %v1444 = vld [vmem:[%s1432 + $0x58] sm:$0xff]
    %v1445 = vld [vmem:[%s1432 + $0x60] sm:$0xff]
    %v1446 = vld [vmem:[%s1432 + $0x68] sm:$0xff]
    %v1447 = vld [vmem:[%s1432 + $0x70] sm:$0xff]
    %v1448 = vld [vmem:[%s1432 + $0x78] sm:$0xff]
    %v1449 = vld [vmem:[%s1432 + $0x80] sm:$0xff]
    %v1450 = vld [vmem:[%s1432 + $0x88] sm:$0xff]
    %v1451 = vld [vmem:[%s1432 + $0x90] sm:$0xff]
    %v1452 = vld [vmem:[%s1432 + $0x98] sm:$0xff]
    %v1453 = vld [vmem:[%s1432 + $0xa0] sm:$0xff]
    %v1454 = vld [vmem:[%s1432 + $0xa8] sm:$0xff]
    %v1455 = vld [vmem:[%s1432 + $0xb0] sm:$0xff]
    %v1456 = vld [vmem:[%s1432 + $0xb8] sm:$0xff]
    %v1457 = vld [vmem:[%s1432 + $0xc0] sm:$0xff]
    %v1458 = vld [vmem:[%s1432 + $0xc8] sm:$0xff]
    %v1459 = vld [vmem:[%s1432 + $0xd0] sm:$0xff]
    %v1460 = vld [vmem:[%s1432 + $0xd8] sm:$0xff]
    %v1461 = vld [vmem:[%s1432 + $0xe0] sm:$0xff]
    %v1462 = vld [vmem:[%s1432 + $0xe8] sm:$0xff]
    %v1463 = vld [vmem:[%s1432 + $0xf0] sm:$0xff]
    %v1464 = vld [vmem:[%s1432 + $0xf8] sm:$0xff]
    %v1465 = vld [vmem:[%s1432 + $0x100] sm:$0xff]
    %v1466 = vld [vmem:[%s1432 + $0x108] sm:$0xff]
    %v1467 = vld [vmem:[%s1432 + $0x110] sm:$0xff]
    %v1468 = vld [vmem:[%s1432 + $0x118] sm:$0xff]
    %v1469 = vld [vmem:[%s1432 + $0x120] sm:$0xff]
    %v1470 = vld [vmem:[%s1432 + $0x128] sm:$0xff]
    %v1471 = vld [vmem:[%s1432 + $0x130] sm:$0xff]
    %v1472 = vld [vmem:[%s1432 + $0x138] sm:$0xff]
    %v1473 = vld [vmem:[%s1432 + $0x140] sm:$0xff]
    %v1474 = vld [vmem:[%s1432 + $0x148] sm:$0xff]
    %v1475 = vld [vmem:[%s1432 + $0x150] sm:$0xff]
    %v1476 = vld [vmem:[%s1432 + $0x158] sm:$0xff]
    %v1477 = vld [vmem:[%s1432 + $0x160] sm:$0xff]
    %v1478 = vld [vmem:[%s1432 + $0x168] sm:$0xff]
    %v1479 = vld [vmem:[%s1432 + $0x170] sm:$0xff]
    %v1480 = vld [vmem:[%s1432 + $0x178] sm:$0xff]
    %v1481 = vld [vmem:[%s1432 + $0x180] sm:$0xff]
    %v1482 = vld [vmem:[%s1432 + $0x188] sm:$0xff]
    %v1483 = vld [vmem:[%s1432 + $0x190] sm:$0xff]
    %v1484 = vld [vmem:[%s1432 + $0x198] sm:$0xff]
    %v1485 = vld [vmem:[%s1432 + $0x1a0] sm:$0xff]
    %v1486 = vld [vmem:[%s1432 + $0x1a8] sm:$0xff]
    %v1487 = vld [vmem:[%s1432 + $0x1b0] sm:$0xff]
    %v1488 = vld [vmem:[%s1432 + $0x1b8] sm:$0xff]
    %v1489 = vld [vmem:[%s1432 + $0x1c0] sm:$0xff]
    %v1490 = vld [vmem:[%s1432 + $0x1c8] sm:$0xff]
    %v1491 = vld [vmem:[%s1432 + $0x1d0] sm:$0xff]
    %v1492 = vld [vmem:[%s1432 + $0x1d8] sm:$0xff]
    %v1493 = vld [vmem:[%s1432 + $0x1e0] sm:$0xff]
    %v1494 = vld [vmem:[%s1432 + $0x1e8] sm:$0xff]
    %v1495 = vld [vmem:[%s1432 + $0x1f0] sm:$0xff]
    %v1496 = vld [vmem:[%s1432 + $0x1f8] sm:$0xff]
    %1497 = vmatpush.msra.mxu0 %v1493
    %1498 = vmatpush.msra.mxu0 %v1489
    %1499 = vmatpush.msra.mxu0 %v1485
    %1500 = vmatpush.msra.mxu0 %v1481
    %1501 = vmatpush.msra.mxu0 %v1477
    %1502 = vmatpush.msra.mxu0 %v1473
    %1503 = vmatpush.msra.mxu0 %v1469
    %1504 = vmatpush.msra.mxu0 %v1465
    %1505 = vmatpush.msra.mxu0 %v1461
    %1506 = vmatpush.msra.mxu0 %v1457
    %1507 = vmatpush.msra.mxu0 %v1453
    %1508 = vmatpush.msra.mxu0 %v1449
    %1509 = vmatpush.msra.mxu0 %v1445
    %1510 = vmatpush.msra.mxu0 %v1441
    %1511 = vmatpush.msra.mxu0 %v1437
    %1512 = vmatpush.msra.mxu0 %v1433
    %1513 = vmatmul.f32.gmra.mxu0 0.0
    %v1514 = vpop.f32.mrf.mxu0
    %v1515 = vadd.f32 0.0, %v1514
    %1516 = vdwg.mxu0
    %1517 = vmatpush.msra.mxu0 %v1494
    %1518 = vmatpush.msra.mxu0 %v1490
    %1519 = vmatpush.msra.mxu0 %v1486
    %1520 = vmatpush.msra.mxu0 %v1482
    %1521 = vmatpush.msra.mxu0 %v1478
    %1522 = vmatpush.msra.mxu0 %v1474
    %1523 = vmatpush.msra.mxu0 %v1470
    %1524 = vmatpush.msra.mxu0 %v1466
    %1525 = vmatpush.msra.mxu0 %v1462
    %1526 = vmatpush.msra.mxu0 %v1458
    %1527 = vmatpush.msra.mxu0 %v1454
    %1528 = vmatpush.msra.mxu0 %v1450
    %1529 = vmatpush.msra.mxu0 %v1446
    %1530 = vmatpush.msra.mxu0 %v1442
    %1531 = vmatpush.msra.mxu0 %v1438
    %1532 = vmatpush.msra.mxu0 %v1434
    %1533 = vmatmul.f32.gmra.mxu0 0.0
    %v1534 = vpop.f32.mrf.mxu0
    %v1535 = vadd.f32 0.0, %v1534
    %1536 = vdwg.mxu0
    %1537 = vmatpush.msra.mxu0 %v1495
    %1538 = vmatpush.msra.mxu0 %v1491
    %1539 = vmatpush.msra.mxu0 %v1487
    %1540 = vmatpush.msra.mxu0 %v1483
    %1541 = vmatpush.msra.mxu0 %v1479
    %1542 = vmatpush.msra.mxu0 %v1475
    %1543 = vmatpush.msra.mxu0 %v1471
    %1544 = vmatpush.msra.mxu0 %v1467
    %1545 = vmatpush.msra.mxu0 %v1463
    %1546 = vmatpush.msra.mxu0 %v1459
    %1547 = vmatpush.msra.mxu0 %v1455
    %1548 = vmatpush.msra.mxu0 %v1451
    %1549 = vmatpush.msra.mxu0 %v1447
    %1550 = vmatpush.msra.mxu0 %v1443
    %1551 = vmatpush.msra.mxu0 %v1439
    %1552 = vmatpush.msra.mxu0 %v1435
    %1553 = vmatmul.f32.gmra.mxu0 0.0
    %v1554 = vpop.f32.mrf.mxu0
    %v1555 = vadd.f32 0.0, %v1554
    %1556 = vdwg.mxu0
    %1557 = vmatpush.msra.mxu0 %v1496
    %1558 = vmatpush.msra.mxu0 %v1492
    %1559 = vmatpush.msra.mxu0 %v1488
    %1560 = vmatpush.msra.mxu0 %v1484
    %1561 = vmatpush.msra.mxu0 %v1480
    %1562 = vmatpush.msra.mxu0 %v1476
    %1563 = vmatpush.msra.mxu0 %v1472
    %1564 = vmatpush.msra.mxu0 %v1468
    %1565 = vmatpush.msra.mxu0 %v1464
    %1566 = vmatpush.msra.mxu0 %v1460
    %1567 = vmatpush.msra.mxu0 %v1456
    %1568 = vmatpush.msra.mxu0 %v1452
    %1569 = vmatpush.msra.mxu0 %v1448
    %1570 = vmatpush.msra.mxu0 %v1444
    %1571 = vmatpush.msra.mxu0 %v1440
    %1572 = vmatpush.msra.mxu0 %v1436
    %1573 = vmatmul.f32.gmra.mxu0 0.0
    %v1574 = vpop.f32.mrf.mxu0
    %v1575 = vadd.f32 0.0, %v1574
    %1576 = vdwg.mxu0
    %v1577 = vadd.f32 %v1286, %v1515
    %v1578 = vadd.f32 %v1327, %v1535
    %v1579 = vadd.f32 %v1368, %v1555
    %v1580 = vadd.f32 %v1409, %v1575
    %v1581 = vmul.f32 %v1577, 0.5
    %v1582 = vtanh.pop %v1581
    %v1583 = vadd.f32 %v1582, 1.0
    %v1584 = vmul.f32 %v1583, 0.5
    %v1585 = vmul.f32 %v1578, 0.5
    %v1586 = vtanh.pop %v1585
    %v1587 = vadd.f32 %v1586, 1.0
    %v1588 = vmul.f32 %v1587, 0.5
    %v1589 = vtanh.pop %v1579
    %v1590 = vmul.f32 %v1580, 0.5
    %v1591 = vtanh.pop %v1590
    %v1592 = vadd.f32 %v1591, 1.0
    %v1593 = vmul.f32 %v1592, 0.5
    %v1594 = vmul.f32 %v1588, 0.0
    %v1595 = vmul.f32 %v1584, %v1589
    %v1596 = vadd.f32 %v1594, %v1595
    %v1597 = vtanh.pop %v1596
    %v1598 = vmul.f32 %v1593, %v1597
    %1599 = vmatpush.msra.mxu0 %v1493
    %1600 = vmatpush.msra.mxu0 %v1489
    %1601 = vmatpush.msra.mxu0 %v1485
    %1602 = vmatpush.msra.mxu0 %v1481
    %1603 = vmatpush.msra.mxu0 %v1477
    %1604 = vmatpush.msra.mxu0 %v1473
    %1605 = vmatpush.msra.mxu0 %v1469
    %1606 = vmatpush.msra.mxu0 %v1465
    %1607 = vmatpush.msra.mxu0 %v1461
    %1608 = vmatpush.msra.mxu0 %v1457
    %1609 = vmatpush.msra.mxu0 %v1453
    %1610 = vmatpush.msra.mxu0 %v1449
    %1611 = vmatpush.msra.mxu0 %v1445
    %1612 = vmatpush.msra.mxu0 %v1441
    %1613 = vmatpush.msra.mxu0 %v1437
    %1614 = vmatpush.msra.mxu0 %v1433
    %1615 = vmatmul.f32.gmra.mxu0 %v1598
    %v1616 = vpop.f32.mrf.mxu0
    %v1617 = vadd.f32 0.0, %v1616
    %1618 = vdwg.mxu0
    %1619 = vmatpush.msra.mxu0 %v1494
    %1620 = vmatpush.msra.mxu0 %v1490
    %1621 = vmatpush.msra.mxu0 %v1486
    %1622 = vmatpush.msra.mxu0 %v1482
    %1623 = vmatpush.msra.mxu0 %v1478
    %1624 = vmatpush.msra.mxu0 %v1474
    %1625 = vmatpush.msra.mxu0 %v1470
    %1626 = vmatpush.msra.mxu0 %v1466
    %1627 = vmatpush.msra.mxu0 %v1462
    %1628 = vmatpush.msra.mxu0 %v1458
    %1629 = vmatpush.msra.mxu0 %v1454
    %1630 = vmatpush.msra.mxu0 %v1450
    %1631 = vmatpush.msra.mxu0 %v1446
    %1632 = vmatpush.msra.mxu0 %v1442
    %1633 = vmatpush.msra.mxu0 %v1438
    %1634 = vmatpush.msra.mxu0 %v1434
    %1635 = vmatmul.f32.gmra.mxu0 %v1598
    %v1636 = vpop.f32.mrf.mxu0
    %v1637 = vadd.f32 0.0, %v1636
    %1638 = vdwg.mxu0
    %1639 = vmatpush.msra.mxu0 %v1495
    %1640 = vmatpush.msra.mxu0 %v1491
    %1641 = vmatpush.msra.mxu0 %v1487
    %1642 = vmatpush.msra.mxu0 %v1483
    %1643 = vmatpush.msra.mxu0 %v1479
    %1644 = vmatpush.msra.mxu0 %v1475
    %1645 = vmatpush.msra.mxu0 %v1471
    %1646 = vmatpush.msra.mxu0 %v1467
    %1647 = vmatpush.msra.mxu0 %v1463
    %1648 = vmatpush.msra.mxu0 %v1459
    %1649 = vmatpush.msra.mxu0 %v1455
    %1650 = vmatpush.msra.mxu0 %v1451
    %1651 = vmatpush.msra.mxu0 %v1447
    %1652 = vmatpush.msra.mxu0 %v1443
    %1653 = vmatpush.msra.mxu0 %v1439
    %1654 = vmatpush.msra.mxu0 %v1435
    %1655 = vmatmul.f32.gmra.mxu0 %v1598
    %v1656 = vpop.f32.mrf.mxu0
    %v1657 = vadd.f32 0.0, %v1656
    %1658 = vdwg.mxu0
    %1659 = vmatpush.msra.mxu0 %v1496
    %1660 = vmatpush.msra.mxu0 %v1492
    %1661 = vmatpush.msra.mxu0 %v1488
    %1662 = vmatpush.msra.mxu0 %v1484
    %1663 = vmatpush.msra.mxu0 %v1480
    %1664 = vmatpush.msra.mxu0 %v1476
    %1665 = vmatpush.msra.mxu0 %v1472
    %1666 = vmatpush.msra.mxu0 %v1468
    %1667 = vmatpush.msra.mxu0 %v1464
    %1668 = vmatpush.msra.mxu0 %v1460
    %1669 = vmatpush.msra.mxu0 %v1456
    %1670 = vmatpush.msra.mxu0 %v1452
    %1671 = vmatpush.msra.mxu0 %v1448
    %1672 = vmatpush.msra.mxu0 %v1444
    %1673 = vmatpush.msra.mxu0 %v1440
    %1674 = vmatpush.msra.mxu0 %v1436
    %1675 = vmatmul.f32.gmra.mxu0 %v1598
    %v1676 = vpop.f32.mrf.mxu0
    %v1677 = vadd.f32 0.0, %v1676
    %1678 = vdwg.mxu0
    %v1679 = vadd.f32 %v1289, %v1617
    %v1680 = vadd.f32 %v1330, %v1637
    %v1681 = vadd.f32 %v1371, %v1657
    %v1682 = vadd.f32 %v1412, %v1677
    %v1683 = vmul.f32 %v1679, 0.5
    %v1684 = vtanh.pop %v1683
    %v1685 = vadd.f32 %v1684, 1.0
    %v1686 = vmul.f32 %v1685, 0.5
    %v1687 = vmul.f32 %v1680, 0.5
    %v1688 = vtanh.pop %v1687
    %v1689 = vadd.f32 %v1688, 1.0
    %v1690 = vmul.f32 %v1689, 0.5
    %v1691 = vtanh.pop %v1681
    %v1692 = vmul.f32 %v1682, 0.5
    %v1693 = vtanh.pop %v1692
    %v1694 = vadd.f32 %v1693, 1.0
    %v1695 = vmul.f32 %v1694, 0.5
    %v1696 = vmul.f32 %v1690, %v1596
    %v1697 = vmul.f32 %v1686, %v1691
    %v1698 = vadd.f32 %v1696, %v1697
    %v1699 = vtanh.pop %v1698
    %v1700 = vmul.f32 %v1695, %v1699
    %1701 = vmatpush.msra.mxu0 %v1493
    %1702 = vmatpush.msra.mxu0 %v1489
    %1703 = vmatpush.msra.mxu0 %v1485
    %1704 = vmatpush.msra.mxu0 %v1481
    %1705 = vmatpush.msra.mxu0 %v1477
    %1706 = vmatpush.msra.mxu0 %v1473
    %1707 = vmatpush.msra.mxu0 %v1469
    %1708 = vmatpush.msra.mxu0 %v1465
    %1709 = vmatpush.msra.mxu0 %v1461
    %1710 = vmatpush.msra.mxu0 %v1457
    %1711 = vmatpush.msra.mxu0 %v1453
    %1712 = vmatpush.msra.mxu0 %v1449
    %1713 = vmatpush.msra.mxu0 %v1445
    %1714 = vmatpush.msra.mxu0 %v1441
    %1715 = vmatpush.msra.mxu0 %v1437
    %1716 = vmatpush.msra.mxu0 %v1433
    %1717 = vmatmul.f32.gmra.mxu0 %v1700
    %v1718 = vpop.f32.mrf.mxu0
    %v1719 = vadd.f32 0.0, %v1718
    %1720 = vdwg.mxu0
    %1721 = vmatpush.msra.mxu0 %v1494
    %1722 = vmatpush.msra.mxu0 %v1490
    %1723 = vmatpush.msra.mxu0 %v1486
    %1724 = vmatpush.msra.mxu0 %v1482
    %1725 = vmatpush.msra.mxu0 %v1478
    %1726 = vmatpush.msra.mxu0 %v1474
    %1727 = vmatpush.msra.mxu0 %v1470
    %1728 = vmatpush.msra.mxu0 %v1466
    %1729 = vmatpush.msra.mxu0 %v1462
    %1730 = vmatpush.msra.mxu0 %v1458
    %1731 = vmatpush.msra.mxu0 %v1454
    %1732 = vmatpush.msra.mxu0 %v1450
    %1733 = vmatpush.msra.mxu0 %v1446
    %1734 = vmatpush.msra.mxu0 %v1442
    %1735 = vmatpush.msra.mxu0 %v1438
    %1736 = vmatpush.msra.mxu0 %v1434
    %1737 = vmatmul.f32.gmra.mxu0 %v1700
    %v1738 = vpop.f32.mrf.mxu0
    %v1739 = vadd.f32 0.0, %v1738
    %1740 = vdwg.mxu0
    %1741 = vmatpush.msra.mxu0 %v1495
    %1742 = vmatpush.msra.mxu0 %v1491
    %1743 = vmatpush.msra.mxu0 %v1487
    %1744 = vmatpush.msra.mxu0 %v1483
    %1745 = vmatpush.msra.mxu0 %v1479
    %1746 = vmatpush.msra.mxu0 %v1475
    %1747 = vmatpush.msra.mxu0 %v1471
    %1748 = vmatpush.msra.mxu0 %v1467
    %1749 = vmatpush.msra.mxu0 %v1463
    %1750 = vmatpush.msra.mxu0 %v1459
    %1751 = vmatpush.msra.mxu0 %v1455
    %1752 = vmatpush.msra.mxu0 %v1451
    %1753 = vmatpush.msra.mxu0 %v1447
    %1754 = vmatpush.msra.mxu0 %v1443
    %1755 = vmatpush.msra.mxu0 %v1439
    %1756 = vmatpush.msra.mxu0 %v1435
    %1757 = vmatmul.f32.gmra.mxu0 %v1700
    %v1758 = vpop.f32.mrf.mxu0
    %v1759 = vadd.f32 0.0, %v1758
    %1760 = vdwg.mxu0
    %1761 = vmatpush.msra.mxu0 %v1496
    %1762 = vmatpush.msra.mxu0 %v1492
    %1763 = vmatpush.msra.mxu0 %v1488
    %1764 = vmatpush.msra.mxu0 %v1484
    %1765 = vmatpush.msra.mxu0 %v1480
    %1766 = vmatpush.msra.mxu0 %v1476
    %1767 = vmatpush.msra.mxu0 %v1472
    %1768 = vmatpush.msra.mxu0 %v1468
    %1769 = vmatpush.msra.mxu0 %v1464
    %1770 = vmatpush.msra.mxu0 %v1460
    %1771 = vmatpush.msra.mxu0 %v1456
    %1772 = vmatpush.msra.mxu0 %v1452
    %1773 = vmatpush.msra.mxu0 %v1448
    %1774 = vmatpush.msra.mxu0 %v1444
    %1775 = vmatpush.msra.mxu0 %v1440
    %1776 = vmatpush.msra.mxu0 %v1436
    %1777 = vmatmul.f32.gmra.mxu0 %v1700
    %v1778 = vpop.f32.mrf.mxu0
    %v1779 = vadd.f32 0.0, %v1778
    %1780 = vdwg.mxu0
    %v1781 = vadd.f32 %v1292, %v1719
    %v1782 = vadd.f32 %v1333, %v1739
    %v1783 = vadd.f32 %v1374, %v1759
    %v1784 = vadd.f32 %v1415, %v1779
    %v1785 = vmul.f32 %v1781, 0.5
    %v1786 = vtanh.pop %v1785
    %v1787 = vadd.f32 %v1786, 1.0
    %v1788 = vmul.f32 %v1787, 0.5
    %v1789 = vmul.f32 %v1782, 0.5
    %v1790 = vtanh.pop %v1789
    %v1791 = vadd.f32 %v1790, 1.0
    %v1792 = vmul.f32 %v1791, 0.5
    %v1793 = vtanh.pop %v1783
    %v1794 = vmul.f32 %v1784, 0.5
    %v1795 = vtanh.pop %v1794
    %v1796 = vadd.f32 %v1795, 1.0
    %v1797 = vmul.f32 %v1796, 0.5
    %v1798 = vmul.f32 %v1792, %v1698
    %v1799 = vmul.f32 %v1788, %v1793
    %v1800 = vadd.f32 %v1798, %v1799
    %v1801 = vtanh.pop %v1800
    %v1802 = vmul.f32 %v1797, %v1801
    %1803 = vmatpush.msra.mxu0 %v1493
    %1804 = vmatpush.msra.mxu0 %v1489
    %1805 = vmatpush.msra.mxu0 %v1485
    %1806 = vmatpush.msra.mxu0 %v1481
    %1807 = vmatpush.msra.mxu0 %v1477
    %1808 = vmatpush.msra.mxu0 %v1473
    %1809 = vmatpush.msra.mxu0 %v1469
    %1810 = vmatpush.msra.mxu0 %v1465
    %1811 = vmatpush.msra.mxu0 %v1461
    %1812 = vmatpush.msra.mxu0 %v1457
    %1813 = vmatpush.msra.mxu0 %v1453
    %1814 = vmatpush.msra.mxu0 %v1449
    %1815 = vmatpush.msra.mxu0 %v1445
    %1816 = vmatpush.msra.mxu0 %v1441
    %1817 = vmatpush.msra.mxu0 %v1437
    %1818 = vmatpush.msra.mxu0 %v1433
    %1819 = vmatmul.f32.gmra.mxu0 %v1802
    %v1820 = vpop.f32.mrf.mxu0
    %v1821 = vadd.f32 0.0, %v1820
    %1822 = vdwg.mxu0
    %1823 = vmatpush.msra.mxu0 %v1494
    %1824 = vmatpush.msra.mxu0 %v1490
    %1825 = vmatpush.msra.mxu0 %v1486
    %1826 = vmatpush.msra.mxu0 %v1482
    %1827 = vmatpush.msra.mxu0 %v1478
    %1828 = vmatpush.msra.mxu0 %v1474
    %1829 = vmatpush.msra.mxu0 %v1470
    %1830 = vmatpush.msra.mxu0 %v1466
    %1831 = vmatpush.msra.mxu0 %v1462
    %1832 = vmatpush.msra.mxu0 %v1458
    %1833 = vmatpush.msra.mxu0 %v1454
    %1834 = vmatpush.msra.mxu0 %v1450
    %1835 = vmatpush.msra.mxu0 %v1446
    %1836 = vmatpush.msra.mxu0 %v1442
    %1837 = vmatpush.msra.mxu0 %v1438
    %1838 = vmatpush.msra.mxu0 %v1434
    %1839 = vmatmul.f32.gmra.mxu0 %v1802
    %v1840 = vpop.f32.mrf.mxu0
    %v1841 = vadd.f32 0.0, %v1840
    %1842 = vdwg.mxu0
    %1843 = vmatpush.msra.mxu0 %v1495
    %1844 = vmatpush.msra.mxu0 %v1491
    %1845 = vmatpush.msra.mxu0 %v1487
    %1846 = vmatpush.msra.mxu0 %v1483
    %1847 = vmatpush.msra.mxu0 %v1479
    %1848 = vmatpush.msra.mxu0 %v1475
    %1849 = vmatpush.msra.mxu0 %v1471
    %1850 = vmatpush.msra.mxu0 %v1467
    %1851 = vmatpush.msra.mxu0 %v1463
    %1852 = vmatpush.msra.mxu0 %v1459
    %1853 = vmatpush.msra.mxu0 %v1455
    %1854 = vmatpush.msra.mxu0 %v1451
    %1855 = vmatpush.msra.mxu0 %v1447
    %1856 = vmatpush.msra.mxu0 %v1443
    %1857 = vmatpush.msra.mxu0 %v1439
    %1858 = vmatpush.msra.mxu0 %v1435
    %1859 = vmatmul.f32.gmra.mxu0 %v1802
    %v1860 = vpop.f32.mrf.mxu0
    %v1861 = vadd.f32 0.0, %v1860
    %1862 = vdwg.mxu0
    %1863 = vmatpush.msra.mxu0 %v1496
    %1864 = vmatpush.msra.mxu0 %v1492
    %1865 = vmatpush.msra.mxu0 %v1488
    %1866 = vmatpush.msra.mxu0 %v1484
    %1867 = vmatpush.msra.mxu0 %v1480
    %1868 = vmatpush.msra.mxu0 %v1476
    %1869 = vmatpush.msra.mxu0 %v1472
    %1870 = vmatpush.msra.mxu0 %v1468
    %1871 = vmatpush.msra.mxu0 %v1464
    %1872 = vmatpush.msra.mxu0 %v1460
    %1873 = vmatpush.msra.mxu0 %v1456
    %1874 = vmatpush.msra.mxu0 %v1452
    %1875 = vmatpush.msra.mxu0 %v1448
    %1876 = vmatpush.msra.mxu0 %v1444
    %1877 = vmatpush.msra.mxu0 %v1440
    %1878 = vmatpush.msra.mxu0 %v1436
    %1879 = vmatmul.f32.gmra.mxu0 %v1802
    %v1880 = vpop.f32.mrf.mxu0
    %v1881 = vadd.f32 0.0, %v1880
    %1882 = vdwg.mxu0
    %v1883 = vadd.f32 %v1295, %v1821
    %v1884 = vadd.f32 %v1336, %v1841
    %v1885 = vadd.f32 %v1377, %v1861
    %v1886 = vadd.f32 %v1418, %v1881
    %v1887 = vmul.f32 %v1883, 0.5
    %v1888 = vtanh.pop %v1887
    %v1889 = vadd.f32 %v1888, 1.0
    %v1890 = vmul.f32 %v1889, 0.5
    %v1891 = vmul.f32 %v1884, 0.5
    %v1892 = vtanh.pop %v1891
    %v1893 = vadd.f32 %v1892, 1.0
    %v1894 = vmul.f32 %v1893, 0.5
    %v1895 = vtanh.pop %v1885
    %v1896 = vmul.f32 %v1886, 0.5
    %v1897 = vtanh.pop %v1896
    %v1898 = vadd.f32 %v1897, 1.0
    %v1899 = vmul.f32 %v1898, 0.5
    %v1900 = vmul.f32 %v1894, %v1800
    %v1901 = vmul.f32 %v1890, %v1895
    %v1902 = vadd.f32 %v1900, %v1901
    %v1903 = vtanh.pop %v1902
    %v1904 = vmul.f32 %v1899, %v1903
    %1905 = vmatpush.msra.mxu0 %v1493
    %1906 = vmatpush.msra.mxu0 %v1489
    %1907 = vmatpush.msra.mxu0 %v1485
    %1908 = vmatpush.msra.mxu0 %v1481
    %1909 = vmatpush.msra.mxu0 %v1477
    %1910 = vmatpush.msra.mxu0 %v1473
    %1911 = vmatpush.msra.mxu0 %v1469
    %1912 = vmatpush.msra.mxu0 %v1465
    %1913 = vmatpush.msra.mxu0 %v1461
    %1914 = vmatpush.msra.mxu0 %v1457
    %1915 = vmatpush.msra.mxu0 %v1453
    %1916 = vmatpush.msra.mxu0 %v1449
    %1917 = vmatpush.msra.mxu0 %v1445
    %1918 = vmatpush.msra.mxu0 %v1441
    %1919 = vmatpush.msra.mxu0 %v1437
    %1920 = vmatpush.msra.mxu0 %v1433
    %1921 = vmatmul.f32.gmra.mxu0 %v1904
    %v1922 = vpop.f32.mrf.mxu0
    %v1923 = vadd.f32 0.0, %v1922
    %1924 = vdwg.mxu0
    %1925 = vmatpush.msra.mxu0 %v1494
    %1926 = vmatpush.msra.mxu0 %v1490
    %1927 = vmatpush.msra.mxu0 %v1486
    %1928 = vmatpush.msra.mxu0 %v1482
    %1929 = vmatpush.msra.mxu0 %v1478
    %1930 = vmatpush.msra.mxu0 %v1474
    %1931 = vmatpush.msra.mxu0 %v1470
    %1932 = vmatpush.msra.mxu0 %v1466
    %1933 = vmatpush.msra.mxu0 %v1462
    %1934 = vmatpush.msra.mxu0 %v1458
    %1935 = vmatpush.msra.mxu0 %v1454
    %1936 = vmatpush.msra.mxu0 %v1450
    %1937 = vmatpush.msra.mxu0 %v1446
    %1938 = vmatpush.msra.mxu0 %v1442
    %1939 = vmatpush.msra.mxu0 %v1438
    %1940 = vmatpush.msra.mxu0 %v1434
    %1941 = vmatmul.f32.gmra.mxu0 %v1904
    %v1942 = vpop.f32.mrf.mxu0
    %v1943 = vadd.f32 0.0, %v1942
    %1944 = vdwg.mxu0
    %1945 = vmatpush.msra.mxu0 %v1495
    %1946 = vmatpush.msra.mxu0 %v1491
    %1947 = vmatpush.msra.mxu0 %v1487
    %1948 = vmatpush.msra.mxu0 %v1483
    %1949 = vmatpush.msra.mxu0 %v1479
    %1950 = vmatpush.msra.mxu0 %v1475
    %1951 = vmatpush.msra.mxu0 %v1471
    %1952 = vmatpush.msra.mxu0 %v1467
    %1953 = vmatpush.msra.mxu0 %v1463
    %1954 = vmatpush.msra.mxu0 %v1459
    %1955 = vmatpush.msra.mxu0 %v1455
    %1956 = vmatpush.msra.mxu0 %v1451
    %1957 = vmatpush.msra.mxu0 %v1447
    %1958 = vmatpush.msra.mxu0 %v1443
    %1959 = vmatpush.msra.mxu0 %v1439
    %1960 = vmatpush.msra.mxu0 %v1435
    %1961 = vmatmul.f32.gmra.mxu0 %v1904
    %v1962 = vpop.f32.mrf.mxu0
    %v1963 = vadd.f32 0.0, %v1962
    %1964 = vdwg.mxu0
    %1965 = vmatpush.msra.mxu0 %v1496
    %1966 = vmatpush.msra.mxu0 %v1492
    %1967 = vmatpush.msra.mxu0 %v1488
    %1968 = vmatpush.msra.mxu0 %v1484
    %1969 = vmatpush.msra.mxu0 %v1480
    %1970 = vmatpush.msra.mxu0 %v1476
    %1971 = vmatpush.msra.mxu0 %v1472
    %1972 = vmatpush.msra.mxu0 %v1468
    %1973 = vmatpush.msra.mxu0 %v1464
    %1974 = vmatpush.msra.mxu0 %v1460
    %1975 = vmatpush.msra.mxu0 %v1456
    %1976 = vmatpush.msra.mxu0 %v1452
    %1977 = vmatpush.msra.mxu0 %v1448
    %1978 = vmatpush.msra.mxu0 %v1444
    %1979 = vmatpush.msra.mxu0 %v1440
    %1980 = vmatpush.msra.mxu0 %v1436
    %1981 = vmatmul.f32.gmra.mxu0 %v1904
    %v1982 = vpop.f32.mrf.mxu0
    %v1983 = vadd.f32 0.0, %v1982
    %1984 = vdwg.mxu0
    %v1985 = vadd.f32 %v1298, %v1923
    %v1986 = vadd.f32 %v1339, %v1943
    %v1987 = vadd.f32 %v1380, %v1963
    %v1988 = vadd.f32 %v1421, %v1983
    %v1989 = vmul.f32 %v1985, 0.5
    %v1990 = vtanh.pop %v1989
    %v1991 = vadd.f32 %v1990, 1.0
    %v1992 = vmul.f32 %v1991, 0.5
    %v1993 = vmul.f32 %v1986, 0.5
    %v1994 = vtanh.pop %v1993
    %v1995 = vadd.f32 %v1994, 1.0
    %v1996 = vmul.f32 %v1995, 0.5
    %v1997 = vtanh.pop %v1987
    %v1998 = vmul.f32 %v1988, 0.5
    %v1999 = vtanh.pop %v1998
    %v2000 = vadd.f32 %v1999, 1.0
    %v2001 = vmul.f32 %v2000, 0.5
    %v2002 = vmul.f32 %v1996, %v1902
    %v2003 = vmul.f32 %v1992, %v1997
    %v2004 = vadd.f32 %v2002, %v2003
    %v2005 = vtanh.pop %v2004
    %v2006 = vmul.f32 %v2001, %v2005
    %2007 = vmatpush.msra.mxu0 %v1493
    %2008 = vmatpush.msra.mxu0 %v1489
    %2009 = vmatpush.msra.mxu0 %v1485
    %2010 = vmatpush.msra.mxu0 %v1481
    %2011 = vmatpush.msra.mxu0 %v1477
    %2012 = vmatpush.msra.mxu0 %v1473
    %2013 = vmatpush.msra.mxu0 %v1469
    %2014 = vmatpush.msra.mxu0 %v1465
    %2015 = vmatpush.msra.mxu0 %v1461
    %2016 = vmatpush.msra.mxu0 %v1457
    %2017 = vmatpush.msra.mxu0 %v1453
    %2018 = vmatpush.msra.mxu0 %v1449
    %2019 = vmatpush.msra.mxu0 %v1445
    %2020 = vmatpush.msra.mxu0 %v1441
    %2021 = vmatpush.msra.mxu0 %v1437
    %2022 = vmatpush.msra.mxu0 %v1433
    %2023 = vmatmul.f32.gmra.mxu0 %v2006
    %v2024 = vpop.f32.mrf.mxu0
    %v2025 = vadd.f32 0.0, %v2024
    %2026 = vdwg.mxu0
    %2027 = vmatpush.msra.mxu0 %v1494
    %2028 = vmatpush.msra.mxu0 %v1490
    %2029 = vmatpush.msra.mxu0 %v1486
    %2030 = vmatpush.msra.mxu0 %v1482
    %2031 = vmatpush.msra.mxu0 %v1478
    %2032 = vmatpush.msra.mxu0 %v1474
    %2033 = vmatpush.msra.mxu0 %v1470
    %2034 = vmatpush.msra.mxu0 %v1466
    %2035 = vmatpush.msra.mxu0 %v1462
    %2036 = vmatpush.msra.mxu0 %v1458
    %2037 = vmatpush.msra.mxu0 %v1454
    %2038 = vmatpush.msra.mxu0 %v1450
    %2039 = vmatpush.msra.mxu0 %v1446
    %2040 = vmatpush.msra.mxu0 %v1442
    %2041 = vmatpush.msra.mxu0 %v1438
    %2042 = vmatpush.msra.mxu0 %v1434
    %2043 = vmatmul.f32.gmra.mxu0 %v2006
    %v2044 = vpop.f32.mrf.mxu0
    %v2045 = vadd.f32 0.0, %v2044
    %2046 = vdwg.mxu0
    %2047 = vmatpush.msra.mxu0 %v1495
    %2048 = vmatpush.msra.mxu0 %v1491
    %2049 = vmatpush.msra.mxu0 %v1487
    %2050 = vmatpush.msra.mxu0 %v1483
    %2051 = vmatpush.msra.mxu0 %v1479
    %2052 = vmatpush.msra.mxu0 %v1475
    %2053 = vmatpush.msra.mxu0 %v1471
    %2054 = vmatpush.msra.mxu0 %v1467
    %2055 = vmatpush.msra.mxu0 %v1463
    %2056 = vmatpush.msra.mxu0 %v1459
    %2057 = vmatpush.msra.mxu0 %v1455
    %2058 = vmatpush.msra.mxu0 %v1451
    %2059 = vmatpush.msra.mxu0 %v1447
    %2060 = vmatpush.msra.mxu0 %v1443
    %2061 = vmatpush.msra.mxu0 %v1439
    %2062 = vmatpush.msra.mxu0 %v1435
    %2063 = vmatmul.f32.gmra.mxu0 %v2006
    %v2064 = vpop.f32.mrf.mxu0
    %v2065 = vadd.f32 0.0, %v2064
    %2066 = vdwg.mxu0
    %2067 = vmatpush.msra.mxu0 %v1496
    %2068 = vmatpush.msra.mxu0 %v1492
    %2069 = vmatpush.msra.mxu0 %v1488
    %2070 = vmatpush.msra.mxu0 %v1484
    %2071 = vmatpush.msra.mxu0 %v1480
    %2072 = vmatpush.msra.mxu0 %v1476
    %2073 = vmatpush.msra.mxu0 %v1472
    %2074 = vmatpush.msra.mxu0 %v1468
    %2075 = vmatpush.msra.mxu0 %v1464
    %2076 = vmatpush.msra.mxu0 %v1460
    %2077 = vmatpush.msra.mxu0 %v1456
    %2078 = vmatpush.msra.mxu0 %v1452
    %2079 = vmatpush.msra.mxu0 %v1448
    %2080 = vmatpush.msra.mxu0 %v1444
    %2081 = vmatpush.msra.mxu0 %v1440
    %2082 = vmatpush.msra.mxu0 %v1436
    %2083 = vmatmul.f32.gmra.mxu0 %v2006
    %v2084 = vpop.f32.mrf.mxu0
    %v2085 = vadd.f32 0.0, %v2084
    %2086 = vdwg.mxu0
    %v2087 = vadd.f32 %v1301, %v2025
    %v2088 = vadd.f32 %v1342, %v2045
    %v2089 = vadd.f32 %v1383, %v2065
    %v2090 = vadd.f32 %v1424, %v2085
    %v2091 = vmul.f32 %v2087, 0.5
    %v2092 = vtanh.pop %v2091
    %v2093 = vadd.f32 %v2092, 1.0
    %v2094 = vmul.f32 %v2093, 0.5
    %v2095 = vmul.f32 %v2088, 0.5
    %v2096 = vtanh.pop %v2095
    %v2097 = vadd.f32 %v2096, 1.0
    %v2098 = vmul.f32 %v2097, 0.5
    %v2099 = vtanh.pop %v2089
    %v2100 = vmul.f32 %v2090, 0.5
    %v2101 = vtanh.pop %v2100
    %v2102 = vadd.f32 %v2101, 1.0
    %v2103 = vmul.f32 %v2102, 0.5
    %v2104 = vmul.f32 %v2098, %v2004
    %v2105 = vmul.f32 %v2094, %v2099
    %v2106 = vadd.f32 %v2104, %v2105
    %v2107 = vtanh.pop %v2106
    %v2108 = vmul.f32 %v2103, %v2107
    %2109 = vmatpush.msra.mxu0 %v1493
    %2110 = vmatpush.msra.mxu0 %v1489
    %2111 = vmatpush.msra.mxu0 %v1485
    %2112 = vmatpush.msra.mxu0 %v1481
    %2113 = vmatpush.msra.mxu0 %v1477
    %2114 = vmatpush.msra.mxu0 %v1473
    %2115 = vmatpush.msra.mxu0 %v1469
    %2116 = vmatpush.msra.mxu0 %v1465
    %2117 = vmatpush.msra.mxu0 %v1461
    %2118 = vmatpush.msra.mxu0 %v1457
    %2119 = vmatpush.msra.mxu0 %v1453
    %2120 = vmatpush.msra.mxu0 %v1449
    %2121 = vmatpush.msra.mxu0 %v1445
    %2122 = vmatpush.msra.mxu0 %v1441
    %2123 = vmatpush.msra.mxu0 %v1437
    %2124 = vmatpush.msra.mxu0 %v1433
    %2125 = vmatmul.f32.gmra.mxu0 %v2108
    %v2126 = vpop.f32.mrf.mxu0
    %v2127 = vadd.f32 0.0, %v2126
    %2128 = vdwg.mxu0
    %2129 = vmatpush.msra.mxu0 %v1494
    %2130 = vmatpush.msra.mxu0 %v1490
    %2131 = vmatpush.msra.mxu0 %v1486
    %2132 = vmatpush.msra.mxu0 %v1482
    %2133 = vmatpush.msra.mxu0 %v1478
    %2134 = vmatpush.msra.mxu0 %v1474
    %2135 = vmatpush.msra.mxu0 %v1470
    %2136 = vmatpush.msra.mxu0 %v1466
    %2137 = vmatpush.msra.mxu0 %v1462
    %2138 = vmatpush.msra.mxu0 %v1458
    %2139 = vmatpush.msra.mxu0 %v1454
    %2140 = vmatpush.msra.mxu0 %v1450
    %2141 = vmatpush.msra.mxu0 %v1446
    %2142 = vmatpush.msra.mxu0 %v1442
    %2143 = vmatpush.msra.mxu0 %v1438
    %2144 = vmatpush.msra.mxu0 %v1434
    %2145 = vmatmul.f32.gmra.mxu0 %v2108
    %v2146 = vpop.f32.mrf.mxu0
    %v2147 = vadd.f32 0.0, %v2146
    %2148 = vdwg.mxu0
    %2149 = vmatpush.msra.mxu0 %v1495
    %2150 = vmatpush.msra.mxu0 %v1491
    %2151 = vmatpush.msra.mxu0 %v1487
    %2152 = vmatpush.msra.mxu0 %v1483
    %2153 = vmatpush.msra.mxu0 %v1479
    %2154 = vmatpush.msra.mxu0 %v1475
    %2155 = vmatpush.msra.mxu0 %v1471
    %2156 = vmatpush.msra.mxu0 %v1467
    %2157 = vmatpush.msra.mxu0 %v1463
    %2158 = vmatpush.msra.mxu0 %v1459
    %2159 = vmatpush.msra.mxu0 %v1455
    %2160 = vmatpush.msra.mxu0 %v1451
    %2161 = vmatpush.msra.mxu0 %v1447
    %2162 = vmatpush.msra.mxu0 %v1443
    %2163 = vmatpush.msra.mxu0 %v1439
    %2164 = vmatpush.msra.mxu0 %v1435
    %2165 = vmatmul.f32.gmra.mxu0 %v2108
    %v2166 = vpop.f32.mrf.mxu0
    %v2167 = vadd.f32 0.0, %v2166
    %2168 = vdwg.mxu0
    %2169 = vmatpush.msra.mxu0 %v1496
    %2170 = vmatpush.msra.mxu0 %v1492
    %2171 = vmatpush.msra.mxu0 %v1488
    %2172 = vmatpush.msra.mxu0 %v1484
    %2173 = vmatpush.msra.mxu0 %v1480
    %2174 = vmatpush.msra.mxu0 %v1476
    %2175 = vmatpush.msra.mxu0 %v1472
    %2176 = vmatpush.msra.mxu0 %v1468
    %2177 = vmatpush.msra.mxu0 %v1464
    %2178 = vmatpush.msra.mxu0 %v1460
    %2179 = vmatpush.msra.mxu0 %v1456
    %2180 = vmatpush.msra.mxu0 %v1452
    %2181 = vmatpush.msra.mxu0 %v1448
    %2182 = vmatpush.msra.mxu0 %v1444
    %2183 = vmatpush.msra.mxu0 %v1440
    %2184 = vmatpush.msra.mxu0 %v1436
    %2185 = vmatmul.f32.gmra.mxu0 %v2108
    %v2186 = vpop.f32.mrf.mxu0
    %v2187 = vadd.f32 0.0, %v2186
    %2188 = vdwg.mxu0
    %v2189 = vadd.f32 %v1304, %v2127
    %v2190 = vadd.f32 %v1345, %v2147
    %v2191 = vadd.f32 %v1386, %v2167
    %v2192 = vadd.f32 %v1427, %v2187
    %v2193 = vmul.f32 %v2189, 0.5
    %v2194 = vtanh.pop %v2193
    %v2195 = vadd.f32 %v2194, 1.0
    %v2196 = vmul.f32 %v2195, 0.5
    %v2197 = vmul.f32 %v2190, 0.5
    %v2198 = vtanh.pop %v2197
    %v2199 = vadd.f32 %v2198, 1.0
    %v2200 = vmul.f32 %v2199, 0.5
    %v2201 = vtanh.pop %v2191
    %v2202 = vmul.f32 %v2192, 0.5
    %v2203 = vtanh.pop %v2202
    %v2204 = vadd.f32 %v2203, 1.0
    %v2205 = vmul.f32 %v2204, 0.5
    %v2206 = vmul.f32 %v2200, %v2106
    %v2207 = vmul.f32 %v2196, %v2201
    %v2208 = vadd.f32 %v2206, %v2207
    %v2209 = vtanh.pop %v2208
    %v2210 = vmul.f32 %v2205, %v2209
    %2211 = vmatpush.msra.mxu0 %v1493
    %2212 = vmatpush.msra.mxu0 %v1489
    %2213 = vmatpush.msra.mxu0 %v1485
    %2214 = vmatpush.msra.mxu0 %v1481
    %2215 = vmatpush.msra.mxu0 %v1477
    %2216 = vmatpush.msra.mxu0 %v1473
    %2217 = vmatpush.msra.mxu0 %v1469
    %2218 = vmatpush.msra.mxu0 %v1465
    %2219 = vmatpush.msra.mxu0 %v1461
    %2220 = vmatpush.msra.mxu0 %v1457
    %2221 = vmatpush.msra.mxu0 %v1453
    %2222 = vmatpush.msra.mxu0 %v1449
    %2223 = vmatpush.msra.mxu0 %v1445
    %2224 = vmatpush.msra.mxu0 %v1441
    %2225 = vmatpush.msra.mxu0 %v1437
    %2226 = vmatpush.msra.mxu0 %v1433
    %2227 = vmatmul.f32.gmra.mxu0 %v2210
    %v2228 = vpop.f32.mrf.mxu0
    %v2229 = vadd.f32 0.0, %v2228
    %2230 = vdwg.mxu0
    %2231 = vmatpush.msra.mxu0 %v1494
    %2232 = vmatpush.msra.mxu0 %v1490
    %2233 = vmatpush.msra.mxu0 %v1486
    %2234 = vmatpush.msra.mxu0 %v1482
    %2235 = vmatpush.msra.mxu0 %v1478
    %2236 = vmatpush.msra.mxu0 %v1474
    %2237 = vmatpush.msra.mxu0 %v1470
    %2238 = vmatpush.msra.mxu0 %v1466
    %2239 = vmatpush.msra.mxu0 %v1462
    %2240 = vmatpush.msra.mxu0 %v1458
    %2241 = vmatpush.msra.mxu0 %v1454
    %2242 = vmatpush.msra.mxu0 %v1450
    %2243 = vmatpush.msra.mxu0 %v1446
    %2244 = vmatpush.msra.mxu0 %v1442
    %2245 = vmatpush.msra.mxu0 %v1438
    %2246 = vmatpush.msra.mxu0 %v1434
    %2247 = vmatmul.f32.gmra.mxu0 %v2210
    %v2248 = vpop.f32.mrf.mxu0
    %v2249 = vadd.f32 0.0, %v2248
    %2250 = vdwg.mxu0
    %2251 = vmatpush.msra.mxu0 %v1495
    %2252 = vmatpush.msra.mxu0 %v1491
    %2253 = vmatpush.msra.mxu0 %v1487
    %2254 = vmatpush.msra.mxu0 %v1483
    %2255 = vmatpush.msra.mxu0 %v1479
    %2256 = vmatpush.msra.mxu0 %v1475
    %2257 = vmatpush.msra.mxu0 %v1471
    %2258 = vmatpush.msra.mxu0 %v1467
    %2259 = vmatpush.msra.mxu0 %v1463
    %2260 = vmatpush.msra.mxu0 %v1459
    %2261 = vmatpush.msra.mxu0 %v1455
    %2262 = vmatpush.msra.mxu0 %v1451
    %2263 = vmatpush.msra.mxu0 %v1447
    %2264 = vmatpush.msra.mxu0 %v1443
    %2265 = vmatpush.msra.mxu0 %v1439
    %2266 = vmatpush.msra.mxu0 %v1435
    %2267 = vmatmul.f32.gmra.mxu0 %v2210
    %v2268 = vpop.f32.mrf.mxu0
    %v2269 = vadd.f32 0.0, %v2268
    %2270 = vdwg.mxu0
    %2271 = vmatpush.msra.mxu0 %v1496
    %2272 = vmatpush.msra.mxu0 %v1492
    %2273 = vmatpush.msra.mxu0 %v1488
    %2274 = vmatpush.msra.mxu0 %v1484
    %2275 = vmatpush.msra.mxu0 %v1480
    %2276 = vmatpush.msra.mxu0 %v1476
    %2277 = vmatpush.msra.mxu0 %v1472
    %2278 = vmatpush.msra.mxu0 %v1468
    %2279 = vmatpush.msra.mxu0 %v1464
    %2280 = vmatpush.msra.mxu0 %v1460
    %2281 = vmatpush.msra.mxu0 %v1456
    %2282 = vmatpush.msra.mxu0 %v1452
    %2283 = vmatpush.msra.mxu0 %v1448
    %2284 = vmatpush.msra.mxu0 %v1444
    %2285 = vmatpush.msra.mxu0 %v1440
    %2286 = vmatpush.msra.mxu0 %v1436
    %2287 = vmatmul.f32.gmra.mxu0 %v2210
    %v2288 = vpop.f32.mrf.mxu0
    %v2289 = vadd.f32 0.0, %v2288
    %2290 = vdwg.mxu0
    %v2291 = vadd.f32 %v1307, %v2229
    %v2292 = vadd.f32 %v1348, %v2249
    %v2293 = vadd.f32 %v1389, %v2269
    %v2294 = vadd.f32 %v1430, %v2289
    %v2295 = vmul.f32 %v2291, 0.5
    %v2296 = vtanh.pop %v2295
    %v2297 = vadd.f32 %v2296, 1.0
    %v2298 = vmul.f32 %v2297, 0.5
    %v2299 = vmul.f32 %v2292, 0.5
    %v2300 = vtanh.pop %v2299
    %v2301 = vadd.f32 %v2300, 1.0
    %v2302 = vmul.f32 %v2301, 0.5
    %v2303 = vtanh.pop %v2293
    %v2304 = vmul.f32 %v2294, 0.5
    %v2305 = vtanh.pop %v2304
    %v2306 = vadd.f32 %v2305, 1.0
    %v2307 = vmul.f32 %v2306, 0.5
    %v2308 = vmul.f32 %v2302, %v2208
    %v2309 = vmul.f32 %v2298, %v2303
    %v2310 = vadd.f32 %v2308, %v2309
    %v2311 = vtanh.pop %v2310
    %v2312 = vmul.f32 %v2307, %v2311
    %s2313 = scalar_lea.vmem [#allocation5], 512
    %v2314 = vld [vmem:[%s2313] sm:$0xff]
    %v2315 = vld [vmem:[%s2313 + $0x8] sm:$0xff]
    %v2316 = vld [vmem:[%s2313 + $0x10] sm:$0xff]
    %v2317 = vld [vmem:[%s2313 + $0x18] sm:$0xff]
    %v2318 = vld [vmem:[%s2313 + $0x20] sm:$0xff]
    %v2319 = vld [vmem:[%s2313 + $0x28] sm:$0xff]
    %v2320 = vld [vmem:[%s2313 + $0x30] sm:$0xff]
    %v2321 = vld [vmem:[%s2313 + $0x38] sm:$0xff]
    %v2322 = vld [vmem:[%s2313 + $0x40] sm:$0xff]
    %v2323 = vld [vmem:[%s2313 + $0x48] sm:$0xff]
    %v2324 = vld [vmem:[%s2313 + $0x50] sm:$0xff]
    %v2325 = vld [vmem:[%s2313 + $0x58] sm:$0xff]
    %v2326 = vld [vmem:[%s2313 + $0x60] sm:$0xff]
    %v2327 = vld [vmem:[%s2313 + $0x68] sm:$0xff]
    %v2328 = vld [vmem:[%s2313 + $0x70] sm:$0xff]
    %v2329 = vld [vmem:[%s2313 + $0x78] sm:$0xff]
    %v2330 = vld [vmem:[%s2313 + $0x80] sm:$0xff]
    %v2331 = vld [vmem:[%s2313 + $0x88] sm:$0xff]
    %v2332 = vld [vmem:[%s2313 + $0x90] sm:$0xff]
    %v2333 = vld [vmem:[%s2313 + $0x98] sm:$0xff]
    %v2334 = vld [vmem:[%s2313 + $0xa0] sm:$0xff]
    %v2335 = vld [vmem:[%s2313 + $0xa8] sm:$0xff]
    %v2336 = vld [vmem:[%s2313 + $0xb0] sm:$0xff]
    %v2337 = vld [vmem:[%s2313 + $0xb8] sm:$0xff]
    %v2338 = vld [vmem:[%s2313 + $0xc0] sm:$0xff]
    %v2339 = vld [vmem:[%s2313 + $0xc8] sm:$0xff]
    %v2340 = vld [vmem:[%s2313 + $0xd0] sm:$0xff]
    %v2341 = vld [vmem:[%s2313 + $0xd8] sm:$0xff]
    %v2342 = vld [vmem:[%s2313 + $0xe0] sm:$0xff]
    %v2343 = vld [vmem:[%s2313 + $0xe8] sm:$0xff]
    %v2344 = vld [vmem:[%s2313 + $0xf0] sm:$0xff]
    %v2345 = vld [vmem:[%s2313 + $0xf8] sm:$0xff]
    %v2346 = vld [vmem:[%s2313 + $0x100] sm:$0xff]
    %v2347 = vld [vmem:[%s2313 + $0x108] sm:$0xff]
    %v2348 = vld [vmem:[%s2313 + $0x110] sm:$0xff]
    %v2349 = vld [vmem:[%s2313 + $0x118] sm:$0xff]
    %v2350 = vld [vmem:[%s2313 + $0x120] sm:$0xff]
    %v2351 = vld [vmem:[%s2313 + $0x128] sm:$0xff]
    %v2352 = vld [vmem:[%s2313 + $0x130] sm:$0xff]
    %v2353 = vld [vmem:[%s2313 + $0x138] sm:$0xff]
    %v2354 = vld [vmem:[%s2313 + $0x140] sm:$0xff]
    %v2355 = vld [vmem:[%s2313 + $0x148] sm:$0xff]
    %v2356 = vld [vmem:[%s2313 + $0x150] sm:$0xff]
    %v2357 = vld [vmem:[%s2313 + $0x158] sm:$0xff]
    %v2358 = vld [vmem:[%s2313 + $0x160] sm:$0xff]
    %v2359 = vld [vmem:[%s2313 + $0x168] sm:$0xff]
    %v2360 = vld [vmem:[%s2313 + $0x170] sm:$0xff]
    %v2361 = vld [vmem:[%s2313 + $0x178] sm:$0xff]
    %v2362 = vld [vmem:[%s2313 + $0x180] sm:$0xff]
    %v2363 = vld [vmem:[%s2313 + $0x188] sm:$0xff]
    %v2364 = vld [vmem:[%s2313 + $0x190] sm:$0xff]
    %v2365 = vld [vmem:[%s2313 + $0x198] sm:$0xff]
    %v2366 = vld [vmem:[%s2313 + $0x1a0] sm:$0xff]
    %v2367 = vld [vmem:[%s2313 + $0x1a8] sm:$0xff]
    %v2368 = vld [vmem:[%s2313 + $0x1b0] sm:$0xff]
    %v2369 = vld [vmem:[%s2313 + $0x1b8] sm:$0xff]
    %v2370 = vld [vmem:[%s2313 + $0x1c0] sm:$0xff]
    %v2371 = vld [vmem:[%s2313 + $0x1c8] sm:$0xff]
    %v2372 = vld [vmem:[%s2313 + $0x1d0] sm:$0xff]
    %v2373 = vld [vmem:[%s2313 + $0x1d8] sm:$0xff]
    %v2374 = vld [vmem:[%s2313 + $0x1e0] sm:$0xff]
    %v2375 = vld [vmem:[%s2313 + $0x1e8] sm:$0xff]
    %v2376 = vld [vmem:[%s2313 + $0x1f0] sm:$0xff]
    %v2377 = vld [vmem:[%s2313 + $0x1f8] sm:$0xff]
    %s2378 = scalar_lea.vmem %s4, 8
    %v2379 = vld [vmem:[%s2378] sm:$0xf]
    %v2381 = vperm.slane %v2379, 0
    %v2382 = vperm.slane %v2379, 1
    %v2383 = vperm.slane %v2379, 2
    %v2384 = vperm.slane %v2379, 3
    %2389 = vmatpush.msra.mxu0 %v2374
    %2390 = vmatpush.msra.mxu0 %v2370
    %2391 = vmatpush.msra.mxu0 %v2366
    %2392 = vmatpush.msra.mxu0 %v2362
    %2393 = vmatpush.msra.mxu0 %v2358
    %2394 = vmatpush.msra.mxu0 %v2354
    %2395 = vmatpush.msra.mxu0 %v2350
    %2396 = vmatpush.msra.mxu0 %v2346
    %2397 = vmatpush.msra.mxu0 %v2342
    %2398 = vmatpush.msra.mxu0 %v2338
    %2399 = vmatpush.msra.mxu0 %v2334
    %2400 = vmatpush.msra.mxu0 %v2330
    %2401 = vmatpush.msra.mxu0 %v2326
    %2402 = vmatpush.msra.mxu0 %v2322
    %2403 = vmatpush.msra.mxu0 %v2318
    %2404 = vmatpush.msra.mxu0 %v2314
    %2405 = vmatmul.f32.gmra.mxu0 %v1598
    %v2406 = vpop.f32.mrf.mxu0
    %v2407 = vadd.f32 %v2381, %v2406
    %2408 = vmatmul.f32.gmra.mxu0 %v1700
    %v2409 = vpop.f32.mrf.mxu0
    %v2410 = vadd.f32 %v2381, %v2409
    %2411 = vmatmul.f32.gmra.mxu0 %v1802
    %v2412 = vpop.f32.mrf.mxu0
    %v2413 = vadd.f32 %v2381, %v2412
    %2414 = vmatmul.f32.gmra.mxu0 %v1904
    %v2415 = vpop.f32.mrf.mxu0
    %v2416 = vadd.f32 %v2381, %v2415
    %2417 = vmatmul.f32.gmra.mxu0 %v2006
    %v2418 = vpop.f32.mrf.mxu0
    %v2419 = vadd.f32 %v2381, %v2418
    %2420 = vmatmul.f32.gmra.mxu0 %v2108
    %v2421 = vpop.f32.mrf.mxu0
    %v2422 = vadd.f32 %v2381, %v2421
    %2423 = vmatmul.f32.gmra.mxu0 %v2210
    %v2424 = vpop.f32.mrf.mxu0
    %v2425 = vadd.f32 %v2381, %v2424
    %2426 = vmatmul.f32.gmra.mxu0 %v2312
    %v2427 = vpop.f32.mrf.mxu0
    %v2428 = vadd.f32 %v2381, %v2427
    %2429 = vdwg.mxu0
    %2430 = vmatpush.msra.mxu0 %v2375
    %2431 = vmatpush.msra.mxu0 %v2371
    %2432 = vmatpush.msra.mxu0 %v2367
    %2433 = vmatpush.msra.mxu0 %v2363
    %2434 = vmatpush.msra.mxu0 %v2359
    %2435 = vmatpush.msra.mxu0 %v2355
    %2436 = vmatpush.msra.mxu0 %v2351
    %2437 = vmatpush.msra.mxu0 %v2347
    %2438 = vmatpush.msra.mxu0 %v2343
    %2439 = vmatpush.msra.mxu0 %v2339
    %2440 = vmatpush.msra.mxu0 %v2335
    %2441 = vmatpush.msra.mxu0 %v2331
    %2442 = vmatpush.msra.mxu0 %v2327
    %2443 = vmatpush.msra.mxu0 %v2323
    %2444 = vmatpush.msra.mxu0 %v2319
    %2445 = vmatpush.msra.mxu0 %v2315
    %2446 = vmatmul.f32.gmra.mxu0 %v1598
    %v2447 = vpop.f32.mrf.mxu0
    %v2448 = vadd.f32 %v2382, %v2447
    %2449 = vmatmul.f32.gmra.mxu0 %v1700
    %v2450 = vpop.f32.mrf.mxu0
    %v2451 = vadd.f32 %v2382, %v2450
    %2452 = vmatmul.f32.gmra.mxu0 %v1802
    %v2453 = vpop.f32.mrf.mxu0
    %v2454 = vadd.f32 %v2382, %v2453
    %2455 = vmatmul.f32.gmra.mxu0 %v1904
    %v2456 = vpop.f32.mrf.mxu0
    %v2457 = vadd.f32 %v2382, %v2456
    %2458 = vmatmul.f32.gmra.mxu0 %v2006
    %v2459 = vpop.f32.mrf.mxu0
    %v2460 = vadd.f32 %v2382, %v2459
    %2461 = vmatmul.f32.gmra.mxu0 %v2108
    %v2462 = vpop.f32.mrf.mxu0
    %v2463 = vadd.f32 %v2382, %v2462
    %2464 = vmatmul.f32.gmra.mxu0 %v2210
    %v2465 = vpop.f32.mrf.mxu0
    %v2466 = vadd.f32 %v2382, %v2465
    %2467 = vmatmul.f32.gmra.mxu0 %v2312
    %v2468 = vpop.f32.mrf.mxu0
    %v2469 = vadd.f32 %v2382, %v2468
    %2470 = vdwg.mxu0
    %2471 = vmatpush.msra.mxu0 %v2376
    %2472 = vmatpush.msra.mxu0 %v2372
    %2473 = vmatpush.msra.mxu0 %v2368
    %2474 = vmatpush.msra.mxu0 %v2364
    %2475 = vmatpush.msra.mxu0 %v2360
    %2476 = vmatpush.msra.mxu0 %v2356
    %2477 = vmatpush.msra.mxu0 %v2352
    %2478 = vmatpush.msra.mxu0 %v2348
    %2479 = vmatpush.msra.mxu0 %v2344
    %2480 = vmatpush.msra.mxu0 %v2340
    %2481 = vmatpush.msra.mxu0 %v2336
    %2482 = vmatpush.msra.mxu0 %v2332
    %2483 = vmatpush.msra.mxu0 %v2328
    %2484 = vmatpush.msra.mxu0 %v2324
    %2485 = vmatpush.msra.mxu0 %v2320
    %2486 = vmatpush.msra.mxu0 %v2316
    %2487 = vmatmul.f32.gmra.mxu0 %v1598
    %v2488 = vpop.f32.mrf.mxu0
    %v2489 = vadd.f32 %v2383, %v2488
    %2490 = vmatmul.f32.gmra.mxu0 %v1700
    %v2491 = vpop.f32.mrf.mxu0
    %v2492 = vadd.f32 %v2383, %v2491
    %2493 = vmatmul.f32.gmra.mxu0 %v1802
    %v2494 = vpop.f32.mrf.mxu0
    %v2495 = vadd.f32 %v2383, %v2494
    %2496 = vmatmul.f32.gmra.mxu0 %v1904
    %v2497 = vpop.f32.mrf.mxu0
    %v2498 = vadd.f32 %v2383, %v2497
    %2499 = vmatmul.f32.gmra.mxu0 %v2006
    %v2500 = vpop.f32.mrf.mxu0
    %v2501 = vadd.f32 %v2383, %v2500
    %2502 = vmatmul.f32.gmra.mxu0 %v2108
    %v2503 = vpop.f32.mrf.mxu0
    %v2504 = vadd.f32 %v2383, %v2503
    %2505 = vmatmul.f32.gmra.mxu0 %v2210
    %v2506 = vpop.f32.mrf.mxu0
    %v2507 = vadd.f32 %v2383, %v2506
    %2508 = vmatmul.f32.gmra.mxu0 %v2312
    %v2509 = vpop.f32.mrf.mxu0
    %v2510 = vadd.f32 %v2383, %v2509
    %2511 = vdwg.mxu0
    %2512 = vmatpush.msra.mxu0 %v2377
    %2513 = vmatpush.msra.mxu0 %v2373
    %2514 = vmatpush.msra.mxu0 %v2369
    %2515 = vmatpush.msra.mxu0 %v2365
    %2516 = vmatpush.msra.mxu0 %v2361
    %2517 = vmatpush.msra.mxu0 %v2357
    %2518 = vmatpush.msra.mxu0 %v2353
    %2519 = vmatpush.msra.mxu0 %v2349
    %2520 = vmatpush.msra.mxu0 %v2345
    %2521 = vmatpush.msra.mxu0 %v2341
    %2522 = vmatpush.msra.mxu0 %v2337
    %2523 = vmatpush.msra.mxu0 %v2333
    %2524 = vmatpush.msra.mxu0 %v2329
    %2525 = vmatpush.msra.mxu0 %v2325
    %2526 = vmatpush.msra.mxu0 %v2321
    %2527 = vmatpush.msra.mxu0 %v2317
    %2528 = vmatmul.f32.gmra.mxu0 %v1598
    %v2529 = vpop.f32.mrf.mxu0
    %v2530 = vadd.f32 %v2384, %v2529
    %2531 = vmatmul.f32.gmra.mxu0 %v1700
    %v2532 = vpop.f32.mrf.mxu0
    %v2533 = vadd.f32 %v2384, %v2532
    %2534 = vmatmul.f32.gmra.mxu0 %v1802
    %v2535 = vpop.f32.mrf.mxu0
    %v2536 = vadd.f32 %v2384, %v2535
    %2537 = vmatmul.f32.gmra.mxu0 %v1904
    %v2538 = vpop.f32.mrf.mxu0
    %v2539 = vadd.f32 %v2384, %v2538
    %2540 = vmatmul.f32.gmra.mxu0 %v2006
    %v2541 = vpop.f32.mrf.mxu0
    %v2542 = vadd.f32 %v2384, %v2541
    %2543 = vmatmul.f32.gmra.mxu0 %v2108
    %v2544 = vpop.f32.mrf.mxu0
    %v2545 = vadd.f32 %v2384, %v2544
    %2546 = vmatmul.f32.gmra.mxu0 %v2210
    %v2547 = vpop.f32.mrf.mxu0
    %v2548 = vadd.f32 %v2384, %v2547
    %2549 = vmatmul.f32.gmra.mxu0 %v2312
    %v2550 = vpop.f32.mrf.mxu0
    %v2551 = vadd.f32 %v2384, %v2550
    %2552 = vdwg.mxu0
    %s2553 = scalar_lea.vmem [#allocation7], 1024
    %v2554 = vld [vmem:[%s2553] sm:$0xff]
    %v2555 = vld [vmem:[%s2553 + $0x8] sm:$0xff]
    %v2556 = vld [vmem:[%s2553 + $0x10] sm:$0xff]
    %v2557 = vld [vmem:[%s2553 + $0x18] sm:$0xff]
    %v2558 = vld [vmem:[%s2553 + $0x20] sm:$0xff]
    %v2559 = vld [vmem:[%s2553 + $0x28] sm:$0xff]
    %v2560 = vld [vmem:[%s2553 + $0x30] sm:$0xff]
    %v2561 = vld [vmem:[%s2553 + $0x38] sm:$0xff]
    %v2562 = vld [vmem:[%s2553 + $0x40] sm:$0xff]
    %v2563 = vld [vmem:[%s2553 + $0x48] sm:$0xff]
    %v2564 = vld [vmem:[%s2553 + $0x50] sm:$0xff]
    %v2565 = vld [vmem:[%s2553 + $0x58] sm:$0xff]
    %v2566 = vld [vmem:[%s2553 + $0x60] sm:$0xff]
    %v2567 = vld [vmem:[%s2553 + $0x68] sm:$0xff]
    %v2568 = vld [vmem:[%s2553 + $0x70] sm:$0xff]
    %v2569 = vld [vmem:[%s2553 + $0x78] sm:$0xff]
    %v2570 = vld [vmem:[%s2553 + $0x80] sm:$0xff]
    %v2571 = vld [vmem:[%s2553 + $0x88] sm:$0xff]
    %v2572 = vld [vmem:[%s2553 + $0x90] sm:$0xff]
    %v2573 = vld [vmem:[%s2553 + $0x98] sm:$0xff]
    %v2574 = vld [vmem:[%s2553 + $0xa0] sm:$0xff]
    %v2575 = vld [vmem:[%s2553 + $0xa8] sm:$0xff]
    %v2576 = vld [vmem:[%s2553 + $0xb0] sm:$0xff]
    %v2577 = vld [vmem:[%s2553 + $0xb8] sm:$0xff]
    %v2578 = vld [vmem:[%s2553 + $0xc0] sm:$0xff]
    %v2579 = vld [vmem:[%s2553 + $0xc8] sm:$0xff]
    %v2580 = vld [vmem:[%s2553 + $0xd0] sm:$0xff]
    %v2581 = vld [vmem:[%s2553 + $0xd8] sm:$0xff]
    %v2582 = vld [vmem:[%s2553 + $0xe0] sm:$0xff]
    %v2583 = vld [vmem:[%s2553 + $0xe8] sm:$0xff]
    %v2584 = vld [vmem:[%s2553 + $0xf0] sm:$0xff]
    %v2585 = vld [vmem:[%s2553 + $0xf8] sm:$0xff]
    %v2586 = vld [vmem:[%s2553 + $0x100] sm:$0xff]
    %v2587 = vld [vmem:[%s2553 + $0x108] sm:$0xff]
    %v2588 = vld [vmem:[%s2553 + $0x110] sm:$0xff]
    %v2589 = vld [vmem:[%s2553 + $0x118] sm:$0xff]
    %v2590 = vld [vmem:[%s2553 + $0x120] sm:$0xff]
    %v2591 = vld [vmem:[%s2553 + $0x128] sm:$0xff]
    %v2592 = vld [vmem:[%s2553 + $0x130] sm:$0xff]
    %v2593 = vld [vmem:[%s2553 + $0x138] sm:$0xff]
    %v2594 = vld [vmem:[%s2553 + $0x140] sm:$0xff]
    %v2595 = vld [vmem:[%s2553 + $0x148] sm:$0xff]
    %v2596 = vld [vmem:[%s2553 + $0x150] sm:$0xff]
    %v2597 = vld [vmem:[%s2553 + $0x158] sm:$0xff]
    %v2598 = vld [vmem:[%s2553 + $0x160] sm:$0xff]
    %v2599 = vld [vmem:[%s2553 + $0x168] sm:$0xff]
    %v2600 = vld [vmem:[%s2553 + $0x170] sm:$0xff]
    %v2601 = vld [vmem:[%s2553 + $0x178] sm:$0xff]
    %v2602 = vld [vmem:[%s2553 + $0x180] sm:$0xff]
    %v2603 = vld [vmem:[%s2553 + $0x188] sm:$0xff]
    %v2604 = vld [vmem:[%s2553 + $0x190] sm:$0xff]
    %v2605 = vld [vmem:[%s2553 + $0x198] sm:$0xff]
    %v2606 = vld [vmem:[%s2553 + $0x1a0] sm:$0xff]
    %v2607 = vld [vmem:[%s2553 + $0x1a8] sm:$0xff]
    %v2608 = vld [vmem:[%s2553 + $0x1b0] sm:$0xff]
    %v2609 = vld [vmem:[%s2553 + $0x1b8] sm:$0xff]
    %v2610 = vld [vmem:[%s2553 + $0x1c0] sm:$0xff]
    %v2611 = vld [vmem:[%s2553 + $0x1c8] sm:$0xff]
    %v2612 = vld [vmem:[%s2553 + $0x1d0] sm:$0xff]
    %v2613 = vld [vmem:[%s2553 + $0x1d8] sm:$0xff]
    %v2614 = vld [vmem:[%s2553 + $0x1e0] sm:$0xff]
    %v2615 = vld [vmem:[%s2553 + $0x1e8] sm:$0xff]
    %v2616 = vld [vmem:[%s2553 + $0x1f0] sm:$0xff]
    %v2617 = vld [vmem:[%s2553 + $0x1f8] sm:$0xff]
    %2618 = vmatpush.msra.mxu0 %v2614
    %2619 = vmatpush.msra.mxu0 %v2610
    %2620 = vmatpush.msra.mxu0 %v2606
    %2621 = vmatpush.msra.mxu0 %v2602
    %2622 = vmatpush.msra.mxu0 %v2598
    %2623 = vmatpush.msra.mxu0 %v2594
    %2624 = vmatpush.msra.mxu0 %v2590
    %2625 = vmatpush.msra.mxu0 %v2586
    %2626 = vmatpush.msra.mxu0 %v2582
    %2627 = vmatpush.msra.mxu0 %v2578
    %2628 = vmatpush.msra.mxu0 %v2574
    %2629 = vmatpush.msra.mxu0 %v2570
    %2630 = vmatpush.msra.mxu0 %v2566
    %2631 = vmatpush.msra.mxu0 %v2562
    %2632 = vmatpush.msra.mxu0 %v2558
    %2633 = vmatpush.msra.mxu0 %v2554
    %2634 = vmatmul.f32.gmra.mxu0 0.0
    %v2635 = vpop.f32.mrf.mxu0
    %v2636 = vadd.f32 0.0, %v2635
    %2637 = vdwg.mxu0
    %2638 = vmatpush.msra.mxu0 %v2615
    %2639 = vmatpush.msra.mxu0 %v2611
    %2640 = vmatpush.msra.mxu0 %v2607
    %2641 = vmatpush.msra.mxu0 %v2603
    %2642 = vmatpush.msra.mxu0 %v2599
    %2643 = vmatpush.msra.mxu0 %v2595
    %2644 = vmatpush.msra.mxu0 %v2591
    %2645 = vmatpush.msra.mxu0 %v2587
    %2646 = vmatpush.msra.mxu0 %v2583
    %2647 = vmatpush.msra.mxu0 %v2579
    %2648 = vmatpush.msra.mxu0 %v2575
    %2649 = vmatpush.msra.mxu0 %v2571
    %2650 = vmatpush.msra.mxu0 %v2567
    %2651 = vmatpush.msra.mxu0 %v2563
    %2652 = vmatpush.msra.mxu0 %v2559
    %2653 = vmatpush.msra.mxu0 %v2555
    %2654 = vmatmul.f32.gmra.mxu0 0.0
    %v2655 = vpop.f32.mrf.mxu0
    %v2656 = vadd.f32 0.0, %v2655
    %2657 = vdwg.mxu0
    %2658 = vmatpush.msra.mxu0 %v2616
    %2659 = vmatpush.msra.mxu0 %v2612
    %2660 = vmatpush.msra.mxu0 %v2608
    %2661 = vmatpush.msra.mxu0 %v2604
    %2662 = vmatpush.msra.mxu0 %v2600
    %2663 = vmatpush.msra.mxu0 %v2596
    %2664 = vmatpush.msra.mxu0 %v2592
    %2665 = vmatpush.msra.mxu0 %v2588
    %2666 = vmatpush.msra.mxu0 %v2584
    %2667 = vmatpush.msra.mxu0 %v2580
    %2668 = vmatpush.msra.mxu0 %v2576
    %2669 = vmatpush.msra.mxu0 %v2572
    %2670 = vmatpush.msra.mxu0 %v2568
    %2671 = vmatpush.msra.mxu0 %v2564
    %2672 = vmatpush.msra.mxu0 %v2560
    %2673 = vmatpush.msra.mxu0 %v2556
    %2674 = vmatmul.f32.gmra.mxu0 0.0
    %v2675 = vpop.f32.mrf.mxu0
    %v2676 = vadd.f32 0.0, %v2675
    %2677 = vdwg.mxu0
    %2678 = vmatpush.msra.mxu0 %v2617
    %2679 = vmatpush.msra.mxu0 %v2613
    %2680 = vmatpush.msra.mxu0 %v2609
    %2681 = vmatpush.msra.mxu0 %v2605
    %2682 = vmatpush.msra.mxu0 %v2601
    %2683 = vmatpush.msra.mxu0 %v2597
    %2684 = vmatpush.msra.mxu0 %v2593
    %2685 = vmatpush.msra.mxu0 %v2589
    %2686 = vmatpush.msra.mxu0 %v2585
    %2687 = vmatpush.msra.mxu0 %v2581
    %2688 = vmatpush.msra.mxu0 %v2577
    %2689 = vmatpush.msra.mxu0 %v2573
    %2690 = vmatpush.msra.mxu0 %v2569
    %2691 = vmatpush.msra.mxu0 %v2565
    %2692 = vmatpush.msra.mxu0 %v2561
    %2693 = vmatpush.msra.mxu0 %v2557
    %2694 = vmatmul.f32.gmra.mxu0 0.0
    %v2695 = vpop.f32.mrf.mxu0
    %v2696 = vadd.f32 0.0, %v2695
    %2697 = vdwg.mxu0
    %v2698 = vadd.f32 %v2407, %v2636
    %v2699 = vadd.f32 %v2448, %v2656
    %v2700 = vadd.f32 %v2489, %v2676
    %v2701 = vadd.f32 %v2530, %v2696
    %v2702 = vmul.f32 %v2698, 0.5
    %v2703 = vtanh.pop %v2702
    %v2704 = vadd.f32 %v2703, 1.0
    %v2705 = vmul.f32 %v2704, 0.5
    %v2706 = vmul.f32 %v2699, 0.5
    %v2707 = vtanh.pop %v2706
    %v2708 = vadd.f32 %v2707, 1.0
    %v2709 = vmul.f32 %v2708, 0.5
    %v2710 = vtanh.pop %v2700
    %v2711 = vmul.f32 %v2701, 0.5
    %v2712 = vtanh.pop %v2711
    %v2713 = vadd.f32 %v2712, 1.0
    %v2714 = vmul.f32 %v2713, 0.5
    %v2715 = vmul.f32 %v2709, 0.0
    %v2716 = vmul.f32 %v2705, %v2710
    %v2717 = vadd.f32 %v2715, %v2716
    %v2718 = vtanh.pop %v2717
    %v2719 = vmul.f32 %v2714, %v2718
    %2720 = vmatpush.msra.mxu0 %v2614
    %2721 = vmatpush.msra.mxu0 %v2610
    %2722 = vmatpush.msra.mxu0 %v2606
    %2723 = vmatpush.msra.mxu0 %v2602
    %2724 = vmatpush.msra.mxu0 %v2598
    %2725 = vmatpush.msra.mxu0 %v2594
    %2726 = vmatpush.msra.mxu0 %v2590
    %2727 = vmatpush.msra.mxu0 %v2586
    %2728 = vmatpush.msra.mxu0 %v2582
    %2729 = vmatpush.msra.mxu0 %v2578
    %2730 = vmatpush.msra.mxu0 %v2574
    %2731 = vmatpush.msra.mxu0 %v2570
    %2732 = vmatpush.msra.mxu0 %v2566
    %2733 = vmatpush.msra.mxu0 %v2562
    %2734 = vmatpush.msra.mxu0 %v2558
    %2735 = vmatpush.msra.mxu0 %v2554
    %2736 = vmatmul.f32.gmra.mxu0 %v2719
    %v2737 = vpop.f32.mrf.mxu0
    %v2738 = vadd.f32 0.0, %v2737
    %2739 = vdwg.mxu0
    %2740 = vmatpush.msra.mxu0 %v2615
    %2741 = vmatpush.msra.mxu0 %v2611
    %2742 = vmatpush.msra.mxu0 %v2607
    %2743 = vmatpush.msra.mxu0 %v2603
    %2744 = vmatpush.msra.mxu0 %v2599
    %2745 = vmatpush.msra.mxu0 %v2595
    %2746 = vmatpush.msra.mxu0 %v2591
    %2747 = vmatpush.msra.mxu0 %v2587
    %2748 = vmatpush.msra.mxu0 %v2583
    %2749 = vmatpush.msra.mxu0 %v2579
    %2750 = vmatpush.msra.mxu0 %v2575
    %2751 = vmatpush.msra.mxu0 %v2571
    %2752 = vmatpush.msra.mxu0 %v2567
    %2753 = vmatpush.msra.mxu0 %v2563
    %2754 = vmatpush.msra.mxu0 %v2559
    %2755 = vmatpush.msra.mxu0 %v2555
    %2756 = vmatmul.f32.gmra.mxu0 %v2719
    %v2757 = vpop.f32.mrf.mxu0
    %v2758 = vadd.f32 0.0, %v2757
    %2759 = vdwg.mxu0
    %2760 = vmatpush.msra.mxu0 %v2616
    %2761 = vmatpush.msra.mxu0 %v2612
    %2762 = vmatpush.msra.mxu0 %v2608
    %2763 = vmatpush.msra.mxu0 %v2604
    %2764 = vmatpush.msra.mxu0 %v2600
    %2765 = vmatpush.msra.mxu0 %v2596
    %2766 = vmatpush.msra.mxu0 %v2592
    %2767 = vmatpush.msra.mxu0 %v2588
    %2768 = vmatpush.msra.mxu0 %v2584
    %2769 = vmatpush.msra.mxu0 %v2580
    %2770 = vmatpush.msra.mxu0 %v2576
    %2771 = vmatpush.msra.mxu0 %v2572
    %2772 = vmatpush.msra.mxu0 %v2568
    %2773 = vmatpush.msra.mxu0 %v2564
    %2774 = vmatpush.msra.mxu0 %v2560
    %2775 = vmatpush.msra.mxu0 %v2556
    %2776 = vmatmul.f32.gmra.mxu0 %v2719
    %v2777 = vpop.f32.mrf.mxu0
    %v2778 = vadd.f32 0.0, %v2777
    %2779 = vdwg.mxu0
    %2780 = vmatpush.msra.mxu0 %v2617
    %2781 = vmatpush.msra.mxu0 %v2613
    %2782 = vmatpush.msra.mxu0 %v2609
    %2783 = vmatpush.msra.mxu0 %v2605
    %2784 = vmatpush.msra.mxu0 %v2601
    %2785 = vmatpush.msra.mxu0 %v2597
    %2786 = vmatpush.msra.mxu0 %v2593
    %2787 = vmatpush.msra.mxu0 %v2589
    %2788 = vmatpush.msra.mxu0 %v2585
    %2789 = vmatpush.msra.mxu0 %v2581
    %2790 = vmatpush.msra.mxu0 %v2577
    %2791 = vmatpush.msra.mxu0 %v2573
    %2792 = vmatpush.msra.mxu0 %v2569
    %2793 = vmatpush.msra.mxu0 %v2565
    %2794 = vmatpush.msra.mxu0 %v2561
    %2795 = vmatpush.msra.mxu0 %v2557
    %2796 = vmatmul.f32.gmra.mxu0 %v2719
    %v2797 = vpop.f32.mrf.mxu0
    %v2798 = vadd.f32 0.0, %v2797
    %2799 = vdwg.mxu0
    %v2800 = vadd.f32 %v2410, %v2738
    %v2801 = vadd.f32 %v2451, %v2758
    %v2802 = vadd.f32 %v2492, %v2778
    %v2803 = vadd.f32 %v2533, %v2798
    %v2804 = vmul.f32 %v2800, 0.5
    %v2805 = vtanh.pop %v2804
    %v2806 = vadd.f32 %v2805, 1.0
    %v2807 = vmul.f32 %v2806, 0.5
    %v2808 = vmul.f32 %v2801, 0.5
    %v2809 = vtanh.pop %v2808
    %v2810 = vadd.f32 %v2809, 1.0
    %v2811 = vmul.f32 %v2810, 0.5
    %v2812 = vtanh.pop %v2802
    %v2813 = vmul.f32 %v2803, 0.5
    %v2814 = vtanh.pop %v2813
    %v2815 = vadd.f32 %v2814, 1.0
    %v2816 = vmul.f32 %v2815, 0.5
    %v2817 = vmul.f32 %v2811, %v2717
    %v2818 = vmul.f32 %v2807, %v2812
    %v2819 = vadd.f32 %v2817, %v2818
    %v2820 = vtanh.pop %v2819
    %v2821 = vmul.f32 %v2816, %v2820
    %2822 = vmatpush.msra.mxu0 %v2614
    %2823 = vmatpush.msra.mxu0 %v2610
    %2824 = vmatpush.msra.mxu0 %v2606
    %2825 = vmatpush.msra.mxu0 %v2602
    %2826 = vmatpush.msra.mxu0 %v2598
    %2827 = vmatpush.msra.mxu0 %v2594
    %2828 = vmatpush.msra.mxu0 %v2590
    %2829 = vmatpush.msra.mxu0 %v2586
    %2830 = vmatpush.msra.mxu0 %v2582
    %2831 = vmatpush.msra.mxu0 %v2578
    %2832 = vmatpush.msra.mxu0 %v2574
    %2833 = vmatpush.msra.mxu0 %v2570
    %2834 = vmatpush.msra.mxu0 %v2566
    %2835 = vmatpush.msra.mxu0 %v2562
    %2836 = vmatpush.msra.mxu0 %v2558
    %2837 = vmatpush.msra.mxu0 %v2554
    %2838 = vmatmul.f32.gmra.mxu0 %v2821
    %v2839 = vpop.f32.mrf.mxu0
    %v2840 = vadd.f32 0.0, %v2839
    %2841 = vdwg.mxu0
    %2842 = vmatpush.msra.mxu0 %v2615
    %2843 = vmatpush.msra.mxu0 %v2611
    %2844 = vmatpush.msra.mxu0 %v2607
    %2845 = vmatpush.msra.mxu0 %v2603
    %2846 = vmatpush.msra.mxu0 %v2599
    %2847 = vmatpush.msra.mxu0 %v2595
    %2848 = vmatpush.msra.mxu0 %v2591
    %2849 = vmatpush.msra.mxu0 %v2587
    %2850 = vmatpush.msra.mxu0 %v2583
    %2851 = vmatpush.msra.mxu0 %v2579
    %2852 = vmatpush.msra.mxu0 %v2575
    %2853 = vmatpush.msra.mxu0 %v2571
    %2854 = vmatpush.msra.mxu0 %v2567
    %2855 = vmatpush.msra.mxu0 %v2563
    %2856 = vmatpush.msra.mxu0 %v2559
    %2857 = vmatpush.msra.mxu0 %v2555
    %2858 = vmatmul.f32.gmra.mxu0 %v2821
    %v2859 = vpop.f32.mrf.mxu0
    %v2860 = vadd.f32 0.0, %v2859
    %2861 = vdwg.mxu0
    %2862 = vmatpush.msra.mxu0 %v2616
    %2863 = vmatpush.msra.mxu0 %v2612
    %2864 = vmatpush.msra.mxu0 %v2608
    %2865 = vmatpush.msra.mxu0 %v2604
    %2866 = vmatpush.msra.mxu0 %v2600
    %2867 = vmatpush.msra.mxu0 %v2596
    %2868 = vmatpush.msra.mxu0 %v2592
    %2869 = vmatpush.msra.mxu0 %v2588
    %2870 = vmatpush.msra.mxu0 %v2584
    %2871 = vmatpush.msra.mxu0 %v2580
    %2872 = vmatpush.msra.mxu0 %v2576
    %2873 = vmatpush.msra.mxu0 %v2572
    %2874 = vmatpush.msra.mxu0 %v2568
    %2875 = vmatpush.msra.mxu0 %v2564
    %2876 = vmatpush.msra.mxu0 %v2560
    %2877 = vmatpush.msra.mxu0 %v2556
    %2878 = vmatmul.f32.gmra.mxu0 %v2821
    %v2879 = vpop.f32.mrf.mxu0
    %v2880 = vadd.f32 0.0, %v2879
    %2881 = vdwg.mxu0
    %2882 = vmatpush.msra.mxu0 %v2617
    %2883 = vmatpush.msra.mxu0 %v2613
    %2884 = vmatpush.msra.mxu0 %v2609
    %2885 = vmatpush.msra.mxu0 %v2605
    %2886 = vmatpush.msra.mxu0 %v2601
    %2887 = vmatpush.msra.mxu0 %v2597
    %2888 = vmatpush.msra.mxu0 %v2593
    %2889 = vmatpush.msra.mxu0 %v2589
    %2890 = vmatpush.msra.mxu0 %v2585
    %2891 = vmatpush.msra.mxu0 %v2581
    %2892 = vmatpush.msra.mxu0 %v2577
    %2893 = vmatpush.msra.mxu0 %v2573
    %2894 = vmatpush.msra.mxu0 %v2569
    %2895 = vmatpush.msra.mxu0 %v2565
    %2896 = vmatpush.msra.mxu0 %v2561
    %2897 = vmatpush.msra.mxu0 %v2557
    %2898 = vmatmul.f32.gmra.mxu0 %v2821
    %v2899 = vpop.f32.mrf.mxu0
    %v2900 = vadd.f32 0.0, %v2899
    %2901 = vdwg.mxu0
    %v2902 = vadd.f32 %v2413, %v2840
    %v2903 = vadd.f32 %v2454, %v2860
    %v2904 = vadd.f32 %v2495, %v2880
    %v2905 = vadd.f32 %v2536, %v2900
    %v2906 = vmul.f32 %v2902, 0.5
    %v2907 = vtanh.pop %v2906
    %v2908 = vadd.f32 %v2907, 1.0
    %v2909 = vmul.f32 %v2908, 0.5
    %v2910 = vmul.f32 %v2903, 0.5
    %v2911 = vtanh.pop %v2910
    %v2912 = vadd.f32 %v2911, 1.0
    %v2913 = vmul.f32 %v2912, 0.5
    %v2914 = vtanh.pop %v2904
    %v2915 = vmul.f32 %v2905, 0.5
    %v2916 = vtanh.pop %v2915
    %v2917 = vadd.f32 %v2916, 1.0
    %v2918 = vmul.f32 %v2917, 0.5
    %v2919 = vmul.f32 %v2913, %v2819
    %v2920 = vmul.f32 %v2909, %v2914
    %v2921 = vadd.f32 %v2919, %v2920
    %v2922 = vtanh.pop %v2921
    %v2923 = vmul.f32 %v2918, %v2922
    %2924 = vmatpush.msra.mxu0 %v2614
    %2925 = vmatpush.msra.mxu0 %v2610
    %2926 = vmatpush.msra.mxu0 %v2606
    %2927 = vmatpush.msra.mxu0 %v2602
    %2928 = vmatpush.msra.mxu0 %v2598
    %2929 = vmatpush.msra.mxu0 %v2594
    %2930 = vmatpush.msra.mxu0 %v2590
    %2931 = vmatpush.msra.mxu0 %v2586
    %2932 = vmatpush.msra.mxu0 %v2582
    %2933 = vmatpush.msra.mxu0 %v2578
    %2934 = vmatpush.msra.mxu0 %v2574
    %2935 = vmatpush.msra.mxu0 %v2570
    %2936 = vmatpush.msra.mxu0 %v2566
    %2937 = vmatpush.msra.mxu0 %v2562
    %2938 = vmatpush.msra.mxu0 %v2558
    %2939 = vmatpush.msra.mxu0 %v2554
    %2940 = vmatmul.f32.gmra.mxu0 %v2923
    %v2941 = vpop.f32.mrf.mxu0
    %v2942 = vadd.f32 0.0, %v2941
    %2943 = vdwg.mxu0
    %2944 = vmatpush.msra.mxu0 %v2615
    %2945 = vmatpush.msra.mxu0 %v2611
    %2946 = vmatpush.msra.mxu0 %v2607
    %2947 = vmatpush.msra.mxu0 %v2603
    %2948 = vmatpush.msra.mxu0 %v2599
    %2949 = vmatpush.msra.mxu0 %v2595
    %2950 = vmatpush.msra.mxu0 %v2591
    %2951 = vmatpush.msra.mxu0 %v2587
    %2952 = vmatpush.msra.mxu0 %v2583
    %2953 = vmatpush.msra.mxu0 %v2579
    %2954 = vmatpush.msra.mxu0 %v2575
    %2955 = vmatpush.msra.mxu0 %v2571
    %2956 = vmatpush.msra.mxu0 %v2567
    %2957 = vmatpush.msra.mxu0 %v2563
    %2958 = vmatpush.msra.mxu0 %v2559
    %2959 = vmatpush.msra.mxu0 %v2555
    %2960 = vmatmul.f32.gmra.mxu0 %v2923
    %v2961 = vpop.f32.mrf.mxu0
    %v2962 = vadd.f32 0.0, %v2961
    %2963 = vdwg.mxu0
    %2964 = vmatpush.msra.mxu0 %v2616
    %2965 = vmatpush.msra.mxu0 %v2612
    %2966 = vmatpush.msra.mxu0 %v2608
    %2967 = vmatpush.msra.mxu0 %v2604
    %2968 = vmatpush.msra.mxu0 %v2600
    %2969 = vmatpush.msra.mxu0 %v2596
    %2970 = vmatpush.msra.mxu0 %v2592
    %2971 = vmatpush.msra.mxu0 %v2588
    %2972 = vmatpush.msra.mxu0 %v2584
    %2973 = vmatpush.msra.mxu0 %v2580
    %2974 = vmatpush.msra.mxu0 %v2576
    %2975 = vmatpush.msra.mxu0 %v2572
    %2976 = vmatpush.msra.mxu0 %v2568
    %2977 = vmatpush.msra.mxu0 %v2564
    %2978 = vmatpush.msra.mxu0 %v2560
    %2979 = vmatpush.msra.mxu0 %v2556
    %2980 = vmatmul.f32.gmra.mxu0 %v2923
    %v2981 = vpop.f32.mrf.mxu0
    %v2982 = vadd.f32 0.0, %v2981
    %2983 = vdwg.mxu0
    %2984 = vmatpush.msra.mxu0 %v2617
    %2985 = vmatpush.msra.mxu0 %v2613
    %2986 = vmatpush.msra.mxu0 %v2609
    %2987 = vmatpush.msra.mxu0 %v2605
    %2988 = vmatpush.msra.mxu0 %v2601
    %2989 = vmatpush.msra.mxu0 %v2597
    %2990 = vmatpush.msra.mxu0 %v2593
    %2991 = vmatpush.msra.mxu0 %v2589
    %2992 = vmatpush.msra.mxu0 %v2585
    %2993 = vmatpush.msra.mxu0 %v2581
    %2994 = vmatpush.msra.mxu0 %v2577
    %2995 = vmatpush.msra.mxu0 %v2573
    %2996 = vmatpush.msra.mxu0 %v2569
    %2997 = vmatpush.msra.mxu0 %v2565
    %2998 = vmatpush.msra.mxu0 %v2561
    %2999 = vmatpush.msra.mxu0 %v2557
    %3000 = vmatmul.f32.gmra.mxu0 %v2923
    %v3001 = vpop.f32.mrf.mxu0
    %v3002 = vadd.f32 0.0, %v3001
    %3003 = vdwg.mxu0
    %v3004 = vadd.f32 %v2416, %v2942
    %v3005 = vadd.f32 %v2457, %v2962
    %v3006 = vadd.f32 %v2498, %v2982
    %v3007 = vadd.f32 %v2539, %v3002
    %v3008 = vmul.f32 %v3004, 0.5
    %v3009 = vtanh.pop %v3008
    %v3010 = vadd.f32 %v3009, 1.0
    %v3011 = vmul.f32 %v3010, 0.5
    %v3012 = vmul.f32 %v3005, 0.5
    %v3013 = vtanh.pop %v3012
    %v3014 = vadd.f32 %v3013, 1.0
    %v3015 = vmul.f32 %v3014, 0.5
    %v3016 = vtanh.pop %v3006
    %v3017 = vmul.f32 %v3007, 0.5
    %v3018 = vtanh.pop %v3017
    %v3019 = vadd.f32 %v3018, 1.0
    %v3020 = vmul.f32 %v3019, 0.5
    %v3021 = vmul.f32 %v3015, %v2921
    %v3022 = vmul.f32 %v3011, %v3016
    %v3023 = vadd.f32 %v3021, %v3022
    %v3024 = vtanh.pop %v3023
    %v3025 = vmul.f32 %v3020, %v3024
    %3026 = vmatpush.msra.mxu0 %v2614
    %3027 = vmatpush.msra.mxu0 %v2610
    %3028 = vmatpush.msra.mxu0 %v2606
    %3029 = vmatpush.msra.mxu0 %v2602
    %3030 = vmatpush.msra.mxu0 %v2598
    %3031 = vmatpush.msra.mxu0 %v2594
    %3032 = vmatpush.msra.mxu0 %v2590
    %3033 = vmatpush.msra.mxu0 %v2586
    %3034 = vmatpush.msra.mxu0 %v2582
    %3035 = vmatpush.msra.mxu0 %v2578
    %3036 = vmatpush.msra.mxu0 %v2574
    %3037 = vmatpush.msra.mxu0 %v2570
    %3038 = vmatpush.msra.mxu0 %v2566
    %3039 = vmatpush.msra.mxu0 %v2562
    %3040 = vmatpush.msra.mxu0 %v2558
    %3041 = vmatpush.msra.mxu0 %v2554
    %3042 = vmatmul.f32.gmra.mxu0 %v3025
    %v3043 = vpop.f32.mrf.mxu0
    %v3044 = vadd.f32 0.0, %v3043
    %3045 = vdwg.mxu0
    %3046 = vmatpush.msra.mxu0 %v2615
    %3047 = vmatpush.msra.mxu0 %v2611
    %3048 = vmatpush.msra.mxu0 %v2607
    %3049 = vmatpush.msra.mxu0 %v2603
    %3050 = vmatpush.msra.mxu0 %v2599
    %3051 = vmatpush.msra.mxu0 %v2595
    %3052 = vmatpush.msra.mxu0 %v2591
    %3053 = vmatpush.msra.mxu0 %v2587
    %3054 = vmatpush.msra.mxu0 %v2583
    %3055 = vmatpush.msra.mxu0 %v2579
    %3056 = vmatpush.msra.mxu0 %v2575
    %3057 = vmatpush.msra.mxu0 %v2571
    %3058 = vmatpush.msra.mxu0 %v2567
    %3059 = vmatpush.msra.mxu0 %v2563
    %3060 = vmatpush.msra.mxu0 %v2559
    %3061 = vmatpush.msra.mxu0 %v2555
    %3062 = vmatmul.f32.gmra.mxu0 %v3025
    %v3063 = vpop.f32.mrf.mxu0
    %v3064 = vadd.f32 0.0, %v3063
    %3065 = vdwg.mxu0
    %3066 = vmatpush.msra.mxu0 %v2616
    %3067 = vmatpush.msra.mxu0 %v2612
    %3068 = vmatpush.msra.mxu0 %v2608
    %3069 = vmatpush.msra.mxu0 %v2604
    %3070 = vmatpush.msra.mxu0 %v2600
    %3071 = vmatpush.msra.mxu0 %v2596
    %3072 = vmatpush.msra.mxu0 %v2592
    %3073 = vmatpush.msra.mxu0 %v2588
    %3074 = vmatpush.msra.mxu0 %v2584
    %3075 = vmatpush.msra.mxu0 %v2580
    %3076 = vmatpush.msra.mxu0 %v2576
    %3077 = vmatpush.msra.mxu0 %v2572
    %3078 = vmatpush.msra.mxu0 %v2568
    %3079 = vmatpush.msra.mxu0 %v2564
    %3080 = vmatpush.msra.mxu0 %v2560
    %3081 = vmatpush.msra.mxu0 %v2556
    %3082 = vmatmul.f32.gmra.mxu0 %v3025
    %v3083 = vpop.f32.mrf.mxu0
    %v3084 = vadd.f32 0.0, %v3083
    %3085 = vdwg.mxu0
    %3086 = vmatpush.msra.mxu0 %v2617
    %3087 = vmatpush.msra.mxu0 %v2613
    %3088 = vmatpush.msra.mxu0 %v2609
    %3089 = vmatpush.msra.mxu0 %v2605
    %3090 = vmatpush.msra.mxu0 %v2601
    %3091 = vmatpush.msra.mxu0 %v2597
    %3092 = vmatpush.msra.mxu0 %v2593
    %3093 = vmatpush.msra.mxu0 %v2589
    %3094 = vmatpush.msra.mxu0 %v2585
    %3095 = vmatpush.msra.mxu0 %v2581
    %3096 = vmatpush.msra.mxu0 %v2577
    %3097 = vmatpush.msra.mxu0 %v2573
    %3098 = vmatpush.msra.mxu0 %v2569
    %3099 = vmatpush.msra.mxu0 %v2565
    %3100 = vmatpush.msra.mxu0 %v2561
    %3101 = vmatpush.msra.mxu0 %v2557
    %3102 = vmatmul.f32.gmra.mxu0 %v3025
    %v3103 = vpop.f32.mrf.mxu0
    %v3104 = vadd.f32 0.0, %v3103
    %3105 = vdwg.mxu0
    %v3106 = vadd.f32 %v2419, %v3044
    %v3107 = vadd.f32 %v2460, %v3064
    %v3108 = vadd.f32 %v2501, %v3084
    %v3109 = vadd.f32 %v2542, %v3104
    %v3110 = vmul.f32 %v3106, 0.5
    %v3111 = vtanh.pop %v3110
    %v3112 = vadd.f32 %v3111, 1.0
    %v3113 = vmul.f32 %v3112, 0.5
    %v3114 = vmul.f32 %v3107, 0.5
    %v3115 = vtanh.pop %v3114
    %v3116 = vadd.f32 %v3115, 1.0
    %v3117 = vmul.f32 %v3116, 0.5
    %v3118 = vtanh.pop %v3108
    %v3119 = vmul.f32 %v3109, 0.5
    %v3120 = vtanh.pop %v3119
    %v3121 = vadd.f32 %v3120, 1.0
    %v3122 = vmul.f32 %v3121, 0.5
    %v3123 = vmul.f32 %v3117, %v3023
    %v3124 = vmul.f32 %v3113, %v3118
    %v3125 = vadd.f32 %v3123, %v3124
    %v3126 = vtanh.pop %v3125
    %v3127 = vmul.f32 %v3122, %v3126
    %3128 = vmatpush.msra.mxu0 %v2614
    %3129 = vmatpush.msra.mxu0 %v2610
    %3130 = vmatpush.msra.mxu0 %v2606
    %3131 = vmatpush.msra.mxu0 %v2602
    %3132 = vmatpush.msra.mxu0 %v2598
    %3133 = vmatpush.msra.mxu0 %v2594
    %3134 = vmatpush.msra.mxu0 %v2590
    %3135 = vmatpush.msra.mxu0 %v2586
    %3136 = vmatpush.msra.mxu0 %v2582
    %3137 = vmatpush.msra.mxu0 %v2578
    %3138 = vmatpush.msra.mxu0 %v2574
    %3139 = vmatpush.msra.mxu0 %v2570
    %3140 = vmatpush.msra.mxu0 %v2566
    %3141 = vmatpush.msra.mxu0 %v2562
    %3142 = vmatpush.msra.mxu0 %v2558
    %3143 = vmatpush.msra.mxu0 %v2554
    %3144 = vmatmul.f32.gmra.mxu0 %v3127
    %v3145 = vpop.f32.mrf.mxu0
    %v3146 = vadd.f32 0.0, %v3145
    %3147 = vdwg.mxu0
    %3148 = vmatpush.msra.mxu0 %v2615
    %3149 = vmatpush.msra.mxu0 %v2611
    %3150 = vmatpush.msra.mxu0 %v2607
    %3151 = vmatpush.msra.mxu0 %v2603
    %3152 = vmatpush.msra.mxu0 %v2599
    %3153 = vmatpush.msra.mxu0 %v2595
    %3154 = vmatpush.msra.mxu0 %v2591
    %3155 = vmatpush.msra.mxu0 %v2587
    %3156 = vmatpush.msra.mxu0 %v2583
    %3157 = vmatpush.msra.mxu0 %v2579
    %3158 = vmatpush.msra.mxu0 %v2575
    %3159 = vmatpush.msra.mxu0 %v2571
    %3160 = vmatpush.msra.mxu0 %v2567
    %3161 = vmatpush.msra.mxu0 %v2563
    %3162 = vmatpush.msra.mxu0 %v2559
    %3163 = vmatpush.msra.mxu0 %v2555
    %3164 = vmatmul.f32.gmra.mxu0 %v3127
    %v3165 = vpop.f32.mrf.mxu0
    %v3166 = vadd.f32 0.0, %v3165
    %3167 = vdwg.mxu0
    %3168 = vmatpush.msra.mxu0 %v2616
    %3169 = vmatpush.msra.mxu0 %v2612
    %3170 = vmatpush.msra.mxu0 %v2608
    %3171 = vmatpush.msra.mxu0 %v2604
    %3172 = vmatpush.msra.mxu0 %v2600
    %3173 = vmatpush.msra.mxu0 %v2596
    %3174 = vmatpush.msra.mxu0 %v2592
    %3175 = vmatpush.msra.mxu0 %v2588
    %3176 = vmatpush.msra.mxu0 %v2584
    %3177 = vmatpush.msra.mxu0 %v2580
    %3178 = vmatpush.msra.mxu0 %v2576
    %3179 = vmatpush.msra.mxu0 %v2572
    %3180 = vmatpush.msra.mxu0 %v2568
    %3181 = vmatpush.msra.mxu0 %v2564
    %3182 = vmatpush.msra.mxu0 %v2560
    %3183 = vmatpush.msra.mxu0 %v2556
    %3184 = vmatmul.f32.gmra.mxu0 %v3127
    %v3185 = vpop.f32.mrf.mxu0
    %v3186 = vadd.f32 0.0, %v3185
    %3187 = vdwg.mxu0
    %3188 = vmatpush.msra.mxu0 %v2617
    %3189 = vmatpush.msra.mxu0 %v2613
    %3190 = vmatpush.msra.mxu0 %v2609
    %3191 = vmatpush.msra.mxu0 %v2605
    %3192 = vmatpush.msra.mxu0 %v2601
    %3193 = vmatpush.msra.mxu0 %v2597
    %3194 = vmatpush.msra.mxu0 %v2593
    %3195 = vmatpush.msra.mxu0 %v2589
    %3196 = vmatpush.msra.mxu0 %v2585
    %3197 = vmatpush.msra.mxu0 %v2581
    %3198 = vmatpush.msra.mxu0 %v2577
    %3199 = vmatpush.msra.mxu0 %v2573
    %3200 = vmatpush.msra.mxu0 %v2569
    %3201 = vmatpush.msra.mxu0 %v2565
    %3202 = vmatpush.msra.mxu0 %v2561
    %3203 = vmatpush.msra.mxu0 %v2557
    %3204 = vmatmul.f32.gmra.mxu0 %v3127
    %v3205 = vpop.f32.mrf.mxu0
    %v3206 = vadd.f32 0.0, %v3205
    %3207 = vdwg.mxu0
    %v3208 = vadd.f32 %v2422, %v3146
    %v3209 = vadd.f32 %v2463, %v3166
    %v3210 = vadd.f32 %v2504, %v3186
    %v3211 = vadd.f32 %v2545, %v3206
    %v3212 = vmul.f32 %v3208, 0.5
    %v3213 = vtanh.pop %v3212
    %v3214 = vadd.f32 %v3213, 1.0
    %v3215 = vmul.f32 %v3214, 0.5
    %v3216 = vmul.f32 %v3209, 0.5
    %v3217 = vtanh.pop %v3216
    %v3218 = vadd.f32 %v3217, 1.0
    %v3219 = vmul.f32 %v3218, 0.5
    %v3220 = vtanh.pop %v3210
    %v3221 = vmul.f32 %v3211, 0.5
    %v3222 = vtanh.pop %v3221
    %v3223 = vadd.f32 %v3222, 1.0
    %v3224 = vmul.f32 %v3223, 0.5
    %v3225 = vmul.f32 %v3219, %v3125
    %v3226 = vmul.f32 %v3215, %v3220
    %v3227 = vadd.f32 %v3225, %v3226
    %v3228 = vtanh.pop %v3227
    %v3229 = vmul.f32 %v3224, %v3228
    %3230 = vmatpush.msra.mxu0 %v2614
    %3231 = vmatpush.msra.mxu0 %v2610
    %3232 = vmatpush.msra.mxu0 %v2606
    %3233 = vmatpush.msra.mxu0 %v2602
    %3234 = vmatpush.msra.mxu0 %v2598
    %3235 = vmatpush.msra.mxu0 %v2594
    %3236 = vmatpush.msra.mxu0 %v2590
    %3237 = vmatpush.msra.mxu0 %v2586
    %3238 = vmatpush.msra.mxu0 %v2582
    %3239 = vmatpush.msra.mxu0 %v2578
    %3240 = vmatpush.msra.mxu0 %v2574
    %3241 = vmatpush.msra.mxu0 %v2570
    %3242 = vmatpush.msra.mxu0 %v2566
    %3243 = vmatpush.msra.mxu0 %v2562
    %3244 = vmatpush.msra.mxu0 %v2558
    %3245 = vmatpush.msra.mxu0 %v2554
    %3246 = vmatmul.f32.gmra.mxu0 %v3229
    %v3247 = vpop.f32.mrf.mxu0
    %v3248 = vadd.f32 0.0, %v3247
    %3249 = vdwg.mxu0
    %3250 = vmatpush.msra.mxu0 %v2615
    %3251 = vmatpush.msra.mxu0 %v2611
    %3252 = vmatpush.msra.mxu0 %v2607
    %3253 = vmatpush.msra.mxu0 %v2603
    %3254 = vmatpush.msra.mxu0 %v2599
    %3255 = vmatpush.msra.mxu0 %v2595
    %3256 = vmatpush.msra.mxu0 %v2591
    %3257 = vmatpush.msra.mxu0 %v2587
    %3258 = vmatpush.msra.mxu0 %v2583
    %3259 = vmatpush.msra.mxu0 %v2579
    %3260 = vmatpush.msra.mxu0 %v2575
    %3261 = vmatpush.msra.mxu0 %v2571
    %3262 = vmatpush.msra.mxu0 %v2567
    %3263 = vmatpush.msra.mxu0 %v2563
    %3264 = vmatpush.msra.mxu0 %v2559
    %3265 = vmatpush.msra.mxu0 %v2555
    %3266 = vmatmul.f32.gmra.mxu0 %v3229
    %v3267 = vpop.f32.mrf.mxu0
    %v3268 = vadd.f32 0.0, %v3267
    %3269 = vdwg.mxu0
    %3270 = vmatpush.msra.mxu0 %v2616
    %3271 = vmatpush.msra.mxu0 %v2612
    %3272 = vmatpush.msra.mxu0 %v2608
    %3273 = vmatpush.msra.mxu0 %v2604
    %3274 = vmatpush.msra.mxu0 %v2600
    %3275 = vmatpush.msra.mxu0 %v2596
    %3276 = vmatpush.msra.mxu0 %v2592
    %3277 = vmatpush.msra.mxu0 %v2588
    %3278 = vmatpush.msra.mxu0 %v2584
    %3279 = vmatpush.msra.mxu0 %v2580
    %3280 = vmatpush.msra.mxu0 %v2576
    %3281 = vmatpush.msra.mxu0 %v2572
    %3282 = vmatpush.msra.mxu0 %v2568
    %3283 = vmatpush.msra.mxu0 %v2564
    %3284 = vmatpush.msra.mxu0 %v2560
    %3285 = vmatpush.msra.mxu0 %v2556
    %3286 = vmatmul.f32.gmra.mxu0 %v3229
    %v3287 = vpop.f32.mrf.mxu0
    %v3288 = vadd.f32 0.0, %v3287
    %3289 = vdwg.mxu0
    %3290 = vmatpush.msra.mxu0 %v2617
    %3291 = vmatpush.msra.mxu0 %v2613
    %3292 = vmatpush.msra.mxu0 %v2609
    %3293 = vmatpush.msra.mxu0 %v2605
    %3294 = vmatpush.msra.mxu0 %v2601
    %3295 = vmatpush.msra.mxu0 %v2597
    %3296 = vmatpush.msra.mxu0 %v2593
    %3297 = vmatpush.msra.mxu0 %v2589
    %3298 = vmatpush.msra.mxu0 %v2585
    %3299 = vmatpush.msra.mxu0 %v2581
    %3300 = vmatpush.msra.mxu0 %v2577
    %3301 = vmatpush.msra.mxu0 %v2573
    %3302 = vmatpush.msra.mxu0 %v2569
    %3303 = vmatpush.msra.mxu0 %v2565
    %3304 = vmatpush.msra.mxu0 %v2561
    %3305 = vmatpush.msra.mxu0 %v2557
    %3306 = vmatmul.f32.gmra.mxu0 %v3229
    %v3307 = vpop.f32.mrf.mxu0
    %v3308 = vadd.f32 0.0, %v3307
    %3309 = vdwg.mxu0
    %v3310 = vadd.f32 %v2425, %v3248
    %v3311 = vadd.f32 %v2466, %v3268
    %v3312 = vadd.f32 %v2507, %v3288
    %v3313 = vadd.f32 %v2548, %v3308
    %v3314 = vmul.f32 %v3310, 0.5
    %v3315 = vtanh.pop %v3314
    %v3316 = vadd.f32 %v3315, 1.0
    %v3317 = vmul.f32 %v3316, 0.5
    %v3318 = vmul.f32 %v3311, 0.5
    %v3319 = vtanh.pop %v3318
    %v3320 = vadd.f32 %v3319, 1.0
    %v3321 = vmul.f32 %v3320, 0.5
    %v3322 = vtanh.pop %v3312
    %v3323 = vmul.f32 %v3313, 0.5
    %v3324 = vtanh.pop %v3323
    %v3325 = vadd.f32 %v3324, 1.0
    %v3326 = vmul.f32 %v3325, 0.5
    %v3327 = vmul.f32 %v3321, %v3227
    %v3328 = vmul.f32 %v3317, %v3322
    %v3329 = vadd.f32 %v3327, %v3328
    %v3330 = vtanh.pop %v3329
    %v3331 = vmul.f32 %v3326, %v3330
    %3332 = vmatpush.msra.mxu0 %v2614
    %3333 = vmatpush.msra.mxu0 %v2610
    %3334 = vmatpush.msra.mxu0 %v2606
    %3335 = vmatpush.msra.mxu0 %v2602
    %3336 = vmatpush.msra.mxu0 %v2598
    %3337 = vmatpush.msra.mxu0 %v2594
    %3338 = vmatpush.msra.mxu0 %v2590
    %3339 = vmatpush.msra.mxu0 %v2586
    %3340 = vmatpush.msra.mxu0 %v2582
    %3341 = vmatpush.msra.mxu0 %v2578
    %3342 = vmatpush.msra.mxu0 %v2574
    %3343 = vmatpush.msra.mxu0 %v2570
    %3344 = vmatpush.msra.mxu0 %v2566
    %3345 = vmatpush.msra.mxu0 %v2562
    %3346 = vmatpush.msra.mxu0 %v2558
    %3347 = vmatpush.msra.mxu0 %v2554
    %3348 = vmatmul.f32.gmra.mxu0 %v3331
    %v3349 = vpop.f32.mrf.mxu0
    %v3350 = vadd.f32 0.0, %v3349
    %3351 = vdwg.mxu0
    %3352 = vmatpush.msra.mxu0 %v2615
    %3353 = vmatpush.msra.mxu0 %v2611
    %3354 = vmatpush.msra.mxu0 %v2607
    %3355 = vmatpush.msra.mxu0 %v2603
    %3356 = vmatpush.msra.mxu0 %v2599
    %3357 = vmatpush.msra.mxu0 %v2595
    %3358 = vmatpush.msra.mxu0 %v2591
    %3359 = vmatpush.msra.mxu0 %v2587
    %3360 = vmatpush.msra.mxu0 %v2583
    %3361 = vmatpush.msra.mxu0 %v2579
    %3362 = vmatpush.msra.mxu0 %v2575
    %3363 = vmatpush.msra.mxu0 %v2571
    %3364 = vmatpush.msra.mxu0 %v2567
    %3365 = vmatpush.msra.mxu0 %v2563
    %3366 = vmatpush.msra.mxu0 %v2559
    %3367 = vmatpush.msra.mxu0 %v2555
    %3368 = vmatmul.f32.gmra.mxu0 %v3331
    %v3369 = vpop.f32.mrf.mxu0
    %v3370 = vadd.f32 0.0, %v3369
    %3371 = vdwg.mxu0
    %3372 = vmatpush.msra.mxu0 %v2616
    %3373 = vmatpush.msra.mxu0 %v2612
    %3374 = vmatpush.msra.mxu0 %v2608
    %3375 = vmatpush.msra.mxu0 %v2604
    %3376 = vmatpush.msra.mxu0 %v2600
    %3377 = vmatpush.msra.mxu0 %v2596
    %3378 = vmatpush.msra.mxu0 %v2592
    %3379 = vmatpush.msra.mxu0 %v2588
    %3380 = vmatpush.msra.mxu0 %v2584
    %3381 = vmatpush.msra.mxu0 %v2580
    %3382 = vmatpush.msra.mxu0 %v2576
    %3383 = vmatpush.msra.mxu0 %v2572
    %3384 = vmatpush.msra.mxu0 %v2568
    %3385 = vmatpush.msra.mxu0 %v2564
    %3386 = vmatpush.msra.mxu0 %v2560
    %3387 = vmatpush.msra.mxu0 %v2556
    %3388 = vmatmul.f32.gmra.mxu0 %v3331
    %v3389 = vpop.f32.mrf.mxu0
    %v3390 = vadd.f32 0.0, %v3389
    %3391 = vdwg.mxu0
    %3392 = vmatpush.msra.mxu0 %v2617
    %3393 = vmatpush.msra.mxu0 %v2613
    %3394 = vmatpush.msra.mxu0 %v2609
    %3395 = vmatpush.msra.mxu0 %v2605
    %3396 = vmatpush.msra.mxu0 %v2601
    %3397 = vmatpush.msra.mxu0 %v2597
    %3398 = vmatpush.msra.mxu0 %v2593
    %3399 = vmatpush.msra.mxu0 %v2589
    %3400 = vmatpush.msra.mxu0 %v2585
    %3401 = vmatpush.msra.mxu0 %v2581
    %3402 = vmatpush.msra.mxu0 %v2577
    %3403 = vmatpush.msra.mxu0 %v2573
    %3404 = vmatpush.msra.mxu0 %v2569
    %3405 = vmatpush.msra.mxu0 %v2565
    %3406 = vmatpush.msra.mxu0 %v2561
    %3407 = vmatpush.msra.mxu0 %v2557
    %3408 = vmatmul.f32.gmra.mxu0 %v3331
    %v3409 = vpop.f32.mrf.mxu0
    %v3410 = vadd.f32 0.0, %v3409
    %3411 = vdwg.mxu0
    %v3412 = vadd.f32 %v2428, %v3350
    %v3413 = vadd.f32 %v2469, %v3370
    %v3414 = vadd.f32 %v2510, %v3390
    %v3415 = vadd.f32 %v2551, %v3410
    %v3416 = vmul.f32 %v3412, 0.5
    %v3417 = vtanh.pop %v3416
    %v3418 = vadd.f32 %v3417, 1.0
    %v3419 = vmul.f32 %v3418, 0.5
    %v3420 = vmul.f32 %v3413, 0.5
    %v3421 = vtanh.pop %v3420
    %v3422 = vadd.f32 %v3421, 1.0
    %v3423 = vmul.f32 %v3422, 0.5
    %v3424 = vtanh.pop %v3414
    %v3425 = vmul.f32 %v3415, 0.5
    %v3426 = vtanh.pop %v3425
    %v3427 = vadd.f32 %v3426, 1.0
    %v3428 = vmul.f32 %v3427, 0.5
    %v3429 = vmul.f32 %v3423, %v3329
    %v3430 = vmul.f32 %v3419, %v3424
    %v3431 = vadd.f32 %v3429, %v3430
    %v3432 = vtanh.pop %v3431
    %v3433 = vmul.f32 %v3428, %v3432
    %v3434 = vld [vmem:[#allocation8] sm:$0xff]
    %v3435 = vld [vmem:[#allocation8 + $0x8] sm:$0xff]
    %v3436 = vld [vmem:[#allocation8 + $0x10] sm:$0xff]
    %v3437 = vld [vmem:[#allocation8 + $0x18] sm:$0xff]
    %v3438 = vld [vmem:[#allocation8 + $0x20] sm:$0xff]
    %v3439 = vld [vmem:[#allocation8 + $0x28] sm:$0xff]
    %v3440 = vld [vmem:[#allocation8 + $0x30] sm:$0xff]
    %v3441 = vld [vmem:[#allocation8 + $0x38] sm:$0xff]
    %v3442 = vld [vmem:[#allocation8 + $0x40] sm:$0xff]
    %v3443 = vld [vmem:[#allocation8 + $0x48] sm:$0xff]
    %v3444 = vld [vmem:[#allocation8 + $0x50] sm:$0xff]
    %v3445 = vld [vmem:[#allocation8 + $0x58] sm:$0xff]
    %v3446 = vld [vmem:[#allocation8 + $0x60] sm:$0xff]
    %v3447 = vld [vmem:[#allocation8 + $0x68] sm:$0xff]
    %v3448 = vld [vmem:[#allocation8 + $0x70] sm:$0xff]
    %v3449 = vld [vmem:[#allocation8 + $0x78] sm:$0xff]
    %v3450 = vld [vmem:[%s6] sm:$0x1]
    %v3452 = vperm.slane %v3450, 0
    %3454 = vmatpush.msra.mxu0 %v3449
    %3455 = vmatpush.msra.mxu0 %v3448
    %3456 = vmatpush.msra.mxu0 %v3447
    %3457 = vmatpush.msra.mxu0 %v3446
    %3458 = vmatpush.msra.mxu0 %v3445
    %3459 = vmatpush.msra.mxu0 %v3444
    %3460 = vmatpush.msra.mxu0 %v3443
    %3461 = vmatpush.msra.mxu0 %v3442
    %3462 = vmatpush.msra.mxu0 %v3441
    %3463 = vmatpush.msra.mxu0 %v3440
    %3464 = vmatpush.msra.mxu0 %v3439
    %3465 = vmatpush.msra.mxu0 %v3438
    %3466 = vmatpush.msra.mxu0 %v3437
    %3467 = vmatpush.msra.mxu0 %v3436
    %3468 = vmatpush.msra.mxu0 %v3435
    %3469 = vmatpush.msra.mxu0 %v3434
    %3470 = vmatmul.f32.gmra.mxu0 %v3433
    %v3471 = vpop.f32.mrf.mxu0
    %v3472 = vadd.f32 %v3452, %v3471
    %3473 = vdwg.mxu0
    %3474 = vmax.xlane.f32.xlu0 %v3472
    %v3475 = vpop.xlane.xlu0 %3474
    %v3476 = vsub.f32 %v3472, %v3475
    %v3477 = vmul.f32 %v3476, 1.442695
    %v3478 = vpow.pop %v3477
    %3479 = vadd.xlane.f32.xlu0 %v3478
    %v3480 = vpop.xlane.xlu0 %3479
    %v3481 = vlog2.pop %v3480
    %v3482 = vmul.f32 %v3481, 0.6931472
    %v3483 = vsub.f32 %v3476, %v3482
    %3484 = vst [vmem:[#allocation10] sm:$0xff] %v3483
    // Predicated region
    $region46: #{tpu_custom_call.1} parent=1 // pred_check
      _
    $region47: #{tpu_custom_call.1} parent=1 // pred_check_branch
      %3486 = sbr.rel (0) target = $region49
    $region48: #{tpu_custom_call.1} parent=1 // pred_region
      %3488 = vsyncadd [#allocation4], 0
      %s3490 = sshll.u32 [#allocation10], 4
      %s3491 = int_to_ptr.vmem [resolvable:$true] %s3490
      %s3492 = sshll.u32 %s7, 4
      %s3493 = int_to_ptr.hbm [resolvable:$true] %s3492
      %3495 = dma.vmem_to_hbm [thread:$0]  %s3491, 128, %s3493, [#allocation4]
    $region49: #{tpu_custom_call.1} parent=1 // pred_fallthru
      _
    // Predicated region
    $region50: #{tpu_custom_call.1} parent=1 // pred_check
      _
    $region51: #{tpu_custom_call.1} parent=1 // pred_check_branch
      %3497 = sbr.rel (0) target = $region53
    $region52: #{tpu_custom_call.1} parent=1 // pred_region
      %3499 = dma.done [#allocation4], 128
    $region53: #{tpu_custom_call.1} parent=1 // pred_fallthru
      _
    %3500 = vsyncpa [#allocation3], 1
    %3501 = vsyncpa [#allocation6], 1
    %3502 = vsyncpa [#allocation9], 1
    %3503 = vsyncpa [#allocation4], 1

</llo_original>
